<compile_context>
chip_gen: v7x
topology: tpu7x:2x2x1
jax: 0.10.0
libtpu: 0.0.40
codegen_flags: <defaults>
</compile_context>

<pallas_src>
import functools

import jax
import jax.numpy as jnp
import numpy as np
from jax.experimental import pallas as pl
from jax.experimental.pallas import tpu as pltpu


C1 = 16    # conv1 out_channels
C2 = 32    # conv2 out_channels
KW = 3     # conv kernel size
FC_H = 64  # fc hidden width


# ----------------------------------------------------------------------------
# Fused kernel: whole CNN forward for one batch tile (all 2-D MXU matmuls).
# ----------------------------------------------------------------------------
def cnn_fused_kernel(x_ref, w1_ref, w2_ref, bconv_ref, wf1_ref, head_ref,
                     out_ref):
    f32 = jnp.float32
    x = x_ref[...].astype(f32)                          # (tb, L)
    bconv = bconv_ref[...]                              # (2, 8L)
    head = head_ref[...]                                # (3, 64)

    # Conv1d(1->16, k3, p1) + ReLU + MaxPool1d(2): one matmul against the
    # concatenated [even | odd] Toeplitz weights, then a lane-aligned half max.
    n1 = w1_ref.shape[1] // 2
    y1 = jnp.dot(x, w1_ref[...], preferred_element_type=f32)       # (tb, 2*n1)
    p1 = jnp.maximum(jnp.maximum(y1[:, :n1], y1[:, n1:]) + bconv[0:1, :], 0.0)

    # Conv1d(16->32, k3, p1) + ReLU + MaxPool1d(2); output columns are already
    # in torch's x.view(B, -1) (channel-major) order.
    n2 = w2_ref.shape[1] // 2
    y2 = jnp.dot(p1, w2_ref[...], preferred_element_type=f32)      # (tb, 2*n2)
    p2 = jnp.maximum(jnp.maximum(y2[:, :n2], y2[:, n2:]) + bconv[1:2, :], 0.0)

    # Linear(8L -> 64) + ReLU
    h = jnp.maximum(jnp.dot(p2, wf1_ref[...], preferred_element_type=f32)
                    + head[0:1, :], 0.0)                            # (tb, 64)

    # Linear(64 -> 1): lane reduction (off the MXU; trivial at this width).
    out = jnp.sum(h * head[1:2, :], axis=1, keepdims=True) + head[2:3, 0:1]
    out_ref[...] = out.astype(out_ref.dtype)                        # (tb, 1)


# ----------------------------------------------------------------------------
# Weight preparation (pure wrapper-side prep; done once, outside the hot path).
# Folds conv taps + zero padding + the stride-2 max-pool selection into dense
# even/odd Toeplitz matrices (via Kronecker products), concatenated along N.
# ----------------------------------------------------------------------------
def pack_cnn_params(w1, b1, w2, b2, wf1, bf1, wf2, bf2):
    f32 = jnp.float32
    L4 = wf1.shape[1] // C2          # length after both pools
    L2, L = 2 * L4, 4 * L4

    def taps(n_in, n_out):
        # sel[e][k][l_in, n] = 1 iff l_in == 2n + (k-1) + e  (zero pad encoded)
        li = jnp.arange(n_in)[:, None]
        no = jnp.arange(n_out)[None, :]
        return [[(li == 2 * no + (k - 1) + e).astype(f32) for k in range(KW)]
                for e in range(2)]

    s1 = taps(L, L2)
    w1e = sum(jnp.kron(w1[:, 0, k].astype(f32)[None, :], s1[0][k]) for k in range(KW))
    w1o = sum(jnp.kron(w1[:, 0, k].astype(f32)[None, :], s1[1][k]) for k in range(KW))
    w1cat = jnp.concatenate([w1e, w1o], axis=1)           # (L, 2*C1*L2)

    s2 = taps(L2, L4)
    w2e = sum(jnp.kron(w2[:, :, k].astype(f32).T, s2[0][k]) for k in range(KW))
    w2o = sum(jnp.kron(w2[:, :, k].astype(f32).T, s2[1][k]) for k in range(KW))
    w2cat = jnp.concatenate([w2e, w2o], axis=1)           # (C1*L2, 2*C2*L4)

    # Both repeated conv biases have width C1*L2 == C2*L4 == 8L.
    bconv = jnp.stack([jnp.repeat(b1.astype(f32), L2),
                       jnp.repeat(b2.astype(f32), L4)], axis=0)      # (2, 8L)

    # Coalesced head: row0 = fc1 bias, row1 = fc2 weight, row2[0] = fc2 bias.
    head = jnp.concatenate(
        [bf1.astype(f32)[None, :],
         wf2.astype(f32).reshape(1, FC_H),
         jnp.zeros((1, FC_H), f32).at[0, 0].set(bf2.astype(f32)[0])],
        axis=0)                                                       # (3, 64)

    return (w1cat, w2cat, bconv, wf1.T.astype(f32), head)


# ----------------------------------------------------------------------------
# pallas_call wrapper
# ----------------------------------------------------------------------------
def cnn_forward_packed(x, w1cat, w2cat, bconv, wf1t, head, *,
                       tb=None, single_buffer_weights=True):
    B, L = x.shape
    B_pad = ((B + 7) // 8) * 8               # arbitrary batch sizes supported
    if B_pad != B:
        x = jnp.pad(x, ((0, B_pad - B), (0, 0)))

    if tb is None:
        tb = min(B_pad, 256)                 # fill the MXU M-dimension
    tb = max(8, (min(tb, B_pad) // 8) * 8)
    while B_pad % tb:                        # largest multiple-of-8 divisor
        tb -= 8

    def weight_spec(shape):
        idx = lambda i, _n=len(shape): (0,) * _n
        if single_buffer_weights:
            # Grid-invariant: never re-fetched, so a single VMEM buffer is enough.
            return pl.BlockSpec(shape, idx, pipeline_mode=pl.Buffered(1))
        return pl.BlockSpec(shape, idx)

    out = pl.pallas_call(
        cnn_fused_kernel,
        out_shape=jax.ShapeDtypeStruct((B_pad, 1), jnp.float32),
        grid_spec=pltpu.PrefetchScalarGridSpec(
            num_scalar_prefetch=0,
            grid=(B_pad // tb,),
            in_specs=[
                pl.BlockSpec((tb, L), lambda i: (i, 0)),
                weight_spec(w1cat.shape),
                weight_spec(w2cat.shape),
                weight_spec(bconv.shape),
                weight_spec(wf1t.shape),
                weight_spec(head.shape),
            ],
            out_specs=pl.BlockSpec((tb, 1), lambda i: (i, 0)),
        ),
        compiler_params=pltpu.CompilerParams(
            dimension_semantics=("parallel",)),
    )(x, w1cat, w2cat, bconv, wf1t, head)
    return out[:B]


def cnn_forward(x, w1, b1, w2, b2, wf1, bf1, wf2, bf2):
    """Convenience entry point taking torch-layout parameters."""
    packed = pack_cnn_params(w1, b1, w2, b2, wf1, bf1, wf2, bf2)
    return cnn_forward_packed(x, *packed)


# ----------------------------------------------------------------------------
# Pure-JAX reference replicating the PyTorch module exactly
# ----------------------------------------------------------------------------
def ref_forward(x, w1, b1, w2, b2, wf1, bf1, wf2, bf2):
    B, L = x.shape
    xp = jnp.pad(x[:, None, :], ((0, 0), (0, 0), (1, 1)))
    cols1 = jnp.stack([xp[:, :, k:k + L] for k in range(3)], axis=-1)        # (B,1,L,3)
    y1 = jnp.einsum('bilk,oik->bol', cols1, w1) + b1[None, :, None]
    y1 = jnp.maximum(y1, 0.0)
    p1 = jnp.max(y1.reshape(B, C1, L // 2, 2), axis=-1)
    p1p = jnp.pad(p1, ((0, 0), (0, 0), (1, 1)))
    cols2 = jnp.stack([p1p[:, :, k:k + L // 2] for k in range(3)], axis=-1)  # (B,16,L2,3)
    y2 = jnp.einsum('bclk,ock->bol', cols2, w2) + b2[None, :, None]
    y2 = jnp.maximum(y2, 0.0)
    p2 = jnp.max(y2.reshape(B, C2, L // 4, 2), axis=-1)
    flat = p2.reshape(B, -1)
    h = jnp.maximum(flat @ wf1.T + bf1[None, :], 0.0)
    return h @ wf2.T + bf2[None, :]


if __name__ == "__main__":
    B, input_dim = 16, 64   # small shapes; input_dim must be divisible by 4

    key = jax.random.PRNGKey(0)
    ks = jax.random.split(key, 9)
    x = jax.random.normal(ks[0], (B, input_dim), jnp.float32)
    # deterministic synthetic parameters (shapes from the nn.Module __init__)
    w1 = 0.30 * jax.random.normal(ks[1], (C1, 1, 3), jnp.float32)
    b1 = 0.10 * jax.random.normal(ks[2], (C1,), jnp.float32)
    w2 = 0.10 * jax.random.normal(ks[3], (C2, C1, 3), jnp.float32)
    b2 = 0.10 * jax.random.normal(ks[4], (C2,), jnp.float32)
    wf1 = 0.05 * jax.random.normal(ks[5], (FC_H, input_dim // 4 * C2), jnp.float32)
    bf1 = 0.10 * jax.random.normal(ks[6], (FC_H,), jnp.float32)
    wf2 = 0.10 * jax.random.normal(ks[7], (1, FC_H), jnp.float32)
    bf2 = 0.10 * jax.random.normal(ks[8], (1,), jnp.float32)

    # Pack the weights once (weight prep); jit only the fused kernel call.
    packed = pack_cnn_params(w1, b1, w2, b2, wf1, bf1, wf2, bf2)

    try:
        fwd = jax.jit(functools.partial(cnn_forward_packed,
                                        single_buffer_weights=True))
        out = jax.block_until_ready(fwd(x, *packed))
    except Exception:
        # Fallback if this Pallas build rejects pl.Buffered(1) on pallas_call
        # BlockSpecs; everything else is identical.
        fwd = jax.jit(functools.partial(cnn_forward_packed,
                                        single_buffer_weights=False))
        out = jax.block_until_ready(fwd(x, *packed))

    assert out.shape == (B, 1), out.shape

    ref = ref_forward(x, w1, b1, w2, b2, wf1, bf1, wf2, bf2)
    np.testing.assert_allclose(np.asarray(out), np.asarray(ref),
                               rtol=2e-3, atol=2e-3)
    print("KERNEL_OK")
</pallas_src>

<mosaic_0001>
module attributes {stable_mosaic.version = 11 : i64} {
  func.func @cnn_fused_kernel(%arg0: i32, %arg1: memref<16x64xf32, #tpu.memory_space<vmem>>, %arg2: memref<64x1024xf32, #tpu.memory_space<vmem>>, %arg3: memref<512x1024xf32, #tpu.memory_space<vmem>>, %arg4: memref<2x512xf32, #tpu.memory_space<vmem>>, %arg5: memref<512x64xf32, #tpu.memory_space<vmem>>, %arg6: memref<3x64xf32, #tpu.memory_space<vmem>>, %arg7: memref<16x1xf32, #tpu.memory_space<vmem>>) attributes {dimension_semantics = [#tpu.dimension_semantics<parallel>], iteration_bounds = array<i64: 1>, scalar_prefetch = 0 : i64, scratch_operands = 0 : i64, tpu.core_type = #tpu.core_type<tc>, window_params = [{transform_indices = @transform_0, window_bounds = array<i64: 16, 64>}, {pipeline_mode = #tpu.pipeline_mode<synchronous>, transform_indices = @transform_1, window_bounds = array<i64: 64, 1024>}, {pipeline_mode = #tpu.pipeline_mode<synchronous>, transform_indices = @transform_2, window_bounds = array<i64: 512, 1024>}, {pipeline_mode = #tpu.pipeline_mode<synchronous>, transform_indices = @transform_3, window_bounds = array<i64: 2, 512>}, {pipeline_mode = #tpu.pipeline_mode<synchronous>, transform_indices = @transform_4, window_bounds = array<i64: 512, 64>}, {pipeline_mode = #tpu.pipeline_mode<synchronous>, transform_indices = @transform_5, window_bounds = array<i64: 3, 64>}, {transform_indices = @transform_6, window_bounds = array<i64: 16, 1>}]} {
    %c0 = arith.constant 0 : index
    %c0_0 = arith.constant 0 : index
    %0 = vector.load %arg1[%c0, %c0_0] : memref<16x64xf32, #tpu.memory_space<vmem>>, vector<16x64xf32>
    %c0_1 = arith.constant 0 : index
    %c0_2 = arith.constant 0 : index
    %1 = vector.load %arg4[%c0_1, %c0_2] : memref<2x512xf32, #tpu.memory_space<vmem>>, vector<2x512xf32>
    %c0_3 = arith.constant 0 : index
    %c0_4 = arith.constant 0 : index
    %2 = vector.load %arg6[%c0_3, %c0_4] : memref<3x64xf32, #tpu.memory_space<vmem>>, vector<3x64xf32>
    %c0_5 = arith.constant 0 : index
    %c0_6 = arith.constant 0 : index
    %3 = vector.load %arg2[%c0_5, %c0_6] : memref<64x1024xf32, #tpu.memory_space<vmem>>, vector<64x1024xf32>
    %cst = arith.constant dense<0.000000e+00> : vector<16x1024xf32>
    %4 = tpu.matmul %0, %3, %cst {dimension_numbers = #tpu.dot_dimension_numbers<[1], [0], [0], [1], [0, 0, 1, 1], [], []>} : vector<16x64xf32>, vector<64x1024xf32>, vector<16x1024xf32> -> vector<16x1024xf32>
    %5 = vector.extract_strided_slice %4 {offsets = [0, 0], sizes = [16, 512], strides = [1, 1]} : vector<16x1024xf32> to vector<16x512xf32>
    %6 = vector.extract_strided_slice %4 {offsets = [0, 512], sizes = [16, 512], strides = [1, 1]} : vector<16x1024xf32> to vector<16x512xf32>
    %7 = arith.maximumf %5, %6 : vector<16x512xf32>
    %8 = vector.extract_strided_slice %1 {offsets = [0, 0], sizes = [1, 512], strides = [1, 1]} : vector<2x512xf32> to vector<1x512xf32>
    %9 = vector.broadcast %8 : vector<1x512xf32> to vector<16x512xf32>
    %10 = arith.addf %7, %9 : vector<16x512xf32>
    %cst_7 = arith.constant 0.000000e+00 : f32
    %11 = vector.broadcast %cst_7 : f32 to vector<16x512xf32>
    %12 = arith.maximumf %10, %11 : vector<16x512xf32>
    %c0_8 = arith.constant 0 : index
    %c0_9 = arith.constant 0 : index
    %13 = vector.load %arg3[%c0_8, %c0_9] : memref<512x1024xf32, #tpu.memory_space<vmem>>, vector<512x1024xf32>
    %cst_10 = arith.constant dense<0.000000e+00> : vector<16x1024xf32>
    %14 = tpu.matmul %12, %13, %cst_10 {dimension_numbers = #tpu.dot_dimension_numbers<[1], [0], [0], [1], [0, 0, 1, 1], [], []>} : vector<16x512xf32>, vector<512x1024xf32>, vector<16x1024xf32> -> vector<16x1024xf32>
    %15 = vector.extract_strided_slice %14 {offsets = [0, 0], sizes = [16, 512], strides = [1, 1]} : vector<16x1024xf32> to vector<16x512xf32>
    %16 = vector.extract_strided_slice %14 {offsets = [0, 512], sizes = [16, 512], strides = [1, 1]} : vector<16x1024xf32> to vector<16x512xf32>
    %17 = arith.maximumf %15, %16 : vector<16x512xf32>
    %18 = vector.extract_strided_slice %1 {offsets = [1, 0], sizes = [1, 512], strides = [1, 1]} : vector<2x512xf32> to vector<1x512xf32>
    %19 = vector.broadcast %18 : vector<1x512xf32> to vector<16x512xf32>
    %20 = arith.addf %17, %19 : vector<16x512xf32>
    %cst_11 = arith.constant 0.000000e+00 : f32
    %21 = vector.broadcast %cst_11 : f32 to vector<16x512xf32>
    %22 = arith.maximumf %20, %21 : vector<16x512xf32>
    %c0_12 = arith.constant 0 : index
    %c0_13 = arith.constant 0 : index
    %23 = vector.load %arg5[%c0_12, %c0_13] : memref<512x64xf32, #tpu.memory_space<vmem>>, vector<512x64xf32>
    %cst_14 = arith.constant dense<0.000000e+00> : vector<16x64xf32>
    %24 = tpu.matmul %22, %23, %cst_14 {dimension_numbers = #tpu.dot_dimension_numbers<[1], [0], [0], [1], [0, 0, 1, 1], [], []>} : vector<16x512xf32>, vector<512x64xf32>, vector<16x64xf32> -> vector<16x64xf32>
    %25 = vector.extract_strided_slice %2 {offsets = [0, 0], sizes = [1, 64], strides = [1, 1]} : vector<3x64xf32> to vector<1x64xf32>
    %26 = vector.broadcast %25 : vector<1x64xf32> to vector<16x64xf32>
    %27 = arith.addf %24, %26 : vector<16x64xf32>
    %cst_15 = arith.constant 0.000000e+00 : f32
    %28 = vector.broadcast %cst_15 : f32 to vector<16x64xf32>
    %29 = arith.maximumf %27, %28 : vector<16x64xf32>
    %30 = vector.extract_strided_slice %2 {offsets = [1, 0], sizes = [1, 64], strides = [1, 1]} : vector<3x64xf32> to vector<1x64xf32>
    %31 = vector.broadcast %30 : vector<1x64xf32> to vector<16x64xf32>
    %32 = arith.mulf %29, %31 : vector<16x64xf32>
    %cst_16 = arith.constant dense<0.000000e+00> : vector<16xf32>
    %33 = vector.multi_reduction <add>, %32, %cst_16 [1] : vector<16x64xf32> to vector<16xf32>
    %34 = vector.shape_cast %33 : vector<16xf32> to vector<16x1xf32>
    %35 = vector.extract_strided_slice %2 {offsets = [2, 0], sizes = [1, 1], strides = [1, 1]} : vector<3x64xf32> to vector<1x1xf32>
    %36 = vector.broadcast %35 : vector<1x1xf32> to vector<16x1xf32>
    %37 = arith.addf %34, %36 : vector<16x1xf32>
    %c0_17 = arith.constant 0 : index
    %c0_18 = arith.constant 0 : index
    %38 = vector.load %arg7[%c0_17, %c0_18] : memref<16x1xf32, #tpu.memory_space<vmem>>, vector<16x1xf32>
    tpu.vector_store %arg7[%c0_17, %c0_18], %37 {strides = array<i32>} : memref<16x1xf32, #tpu.memory_space<vmem>>, vector<16x1xf32>,
    return
  }
  func.func @transform_0(%arg0: i32) -> (i32, i32) {
    %c0_i32 = arith.constant 0 : i32
    %c0_i32_0 = arith.constant 0 : i32
    return %arg0, %c0_i32 : i32, i32
  }
  func.func @transform_1(%arg0: i32) -> (i32, i32) {
    %c0_i32 = arith.constant 0 : i32
    %c0_i32_0 = arith.constant 0 : i32
    %c0_i32_1 = arith.constant 0 : i32
    return %c0_i32, %c0_i32_0 : i32, i32
  }
  func.func @transform_2(%arg0: i32) -> (i32, i32) {
    %c0_i32 = arith.constant 0 : i32
    %c0_i32_0 = arith.constant 0 : i32
    %c0_i32_1 = arith.constant 0 : i32
    return %c0_i32, %c0_i32_0 : i32, i32
  }
  func.func @transform_3(%arg0: i32) -> (i32, i32) {
    %c0_i32 = arith.constant 0 : i32
    %c0_i32_0 = arith.constant 0 : i32
    %c0_i32_1 = arith.constant 0 : i32
    return %c0_i32, %c0_i32_0 : i32, i32
  }
  func.func @transform_4(%arg0: i32) -> (i32, i32) {
    %c0_i32 = arith.constant 0 : i32
    %c0_i32_0 = arith.constant 0 : i32
    %c0_i32_1 = arith.constant 0 : i32
    return %c0_i32, %c0_i32_0 : i32, i32
  }
  func.func @transform_5(%arg0: i32) -> (i32, i32) {
    %c0_i32 = arith.constant 0 : i32
    %c0_i32_0 = arith.constant 0 : i32
    %c0_i32_1 = arith.constant 0 : i32
    return %c0_i32, %c0_i32_0 : i32, i32
  }
  func.func @transform_6(%arg0: i32) -> (i32, i32) {
    %c0_i32 = arith.constant 0 : i32
    %c0_i32_0 = arith.constant 0 : i32
    return %arg0, %c0_i32 : i32, i32
  }
}

module attributes {stable_mosaic.version = 11 : i64} {
  func.func @cnn_fused_kernel(%arg0: i32, %arg1: memref<16x64xf32, #tpu.memory_space<vmem>>, %arg2: memref<64x1024xf32, #tpu.memory_space<vmem>>, %arg3: memref<512x1024xf32, #tpu.memory_space<vmem>>, %arg4: memref<2x512xf32, #tpu.memory_space<vmem>>, %arg5: memref<512x64xf32, #tpu.memory_space<vmem>>, %arg6: memref<3x64xf32, #tpu.memory_space<vmem>>, %arg7: memref<16x1xf32, #tpu.memory_space<vmem>>) attributes {dimension_semantics = [#tpu.dimension_semantics<parallel>], iteration_bounds = array<i64: 1>, scalar_prefetch = 0 : i64, scratch_operands = 0 : i64, tpu.core_type = #tpu.core_type<tc>, window_params = [{transform_indices = @transform_0, window_bounds = array<i64: 16, 64>}, {pipeline_mode = #tpu.pipeline_mode<synchronous>, transform_indices = @transform_1, window_bounds = array<i64: 64, 1024>}, {pipeline_mode = #tpu.pipeline_mode<synchronous>, transform_indices = @transform_2, window_bounds = array<i64: 512, 1024>}, {pipeline_mode = #tpu.pipeline_mode<synchronous>, transform_indices = @transform_3, window_bounds = array<i64: 2, 512>}, {pipeline_mode = #tpu.pipeline_mode<synchronous>, transform_indices = @transform_4, window_bounds = array<i64: 512, 64>}, {pipeline_mode = #tpu.pipeline_mode<synchronous>, transform_indices = @transform_5, window_bounds = array<i64: 3, 64>}, {transform_indices = @transform_6, window_bounds = array<i64: 16, 1>}]} {
    %c0 = arith.constant 0 : index
    %c0_0 = arith.constant 0 : index
    %0 = vector.load %arg1[%c0, %c0_0] : memref<16x64xf32, #tpu.memory_space<vmem>>, vector<16x64xf32>
    %c0_1 = arith.constant 0 : index
    %c0_2 = arith.constant 0 : index
    %1 = vector.load %arg4[%c0_1, %c0_2] : memref<2x512xf32, #tpu.memory_space<vmem>>, vector<2x512xf32>
    %c0_3 = arith.constant 0 : index
    %c0_4 = arith.constant 0 : index
    %2 = vector.load %arg6[%c0_3, %c0_4] : memref<3x64xf32, #tpu.memory_space<vmem>>, vector<3x64xf32>
    %c0_5 = arith.constant 0 : index
    %c0_6 = arith.constant 0 : index
    %3 = vector.load %arg2[%c0_5, %c0_6] : memref<64x1024xf32, #tpu.memory_space<vmem>>, vector<64x1024xf32>
    %cst = arith.constant dense<0.000000e+00> : vector<16x1024xf32>
    %4 = tpu.matmul %0, %3, %cst {dimension_numbers = #tpu.dot_dimension_numbers<[1], [0], [0], [1], [0, 0, 1, 1], [], []>} : vector<16x64xf32>, vector<64x1024xf32>, vector<16x1024xf32> -> vector<16x1024xf32>
    %5 = vector.extract_strided_slice %4 {offsets = [0, 0], sizes = [16, 512], strides = [1, 1]} : vector<16x1024xf32> to vector<16x512xf32>
    %6 = vector.extract_strided_slice %4 {offsets = [0, 512], sizes = [16, 512], strides = [1, 1]} : vector<16x1024xf32> to vector<16x512xf32>
    %7 = arith.maximumf %5, %6 : vector<16x512xf32>
    %8 = vector.extract_strided_slice %1 {offsets = [0, 0], sizes = [1, 512], strides = [1, 1]} : vector<2x512xf32> to vector<1x512xf32>
    %9 = vector.broadcast %8 : vector<1x512xf32> to vector<16x512xf32>
    %10 = arith.addf %7, %9 : vector<16x512xf32>
    %cst_7 = arith.constant 0.000000e+00 : f32
    %11 = vector.broadcast %cst_7 : f32 to vector<16x512xf32>
    %12 = arith.maximumf %10, %11 : vector<16x512xf32>
    %c0_8 = arith.constant 0 : index
    %c0_9 = arith.constant 0 : index
    %13 = vector.load %arg3[%c0_8, %c0_9] : memref<512x1024xf32, #tpu.memory_space<vmem>>, vector<512x1024xf32>
    %cst_10 = arith.constant dense<0.000000e+00> : vector<16x1024xf32>
    %14 = tpu.matmul %12, %13, %cst_10 {dimension_numbers = #tpu.dot_dimension_numbers<[1], [0], [0], [1], [0, 0, 1, 1], [], []>} : vector<16x512xf32>, vector<512x1024xf32>, vector<16x1024xf32> -> vector<16x1024xf32>
    %15 = vector.extract_strided_slice %14 {offsets = [0, 0], sizes = [16, 512], strides = [1, 1]} : vector<16x1024xf32> to vector<16x512xf32>
    %16 = vector.extract_strided_slice %14 {offsets = [0, 512], sizes = [16, 512], strides = [1, 1]} : vector<16x1024xf32> to vector<16x512xf32>
    %17 = arith.maximumf %15, %16 : vector<16x512xf32>
    %18 = vector.extract_strided_slice %1 {offsets = [1, 0], sizes = [1, 512], strides = [1, 1]} : vector<2x512xf32> to vector<1x512xf32>
    %19 = vector.broadcast %18 : vector<1x512xf32> to vector<16x512xf32>
    %20 = arith.addf %17, %19 : vector<16x512xf32>
    %cst_11 = arith.constant 0.000000e+00 : f32
    %21 = vector.broadcast %cst_11 : f32 to vector<16x512xf32>
    %22 = arith.maximumf %20, %21 : vector<16x512xf32>
    %c0_12 = arith.constant 0 : index
    %c0_13 = arith.constant 0 : index
    %23 = vector.load %arg5[%c0_12, %c0_13] : memref<512x64xf32, #tpu.memory_space<vmem>>, vector<512x64xf32>
    %cst_14 = arith.constant dense<0.000000e+00> : vector<16x64xf32>
    %24 = tpu.matmul %22, %23, %cst_14 {dimension_numbers = #tpu.dot_dimension_numbers<[1], [0], [0], [1], [0, 0, 1, 1], [], []>} : vector<16x512xf32>, vector<512x64xf32>, vector<16x64xf32> -> vector<16x64xf32>
    %25 = vector.extract_strided_slice %2 {offsets = [0, 0], sizes = [1, 64], strides = [1, 1]} : vector<3x64xf32> to vector<1x64xf32>
    %26 = vector.broadcast %25 : vector<1x64xf32> to vector<16x64xf32>
    %27 = arith.addf %24, %26 : vector<16x64xf32>
    %cst_15 = arith.constant 0.000000e+00 : f32
    %28 = vector.broadcast %cst_15 : f32 to vector<16x64xf32>
    %29 = arith.maximumf %27, %28 : vector<16x64xf32>
    %30 = vector.extract_strided_slice %2 {offsets = [1, 0], sizes = [1, 64], strides = [1, 1]} : vector<3x64xf32> to vector<1x64xf32>
    %31 = vector.broadcast %30 : vector<1x64xf32> to vector<16x64xf32>
    %32 = arith.mulf %29, %31 : vector<16x64xf32>
    %cst_16 = arith.constant dense<0.000000e+00> : vector<16xf32>
    %33 = vector.multi_reduction <add>, %32, %cst_16 [1] : vector<16x64xf32> to vector<16xf32>
    %34 = vector.shape_cast %33 : vector<16xf32> to vector<16x1xf32>
    %35 = vector.extract_strided_slice %2 {offsets = [2, 0], sizes = [1, 1], strides = [1, 1]} : vector<3x64xf32> to vector<1x1xf32>
    %36 = vector.broadcast %35 : vector<1x1xf32> to vector<16x1xf32>
    %37 = arith.addf %34, %36 : vector<16x1xf32>
    %c0_17 = arith.constant 0 : index
    %c0_18 = arith.constant 0 : index
    %38 = vector.load %arg7[%c0_17, %c0_18] : memref<16x1xf32, #tpu.memory_space<vmem>>, vector<16x1xf32>
    tpu.vector_store %arg7[%c0_17, %c0_18], %37 {strides = array<i32>} : memref<16x1xf32, #tpu.memory_space<vmem>>, vector<16x1xf32>,
    return
  }
  func.func @transform_0(%arg0: i32) -> (i32, i32) {
    %c0_i32 = arith.constant 0 : i32
    %c0_i32_0 = arith.constant 0 : i32
    return %arg0, %c0_i32 : i32, i32
  }
  func.func @transform_1(%arg0: i32) -> (i32, i32) {
    %c0_i32 = arith.constant 0 : i32
    %c0_i32_0 = arith.constant 0 : i32
    %c0_i32_1 = arith.constant 0 : i32
    return %c0_i32, %c0_i32_0 : i32, i32
  }
  func.func @transform_2(%arg0: i32) -> (i32, i32) {
    %c0_i32 = arith.constant 0 : i32
    %c0_i32_0 = arith.constant 0 : i32
    %c0_i32_1 = arith.constant 0 : i32
    return %c0_i32, %c0_i32_0 : i32, i32
  }
  func.func @transform_3(%arg0: i32) -> (i32, i32) {
    %c0_i32 = arith.constant 0 : i32
    %c0_i32_0 = arith.constant 0 : i32
    %c0_i32_1 = arith.constant 0 : i32
    return %c0_i32, %c0_i32_0 : i32, i32
  }
  func.func @transform_4(%arg0: i32) -> (i32, i32) {
    %c0_i32 = arith.constant 0 : i32
    %c0_i32_0 = arith.constant 0 : i32
    %c0_i32_1 = arith.constant 0 : i32
    return %c0_i32, %c0_i32_0 : i32, i32
  }
  func.func @transform_5(%arg0: i32) -> (i32, i32) {
    %c0_i32 = arith.constant 0 : i32
    %c0_i32_0 = arith.constant 0 : i32
    %c0_i32_1 = arith.constant 0 : i32
    return %c0_i32, %c0_i32_0 : i32, i32
  }
  func.func @transform_6(%arg0: i32) -> (i32, i32) {
    %c0_i32 = arith.constant 0 : i32
    %c0_i32_0 = arith.constant 0 : i32
    return %arg0, %c0_i32 : i32, i32
  }
}

</mosaic_0001>

<llo_original>
// kernel: cnn_forward_packed.1
$region0: #{cnn_forward_packed.1}
  #allocation0 [shape = 'u32[]', space=smem, size = 0x4, offset = 0x4, fixed_abs, tag = 'smem constant byte address 0x4 - core index']
  #allocation1 [shape = 'u32[144,128]{1,0:T(1,128)}', space=vmem, size = 0x12000, scoped, tag = 'internal scratch']
  %s0 = inlined_call_operand.hbm [shape: f32[16,64], index: 0, kind: input, shape index: {}]
  %s1 = inlined_call_operand.hbm [shape: f32[64,1024], index: 1, kind: input, shape index: {}]
  %s2 = inlined_call_operand.hbm [shape: f32[512,1024], index: 2, kind: input, shape index: {}]
  %s3 = inlined_call_operand.hbm [shape: f32[2,512], index: 3, kind: input, shape index: {}]
  %s4 = inlined_call_operand.vmem [shape: f32[512,64], index: 4, kind: input, shape index: {}]
  %s5 = inlined_call_operand.hbm [shape: f32[3,64], index: 5, kind: input, shape index: {}]
  %s6 = inlined_call_operand.vmem [shape: f32[16,1], index: 6, kind: output, shape index: {}]
  %s7 = sld [smem:[#allocation0]]
  $region54: #{cnn_forward_packed.1} parent=0
    _
  %s9 = ssub.s32 1, %s7
  %s10 = scalar_select 0, %s9, %s7
  $region1: #{cnn_forward_packed.1} parent=0
    #allocation2 [shape = 'u8[8192]{0}', space=vmem, size = 0x2000, scoped, tag = 'input window, operand 0, single buffered']
    #allocation3 [shape = 's32[1]{0}', space=sflag, size = 0x4, scoped, tag = 'scoped memory for cnn_forward_packed.1']
    #allocation4 [shape = 'u8[262144]{0}', space=vmem, size = 0x40000, scoped, tag = 'input window, operand 1, single buffered']
    #allocation5 [shape = 's32[1]{0}', space=sflag, size = 0x4, scoped, tag = 'scoped memory for cnn_forward_packed.1']
    #allocation6 [shape = 'u8[2097152]{0}', space=vmem, size = 0x200000, scoped, tag = 'input window, operand 2, single buffered']
    #allocation7 [shape = 'u8[4096]{0}', space=vmem, size = 0x1000, scoped, tag = 'input window, operand 3, single buffered']
    #allocation8 [shape = 's32[1]{0}', space=sflag, size = 0x4, scoped, tag = 'scoped memory for cnn_forward_packed.1']
    #allocation9 [shape = 'u8[2048]{0}', space=vmem, size = 0x800, scoped, tag = 'input window, operand 5, single buffered']
    %11 = vsyncpa [#allocation3], 0
    %12 = vsyncpa [#allocation5], 0
    %13 = vsyncpa [#allocation8], 0
    // Predicated region
    $region2: #{cnn_forward_packed.1} parent=1 // pred_check
      _
    $region3: #{cnn_forward_packed.1} parent=1 // pred_check_branch
      %15 = sbr.rel (0) target = $region5
    $region4: #{cnn_forward_packed.1} parent=1 // pred_region
      %s17 = ssub.s32 256, 256
      %18 = vsyncadd [#allocation3], %s17
      %s19 = sshll.u32 [#allocation2], 4
      %s20 = int_to_ptr.vmem [resolvable:$true] %s19
      %25 = dma.hbm_to_vmem [thread:$0]  %s0, 256, %s20, [#allocation3], 128, 128, 8
    $region5: #{cnn_forward_packed.1} parent=1 // pred_fallthru
      _
    // Predicated region
    $region6: #{cnn_forward_packed.1} parent=1 // pred_check
      _
    $region7: #{cnn_forward_packed.1} parent=1 // pred_check_branch
      %27 = sbr.rel (0) target = $region9
    $region8: #{cnn_forward_packed.1} parent=1 // pred_region
      %s29 = ssub.s32 8192, 8192
      %30 = vsyncadd [#allocation5], %s29
      %s31 = sshll.u32 [#allocation4], 4
      %s32 = int_to_ptr.vmem [resolvable:$true] %s31
      %37 = dma.hbm_to_vmem [thread:$0]  %s1, 8192, %s32, [#allocation5], 1024, 1024, 64
    $region9: #{cnn_forward_packed.1} parent=1 // pred_fallthru
      _
    // Predicated region
    $region10: #{cnn_forward_packed.1} parent=1 // pred_check
      _
    $region11: #{cnn_forward_packed.1} parent=1 // pred_check_branch
      %39 = sbr.rel (0) target = $region13
    $region12: #{cnn_forward_packed.1} parent=1 // pred_region
      %s41 = ssub.s32 65536, 65536
      %42 = vsyncadd [#allocation5], %s41
      %s43 = sshll.u32 [#allocation6], 4
      %s44 = int_to_ptr.vmem [resolvable:$true] %s43
      %49 = dma.hbm_to_vmem [thread:$0]  %s2, 65536, %s44, [#allocation5], 1024, 1024, 64
    $region13: #{cnn_forward_packed.1} parent=1 // pred_fallthru
      _
    // Predicated region
    $region14: #{cnn_forward_packed.1} parent=1 // pred_check
      _
    $region15: #{cnn_forward_packed.1} parent=1 // pred_check_branch
      %51 = sbr.rel (0) target = $region17
    $region16: #{cnn_forward_packed.1} parent=1 // pred_region
      %s53 = ssub.s32 128, 128
      %54 = vsyncadd [#allocation8], %s53
      %s56 = sshll.u32 [#allocation7], 4
      %s57 = int_to_ptr.vmem [resolvable:$true] %s56
      %59 = dma.hbm_to_vmem [thread:$0]  %s3, 128, %s57, [#allocation8]
    $region17: #{cnn_forward_packed.1} parent=1 // pred_fallthru
      _
    // Predicated region
    $region18: #{cnn_forward_packed.1} parent=1 // pred_check
      _
    $region19: #{cnn_forward_packed.1} parent=1 // pred_check_branch
      %61 = sbr.rel (0) target = $region21
    $region20: #{cnn_forward_packed.1} parent=1 // pred_region
      _
    $region21: #{cnn_forward_packed.1} parent=1 // pred_fallthru
      _
    // Predicated region
    $region22: #{cnn_forward_packed.1} parent=1 // pred_check
      _
    $region23: #{cnn_forward_packed.1} parent=1 // pred_check_branch
      %63 = sbr.rel (0) target = $region25
    $region24: #{cnn_forward_packed.1} parent=1 // pred_region
      %s65 = ssub.s32 64, 64
      %66 = vsyncadd [#allocation8], %s65
      %s68 = sshll.u32 [#allocation9], 4
      %s69 = int_to_ptr.vmem [resolvable:$true] %s68
      %71 = dma.hbm_to_vmem [thread:$0]  %s5, 64, %s69, [#allocation8]
    $region25: #{cnn_forward_packed.1} parent=1 // pred_fallthru
      _
    // Predicated region
    $region26: #{cnn_forward_packed.1} parent=1 // pred_check
      _
    $region27: #{cnn_forward_packed.1} parent=1 // pred_check_branch
      %73 = sbr.rel (0) target = $region29
    $region28: #{cnn_forward_packed.1} parent=1 // pred_region
      %74 = dma.done [#allocation3], 256
    $region29: #{cnn_forward_packed.1} parent=1 // pred_fallthru
      _
    // Predicated region
    $region30: #{cnn_forward_packed.1} parent=1 // pred_check
      _
    $region31: #{cnn_forward_packed.1} parent=1 // pred_check_branch
      %76 = sbr.rel (0) target = $region33
    $region32: #{cnn_forward_packed.1} parent=1 // pred_region
      %77 = dma.done [#allocation5], 8192
    $region33: #{cnn_forward_packed.1} parent=1 // pred_fallthru
      _
    // Predicated region
    $region34: #{cnn_forward_packed.1} parent=1 // pred_check
      _
    $region35: #{cnn_forward_packed.1} parent=1 // pred_check_branch
      %79 = sbr.rel (0) target = $region37
    $region36: #{cnn_forward_packed.1} parent=1 // pred_region
      %80 = dma.done [#allocation5], 65536
    $region37: #{cnn_forward_packed.1} parent=1 // pred_fallthru
      _
    // Predicated region
    $region38: #{cnn_forward_packed.1} parent=1 // pred_check
      _
    $region39: #{cnn_forward_packed.1} parent=1 // pred_check_branch
      %82 = sbr.rel (0) target = $region41
    $region40: #{cnn_forward_packed.1} parent=1 // pred_region
      %83 = dma.done [#allocation8], 128
    $region41: #{cnn_forward_packed.1} parent=1 // pred_fallthru
      _
    // Predicated region
    $region42: #{cnn_forward_packed.1} parent=1 // pred_check
      _
    $region43: #{cnn_forward_packed.1} parent=1 // pred_check_branch
      %85 = sbr.rel (0) target = $region45
    $region44: #{cnn_forward_packed.1} parent=1 // pred_region
      %86 = dma.done [#allocation8], 64
    $region45: #{cnn_forward_packed.1} parent=1 // pred_fallthru
      _
    %v87 = vld [vmem:[#allocation2] sm:$0xff]
    %v88 = vld [vmem:[#allocation2 + $0x8] sm:$0xff]
    %v89 = vld [vmem:[#allocation7] sm:$0xff]
    %v90 = vld [vmem:[#allocation9] sm:$0x7]
    %v91 = vld [vmem:[#allocation4] sm:$0xff]
    %v92 = vld [vmem:[#allocation4 + $0x8] sm:$0xff]
    %v93 = vld [vmem:[#allocation4 + $0x10] sm:$0xff]
    %v94 = vld [vmem:[#allocation4 + $0x18] sm:$0xff]
    %v95 = vld [vmem:[#allocation4 + $0x20] sm:$0xff]
    %v96 = vld [vmem:[#allocation4 + $0x28] sm:$0xff]
    %v97 = vld [vmem:[#allocation4 + $0x30] sm:$0xff]
    %v98 = vld [vmem:[#allocation4 + $0x38] sm:$0xff]
    %v99 = vld [vmem:[#allocation4 + $0x40] sm:$0xff]
    %v100 = vld [vmem:[#allocation4 + $0x48] sm:$0xff]
    %v101 = vld [vmem:[#allocation4 + $0x50] sm:$0xff]
    %v102 = vld [vmem:[#allocation4 + $0x58] sm:$0xff]
    %v103 = vld [vmem:[#allocation4 + $0x60] sm:$0xff]
    %v104 = vld [vmem:[#allocation4 + $0x68] sm:$0xff]
    %v105 = vld [vmem:[#allocation4 + $0x70] sm:$0xff]
    %v106 = vld [vmem:[#allocation4 + $0x78] sm:$0xff]
    %v107 = vld [vmem:[#allocation4 + $0x80] sm:$0xff]
    %v108 = vld [vmem:[#allocation4 + $0x88] sm:$0xff]
    %v109 = vld [vmem:[#allocation4 + $0x90] sm:$0xff]
    %v110 = vld [vmem:[#allocation4 + $0x98] sm:$0xff]
    %v111 = vld [vmem:[#allocation4 + $0xa0] sm:$0xff]
    %v112 = vld [vmem:[#allocation4 + $0xa8] sm:$0xff]
    %v113 = vld [vmem:[#allocation4 + $0xb0] sm:$0xff]
    %v114 = vld [vmem:[#allocation4 + $0xb8] sm:$0xff]
    %v115 = vld [vmem:[#allocation4 + $0xc0] sm:$0xff]
    %v116 = vld [vmem:[#allocation4 + $0xc8] sm:$0xff]
    %v117 = vld [vmem:[#allocation4 + $0xd0] sm:$0xff]
    %v118 = vld [vmem:[#allocation4 + $0xd8] sm:$0xff]
    %v119 = vld [vmem:[#allocation4 + $0xe0] sm:$0xff]
    %v120 = vld [vmem:[#allocation4 + $0xe8] sm:$0xff]
    %v121 = vld [vmem:[#allocation4 + $0xf0] sm:$0xff]
    %v122 = vld [vmem:[#allocation4 + $0xf8] sm:$0xff]
    %v123 = vld [vmem:[#allocation4 + $0x100] sm:$0xff]
    %v124 = vld [vmem:[#allocation4 + $0x108] sm:$0xff]
    %v125 = vld [vmem:[#allocation4 + $0x110] sm:$0xff]
    %v126 = vld [vmem:[#allocation4 + $0x118] sm:$0xff]
    %v127 = vld [vmem:[#allocation4 + $0x120] sm:$0xff]
    %v128 = vld [vmem:[#allocation4 + $0x128] sm:$0xff]
    %v129 = vld [vmem:[#allocation4 + $0x130] sm:$0xff]
    %v130 = vld [vmem:[#allocation4 + $0x138] sm:$0xff]
    %v131 = vld [vmem:[#allocation4 + $0x140] sm:$0xff]
    %v132 = vld [vmem:[#allocation4 + $0x148] sm:$0xff]
    %v133 = vld [vmem:[#allocation4 + $0x150] sm:$0xff]
    %v134 = vld [vmem:[#allocation4 + $0x158] sm:$0xff]
    %v135 = vld [vmem:[#allocation4 + $0x160] sm:$0xff]
    %v136 = vld [vmem:[#allocation4 + $0x168] sm:$0xff]
    %v137 = vld [vmem:[#allocation4 + $0x170] sm:$0xff]
    %v138 = vld [vmem:[#allocation4 + $0x178] sm:$0xff]
    %v139 = vld [vmem:[#allocation4 + $0x180] sm:$0xff]
    %v140 = vld [vmem:[#allocation4 + $0x188] sm:$0xff]
    %v141 = vld [vmem:[#allocation4 + $0x190] sm:$0xff]
    %v142 = vld [vmem:[#allocation4 + $0x198] sm:$0xff]
    %v143 = vld [vmem:[#allocation4 + $0x1a0] sm:$0xff]
    %v144 = vld [vmem:[#allocation4 + $0x1a8] sm:$0xff]
    %v145 = vld [vmem:[#allocation4 + $0x1b0] sm:$0xff]
    %v146 = vld [vmem:[#allocation4 + $0x1b8] sm:$0xff]
    %v147 = vld [vmem:[#allocation4 + $0x1c0] sm:$0xff]
    %v148 = vld [vmem:[#allocation4 + $0x1c8] sm:$0xff]
    %v149 = vld [vmem:[#allocation4 + $0x1d0] sm:$0xff]
    %v150 = vld [vmem:[#allocation4 + $0x1d8] sm:$0xff]
    %v151 = vld [vmem:[#allocation4 + $0x1e0] sm:$0xff]
    %v152 = vld [vmem:[#allocation4 + $0x1e8] sm:$0xff]
    %v153 = vld [vmem:[#allocation4 + $0x1f0] sm:$0xff]
    %v154 = vld [vmem:[#allocation4 + $0x1f8] sm:$0xff]
    %vm155 = vcmask 523264
    %v157 = vsel %vm155, %v87, 0
    %v160 = vsel %vm155, %v88, 0
    %162 = vmatprep.subr.mxu0 %v92
    %163 = vmatpush1.msra.mxu0 %v91
    %164 = vmatprep.subr.mxu0 %v100
    %165 = vmatpush1.msra.mxu0 %v99
    %166 = vmatprep.subr.mxu0 %v108
    %167 = vmatpush1.msra.mxu0 %v107
    %168 = vmatprep.subr.mxu0 %v116
    %169 = vmatpush1.msra.mxu0 %v115
    %170 = vmatprep.subr.mxu0 %v124
    %171 = vmatpush1.msra.mxu0 %v123
    %172 = vmatprep.subr.mxu0 %v132
    %173 = vmatpush1.msra.mxu0 %v131
    %174 = vmatprep.subr.mxu0 %v140
    %175 = vmatpush1.msra.mxu0 %v139
    %176 = vmatprep.subr.mxu0 %v148
    %177 = vmatpush1.msra.mxu0 %v147
    %178 = vmatprep.subr.mxu0 0.0
    %179 = vmatpush1.msra.mxu0 0.0
    %180 = vmatprep.subr.mxu0 0.0
    %181 = vmatpush1.msra.mxu0 0.0
    %182 = vmatprep.subr.mxu0 0.0
    %183 = vmatpush1.msra.mxu0 0.0
    %184 = vmatprep.subr.mxu0 0.0
    %185 = vmatpush1.msra.mxu0 0.0
    %186 = vmatprep.subr.mxu0 0.0
    %187 = vmatpush1.msra.mxu0 0.0
    %188 = vmatprep.subr.mxu0 0.0
    %189 = vmatpush1.msra.mxu0 0.0
    %190 = vmatprep.subr.mxu0 0.0
    %191 = vmatpush1.msra.mxu0 0.0
    %192 = vmatprep.subr.mxu0 0.0
    %193 = vmatpush1.msra.mxu0 0.0
    %194 = vmatprep.subr.mxu0 0.0
    %195 = vmatpush1.msra.mxu0 0.0
    %196 = vmatprep.subr.mxu0 0.0
    %197 = vmatpush1.msra.mxu0 0.0
    %198 = vmatprep.subr.mxu0 0.0
    %199 = vmatpush1.msra.mxu0 0.0
    %200 = vmatprep.subr.mxu0 0.0
    %201 = vmatpush1.msra.mxu0 0.0
    %202 = vmatprep.subr.mxu0 0.0
    %203 = vmatpush1.msra.mxu0 0.0
    %204 = vmatprep.subr.mxu0 0.0
    %205 = vmatpush1.msra.mxu0 0.0
    %206 = vmatprep.subr.mxu0 0.0
    %207 = vmatpush1.msra.mxu0 0.0
    %208 = vmatprep.subr.mxu0 0.0
    %209 = vmatpush1.msra.mxu0 0.0
    %210 = vmatprep.subr.mxu0 0.0
    %211 = vmatpush1.msra.mxu0 0.0
    %212 = vmatprep.subr.mxu0 0.0
    %213 = vmatpush1.msra.mxu0 0.0
    %214 = vmatprep.subr.mxu0 0.0
    %215 = vmatpush1.msra.mxu0 0.0
    %216 = vmatprep.subr.mxu0 0.0
    %217 = vmatpush1.msra.mxu0 0.0
    %218 = vmatprep.subr.mxu0 0.0
    %219 = vmatpush1.msra.mxu0 0.0
    %220 = vmatprep.subr.mxu0 0.0
    %221 = vmatpush1.msra.mxu0 0.0
    %222 = vmatprep.subr.mxu0 0.0
    %223 = vmatpush1.msra.mxu0 0.0
    %224 = vmatprep.subr.mxu0 0.0
    %225 = vmatpush1.msra.mxu0 0.0
    %226 = vmatprep.mubr.f32.mxu0 0.0
    %227 = vmatmul.mubr.f32.gmra.mrb[0].mxu0 %v157
    %v228 = vpop.f32.mrb[0].mxu0
    %v229 = vadd.f32 0.0, %v228
    %v230 = vpop.f32.mrb[0].mxu0
    %v231 = vadd.f32 0.0, %v230
    %232 = vmatprep.mubr.f32.mxu0 0.0
    %233 = vmatmul.mubr.f32.gmra.mrb[0].mxu0 %v160
    %v234 = vpop.f32.mrb[0].mxu0
    %v235 = vadd.f32 0.0, %v234
    %v236 = vpop.f32.mrb[0].mxu0
    %v237 = vadd.f32 0.0, %v236
    %238 = vdwg.mxu0
    %239 = vmatprep.subr.mxu0 %v94
    %240 = vmatpush1.msra.mxu0 %v93
    %241 = vmatprep.subr.mxu0 %v102
    %242 = vmatpush1.msra.mxu0 %v101
    %243 = vmatprep.subr.mxu0 %v110
    %244 = vmatpush1.msra.mxu0 %v109
    %245 = vmatprep.subr.mxu0 %v118
    %246 = vmatpush1.msra.mxu0 %v117
    %247 = vmatprep.subr.mxu0 %v126
    %248 = vmatpush1.msra.mxu0 %v125
    %249 = vmatprep.subr.mxu0 %v134
    %250 = vmatpush1.msra.mxu0 %v133
    %251 = vmatprep.subr.mxu0 %v142
    %252 = vmatpush1.msra.mxu0 %v141
    %253 = vmatprep.subr.mxu0 %v150
    %254 = vmatpush1.msra.mxu0 %v149
    %255 = vmatprep.subr.mxu0 0.0
    %256 = vmatpush1.msra.mxu0 0.0
    %257 = vmatprep.subr.mxu0 0.0
    %258 = vmatpush1.msra.mxu0 0.0
    %259 = vmatprep.subr.mxu0 0.0
    %260 = vmatpush1.msra.mxu0 0.0
    %261 = vmatprep.subr.mxu0 0.0
    %262 = vmatpush1.msra.mxu0 0.0
    %263 = vmatprep.subr.mxu0 0.0
    %264 = vmatpush1.msra.mxu0 0.0
    %265 = vmatprep.subr.mxu0 0.0
    %266 = vmatpush1.msra.mxu0 0.0
    %267 = vmatprep.subr.mxu0 0.0
    %268 = vmatpush1.msra.mxu0 0.0
    %269 = vmatprep.subr.mxu0 0.0
    %270 = vmatpush1.msra.mxu0 0.0
    %271 = vmatprep.subr.mxu0 0.0
    %272 = vmatpush1.msra.mxu0 0.0
    %273 = vmatprep.subr.mxu0 0.0
    %274 = vmatpush1.msra.mxu0 0.0
    %275 = vmatprep.subr.mxu0 0.0
    %276 = vmatpush1.msra.mxu0 0.0
    %277 = vmatprep.subr.mxu0 0.0
    %278 = vmatpush1.msra.mxu0 0.0
    %279 = vmatprep.subr.mxu0 0.0
    %280 = vmatpush1.msra.mxu0 0.0
    %281 = vmatprep.subr.mxu0 0.0
    %282 = vmatpush1.msra.mxu0 0.0
    %283 = vmatprep.subr.mxu0 0.0
    %284 = vmatpush1.msra.mxu0 0.0
    %285 = vmatprep.subr.mxu0 0.0
    %286 = vmatpush1.msra.mxu0 0.0
    %287 = vmatprep.subr.mxu0 0.0
    %288 = vmatpush1.msra.mxu0 0.0
    %289 = vmatprep.subr.mxu0 0.0
    %290 = vmatpush1.msra.mxu0 0.0
    %291 = vmatprep.subr.mxu0 0.0
    %292 = vmatpush1.msra.mxu0 0.0
    %293 = vmatprep.subr.mxu0 0.0
    %294 = vmatpush1.msra.mxu0 0.0
    %295 = vmatprep.subr.mxu0 0.0
    %296 = vmatpush1.msra.mxu0 0.0
    %297 = vmatprep.subr.mxu0 0.0
    %298 = vmatpush1.msra.mxu0 0.0
    %299 = vmatprep.subr.mxu0 0.0
    %300 = vmatpush1.msra.mxu0 0.0
    %301 = vmatprep.subr.mxu0 0.0
    %302 = vmatpush1.msra.mxu0 0.0
    %303 = vmatprep.mubr.f32.mxu0 0.0
    %304 = vmatmul.mubr.f32.gmra.mrb[0].mxu0 %v157
    %v305 = vpop.f32.mrb[0].mxu0
    %v306 = vadd.f32 0.0, %v305
    %v307 = vpop.f32.mrb[0].mxu0
    %v308 = vadd.f32 0.0, %v307
    %309 = vmatprep.mubr.f32.mxu0 0.0
    %310 = vmatmul.mubr.f32.gmra.mrb[0].mxu0 %v160
    %v311 = vpop.f32.mrb[0].mxu0
    %v312 = vadd.f32 0.0, %v311
    %v313 = vpop.f32.mrb[0].mxu0
    %v314 = vadd.f32 0.0, %v313
    %315 = vdwg.mxu0
    %316 = vmatprep.subr.mxu0 %v96
    %317 = vmatpush1.msra.mxu0 %v95
    %318 = vmatprep.subr.mxu0 %v104
    %319 = vmatpush1.msra.mxu0 %v103
    %320 = vmatprep.subr.mxu0 %v112
    %321 = vmatpush1.msra.mxu0 %v111
    %322 = vmatprep.subr.mxu0 %v120
    %323 = vmatpush1.msra.mxu0 %v119
    %324 = vmatprep.subr.mxu0 %v128
    %325 = vmatpush1.msra.mxu0 %v127
    %326 = vmatprep.subr.mxu0 %v136
    %327 = vmatpush1.msra.mxu0 %v135
    %328 = vmatprep.subr.mxu0 %v144
    %329 = vmatpush1.msra.mxu0 %v143
    %330 = vmatprep.subr.mxu0 %v152
    %331 = vmatpush1.msra.mxu0 %v151
    %332 = vmatprep.subr.mxu0 0.0
    %333 = vmatpush1.msra.mxu0 0.0
    %334 = vmatprep.subr.mxu0 0.0
    %335 = vmatpush1.msra.mxu0 0.0
    %336 = vmatprep.subr.mxu0 0.0
    %337 = vmatpush1.msra.mxu0 0.0
    %338 = vmatprep.subr.mxu0 0.0
    %339 = vmatpush1.msra.mxu0 0.0
    %340 = vmatprep.subr.mxu0 0.0
    %341 = vmatpush1.msra.mxu0 0.0
    %342 = vmatprep.subr.mxu0 0.0
    %343 = vmatpush1.msra.mxu0 0.0
    %344 = vmatprep.subr.mxu0 0.0
    %345 = vmatpush1.msra.mxu0 0.0
    %346 = vmatprep.subr.mxu0 0.0
    %347 = vmatpush1.msra.mxu0 0.0
    %348 = vmatprep.subr.mxu0 0.0
    %349 = vmatpush1.msra.mxu0 0.0
    %350 = vmatprep.subr.mxu0 0.0
    %351 = vmatpush1.msra.mxu0 0.0
    %352 = vmatprep.subr.mxu0 0.0
    %353 = vmatpush1.msra.mxu0 0.0
    %354 = vmatprep.subr.mxu0 0.0
    %355 = vmatpush1.msra.mxu0 0.0
    %356 = vmatprep.subr.mxu0 0.0
    %357 = vmatpush1.msra.mxu0 0.0
    %358 = vmatprep.subr.mxu0 0.0
    %359 = vmatpush1.msra.mxu0 0.0
    %360 = vmatprep.subr.mxu0 0.0
    %361 = vmatpush1.msra.mxu0 0.0
    %362 = vmatprep.subr.mxu0 0.0
    %363 = vmatpush1.msra.mxu0 0.0
    %364 = vmatprep.subr.mxu0 0.0
    %365 = vmatpush1.msra.mxu0 0.0
    %366 = vmatprep.subr.mxu0 0.0
    %367 = vmatpush1.msra.mxu0 0.0
    %368 = vmatprep.subr.mxu0 0.0
    %369 = vmatpush1.msra.mxu0 0.0
    %370 = vmatprep.subr.mxu0 0.0
    %371 = vmatpush1.msra.mxu0 0.0
    %372 = vmatprep.subr.mxu0 0.0
    %373 = vmatpush1.msra.mxu0 0.0
    %374 = vmatprep.subr.mxu0 0.0
    %375 = vmatpush1.msra.mxu0 0.0
    %376 = vmatprep.subr.mxu0 0.0
    %377 = vmatpush1.msra.mxu0 0.0
    %378 = vmatprep.subr.mxu0 0.0
    %379 = vmatpush1.msra.mxu0 0.0
    %380 = vmatprep.mubr.f32.mxu0 0.0
    %381 = vmatmul.mubr.f32.gmra.mrb[0].mxu0 %v157
    %v382 = vpop.f32.mrb[0].mxu0
    %v383 = vadd.f32 0.0, %v382
    %v384 = vpop.f32.mrb[0].mxu0
    %v385 = vadd.f32 0.0, %v384
    %386 = vmatprep.mubr.f32.mxu0 0.0
    %387 = vmatmul.mubr.f32.gmra.mrb[0].mxu0 %v160
    %v388 = vpop.f32.mrb[0].mxu0
    %v389 = vadd.f32 0.0, %v388
    %v390 = vpop.f32.mrb[0].mxu0
    %v391 = vadd.f32 0.0, %v390
    %392 = vdwg.mxu0
    %393 = vmatprep.subr.mxu0 %v98
    %394 = vmatpush1.msra.mxu0 %v97
    %395 = vmatprep.subr.mxu0 %v106
    %396 = vmatpush1.msra.mxu0 %v105
    %397 = vmatprep.subr.mxu0 %v114
    %398 = vmatpush1.msra.mxu0 %v113
    %399 = vmatprep.subr.mxu0 %v122
    %400 = vmatpush1.msra.mxu0 %v121
    %401 = vmatprep.subr.mxu0 %v130
    %402 = vmatpush1.msra.mxu0 %v129
    %403 = vmatprep.subr.mxu0 %v138
    %404 = vmatpush1.msra.mxu0 %v137
    %405 = vmatprep.subr.mxu0 %v146
    %406 = vmatpush1.msra.mxu0 %v145
    %407 = vmatprep.subr.mxu0 %v154
    %408 = vmatpush1.msra.mxu0 %v153
    %409 = vmatprep.subr.mxu0 0.0
    %410 = vmatpush1.msra.mxu0 0.0
    %411 = vmatprep.subr.mxu0 0.0
    %412 = vmatpush1.msra.mxu0 0.0
    %413 = vmatprep.subr.mxu0 0.0
    %414 = vmatpush1.msra.mxu0 0.0
    %415 = vmatprep.subr.mxu0 0.0
    %416 = vmatpush1.msra.mxu0 0.0
    %417 = vmatprep.subr.mxu0 0.0
    %418 = vmatpush1.msra.mxu0 0.0
    %419 = vmatprep.subr.mxu0 0.0
    %420 = vmatpush1.msra.mxu0 0.0
    %421 = vmatprep.subr.mxu0 0.0
    %422 = vmatpush1.msra.mxu0 0.0
    %423 = vmatprep.subr.mxu0 0.0
    %424 = vmatpush1.msra.mxu0 0.0
    %425 = vmatprep.subr.mxu0 0.0
    %426 = vmatpush1.msra.mxu0 0.0
    %427 = vmatprep.subr.mxu0 0.0
    %428 = vmatpush1.msra.mxu0 0.0
    %429 = vmatprep.subr.mxu0 0.0
    %430 = vmatpush1.msra.mxu0 0.0
    %431 = vmatprep.subr.mxu0 0.0
    %432 = vmatpush1.msra.mxu0 0.0
    %433 = vmatprep.subr.mxu0 0.0
    %434 = vmatpush1.msra.mxu0 0.0
    %435 = vmatprep.subr.mxu0 0.0
    %436 = vmatpush1.msra.mxu0 0.0
    %437 = vmatprep.subr.mxu0 0.0
    %438 = vmatpush1.msra.mxu0 0.0
    %439 = vmatprep.subr.mxu0 0.0
    %440 = vmatpush1.msra.mxu0 0.0
    %441 = vmatprep.subr.mxu0 0.0
    %442 = vmatpush1.msra.mxu0 0.0
    %443 = vmatprep.subr.mxu0 0.0
    %444 = vmatpush1.msra.mxu0 0.0
    %445 = vmatprep.subr.mxu0 0.0
    %446 = vmatpush1.msra.mxu0 0.0
    %447 = vmatprep.subr.mxu0 0.0
    %448 = vmatpush1.msra.mxu0 0.0
    %449 = vmatprep.subr.mxu0 0.0
    %450 = vmatpush1.msra.mxu0 0.0
    %451 = vmatprep.subr.mxu0 0.0
    %452 = vmatpush1.msra.mxu0 0.0
    %453 = vmatprep.subr.mxu0 0.0
    %454 = vmatpush1.msra.mxu0 0.0
    %455 = vmatprep.subr.mxu0 0.0
    %456 = vmatpush1.msra.mxu0 0.0
    %457 = vmatprep.mubr.f32.mxu0 0.0
    %458 = vmatmul.mubr.f32.gmra.mrb[0].mxu0 %v157
    %v459 = vpop.f32.mrb[0].mxu0
    %v460 = vadd.f32 0.0, %v459
    %v461 = vpop.f32.mrb[0].mxu0
    %v462 = vadd.f32 0.0, %v461
    %463 = vmatprep.mubr.f32.mxu0 0.0
    %464 = vmatmul.mubr.f32.gmra.mrb[0].mxu0 %v160
    %v465 = vpop.f32.mrb[0].mxu0
    %v466 = vadd.f32 0.0, %v465
    %v467 = vpop.f32.mrb[0].mxu0
    %v468 = vadd.f32 0.0, %v467
    %469 = vdwg.mxu0
    %v470 = vmax.f32 %v229, %v383
    %v471 = vmax.f32 %v231, %v385
    %v472 = vmax.f32 %v306, %v460
    %v473 = vmax.f32 %v308, %v462
    %v474 = vmax.f32 %v235, %v389
    %v475 = vmax.f32 %v237, %v391
    %v476 = vmax.f32 %v312, %v466
    %v477 = vmax.f32 %v314, %v468
    %v479 = vlaneseq
    %v480 = vshrl.u32 %v479, 7
    %v481 = vsub.s32 0, %v480
    %v482 = vrot.slane %v89, %v481
    %v483 = vlaneseq
    %v484 = vshrl.u32 %v483, 7
    %v485 = vsub.s32 2, %v484
    %v486 = vrot.slane %v89, %v485
    %v487 = vlaneseq
    %v488 = vshrl.u32 %v487, 7
    %v489 = vsub.s32 4, %v488
    %v490 = vrot.slane %v89, %v489
    %v491 = vlaneseq
    %v492 = vshrl.u32 %v491, 7
    %v493 = vsub.s32 6, %v492
    %v494 = vrot.slane %v89, %v493
    %v499 = vlaneseq
    %v500 = vshrl.u32 %v499, 7
    %v501 = vsub.s32 0, %v500
    %v502 = vrot.slane %v482, %v501
    %v503 = vlaneseq
    %v504 = vshrl.u32 %v503, 7
    %v505 = vsub.s32 0, %v504
    %v506 = vrot.slane %v486, %v505
    %v507 = vlaneseq
    %v508 = vshrl.u32 %v507, 7
    %v509 = vsub.s32 0, %v508
    %v510 = vrot.slane %v490, %v509
    %v511 = vlaneseq
    %v512 = vshrl.u32 %v511, 7
    %v513 = vsub.s32 0, %v512
    %v514 = vrot.slane %v494, %v513
    %v515 = vadd.f32 %v470, %v502
    %v516 = vadd.f32 %v471, %v506
    %v517 = vadd.f32 %v472, %v510
    %v518 = vadd.f32 %v473, %v514
    %v519 = vadd.f32 %v474, %v502
    %v520 = vadd.f32 %v475, %v506
    %v521 = vadd.f32 %v476, %v510
    %v522 = vadd.f32 %v477, %v514
    %v523 = vmax.f32 %v515, 0.0
    %v524 = vmax.f32 %v516, 0.0
    %v525 = vmax.f32 %v517, 0.0
    %v526 = vmax.f32 %v518, 0.0
    %v527 = vmax.f32 %v519, 0.0
    %v528 = vmax.f32 %v520, 0.0
    %v529 = vmax.f32 %v521, 0.0
    %v530 = vmax.f32 %v522, 0.0
    %v531 = vld [vmem:[#allocation6] sm:$0xff]
    %v532 = vld [vmem:[#allocation6 + $0x8] sm:$0xff]
    %v533 = vld [vmem:[#allocation6 + $0x10] sm:$0xff]
    %v534 = vld [vmem:[#allocation6 + $0x18] sm:$0xff]
    %v535 = vld [vmem:[#allocation6 + $0x20] sm:$0xff]
    %v536 = vld [vmem:[#allocation6 + $0x28] sm:$0xff]
    %v537 = vld [vmem:[#allocation6 + $0x30] sm:$0xff]
    %v538 = vld [vmem:[#allocation6 + $0x38] sm:$0xff]
    %v539 = vld [vmem:[#allocation6 + $0x40] sm:$0xff]
    %v540 = vld [vmem:[#allocation6 + $0x48] sm:$0xff]
    %v541 = vld [vmem:[#allocation6 + $0x50] sm:$0xff]
    %v542 = vld [vmem:[#allocation6 + $0x58] sm:$0xff]
    %v543 = vld [vmem:[#allocation6 + $0x60] sm:$0xff]
    %v544 = vld [vmem:[#allocation6 + $0x68] sm:$0xff]
    %v545 = vld [vmem:[#allocation6 + $0x70] sm:$0xff]
    %v546 = vld [vmem:[#allocation6 + $0x78] sm:$0xff]
    %v547 = vld [vmem:[#allocation6 + $0x80] sm:$0xff]
    %v548 = vld [vmem:[#allocation6 + $0x88] sm:$0xff]
    %v549 = vld [vmem:[#allocation6 + $0x90] sm:$0xff]
    %v550 = vld [vmem:[#allocation6 + $0x98] sm:$0xff]
    %v551 = vld [vmem:[#allocation6 + $0xa0] sm:$0xff]
    %v552 = vld [vmem:[#allocation6 + $0xa8] sm:$0xff]
    %v553 = vld [vmem:[#allocation6 + $0xb0] sm:$0xff]
    %v554 = vld [vmem:[#allocation6 + $0xb8] sm:$0xff]
    %v555 = vld [vmem:[#allocation6 + $0xc0] sm:$0xff]
    %v556 = vld [vmem:[#allocation6 + $0xc8] sm:$0xff]
    %v557 = vld [vmem:[#allocation6 + $0xd0] sm:$0xff]
    %v558 = vld [vmem:[#allocation6 + $0xd8] sm:$0xff]
    %v559 = vld [vmem:[#allocation6 + $0xe0] sm:$0xff]
    %v560 = vld [vmem:[#allocation6 + $0xe8] sm:$0xff]
    %v561 = vld [vmem:[#allocation6 + $0xf0] sm:$0xff]
    %v562 = vld [vmem:[#allocation6 + $0xf8] sm:$0xff]
    %v563 = vld [vmem:[#allocation6 + $0x100] sm:$0xff]
    %v564 = vld [vmem:[#allocation6 + $0x108] sm:$0xff]
    %v565 = vld [vmem:[#allocation6 + $0x110] sm:$0xff]
    %v566 = vld [vmem:[#allocation6 + $0x118] sm:$0xff]
    %v567 = vld [vmem:[#allocation6 + $0x120] sm:$0xff]
    %v568 = vld [vmem:[#allocation6 + $0x128] sm:$0xff]
    %v569 = vld [vmem:[#allocation6 + $0x130] sm:$0xff]
    %v570 = vld [vmem:[#allocation6 + $0x138] sm:$0xff]
    %v571 = vld [vmem:[#allocation6 + $0x140] sm:$0xff]
    %v572 = vld [vmem:[#allocation6 + $0x148] sm:$0xff]
    %v573 = vld [vmem:[#allocation6 + $0x150] sm:$0xff]
    %v574 = vld [vmem:[#allocation6 + $0x158] sm:$0xff]
    %v575 = vld [vmem:[#allocation6 + $0x160] sm:$0xff]
    %v576 = vld [vmem:[#allocation6 + $0x168] sm:$0xff]
    %v577 = vld [vmem:[#allocation6 + $0x170] sm:$0xff]
    %v578 = vld [vmem:[#allocation6 + $0x178] sm:$0xff]
    %v579 = vld [vmem:[#allocation6 + $0x180] sm:$0xff]
    %v580 = vld [vmem:[#allocation6 + $0x188] sm:$0xff]
    %v581 = vld [vmem:[#allocation6 + $0x190] sm:$0xff]
    %v582 = vld [vmem:[#allocation6 + $0x198] sm:$0xff]
    %v583 = vld [vmem:[#allocation6 + $0x1a0] sm:$0xff]
    %v584 = vld [vmem:[#allocation6 + $0x1a8] sm:$0xff]
    %v585 = vld [vmem:[#allocation6 + $0x1b0] sm:$0xff]
    %v586 = vld [vmem:[#allocation6 + $0x1b8] sm:$0xff]
    %v587 = vld [vmem:[#allocation6 + $0x1c0] sm:$0xff]
    %v588 = vld [vmem:[#allocation6 + $0x1c8] sm:$0xff]
    %v589 = vld [vmem:[#allocation6 + $0x1d0] sm:$0xff]
    %v590 = vld [vmem:[#allocation6 + $0x1d8] sm:$0xff]
    %v591 = vld [vmem:[#allocation6 + $0x1e0] sm:$0xff]
    %v592 = vld [vmem:[#allocation6 + $0x1e8] sm:$0xff]
    %v593 = vld [vmem:[#allocation6 + $0x1f0] sm:$0xff]
    %v594 = vld [vmem:[#allocation6 + $0x1f8] sm:$0xff]
    %v595 = vld [vmem:[#allocation6 + $0x200] sm:$0xff]
    %v596 = vld [vmem:[#allocation6 + $0x208] sm:$0xff]
    %v597 = vld [vmem:[#allocation6 + $0x210] sm:$0xff]
    %v598 = vld [vmem:[#allocation6 + $0x218] sm:$0xff]
    %v599 = vld [vmem:[#allocation6 + $0x220] sm:$0xff]
    %v600 = vld [vmem:[#allocation6 + $0x228] sm:$0xff]
    %v601 = vld [vmem:[#allocation6 + $0x230] sm:$0xff]
    %v602 = vld [vmem:[#allocation6 + $0x238] sm:$0xff]
    %v603 = vld [vmem:[#allocation6 + $0x240] sm:$0xff]
    %v604 = vld [vmem:[#allocation6 + $0x248] sm:$0xff]
    %v605 = vld [vmem:[#allocation6 + $0x250] sm:$0xff]
    %v606 = vld [vmem:[#allocation6 + $0x258] sm:$0xff]
    %v607 = vld [vmem:[#allocation6 + $0x260] sm:$0xff]
    %v608 = vld [vmem:[#allocation6 + $0x268] sm:$0xff]
    %v609 = vld [vmem:[#allocation6 + $0x270] sm:$0xff]
    %v610 = vld [vmem:[#allocation6 + $0x278] sm:$0xff]
    %v611 = vld [vmem:[#allocation6 + $0x280] sm:$0xff]
    %v612 = vld [vmem:[#allocation6 + $0x288] sm:$0xff]
    %v613 = vld [vmem:[#allocation6 + $0x290] sm:$0xff]
    %v614 = vld [vmem:[#allocation6 + $0x298] sm:$0xff]
    %v615 = vld [vmem:[#allocation6 + $0x2a0] sm:$0xff]
    %v616 = vld [vmem:[#allocation6 + $0x2a8] sm:$0xff]
    %v617 = vld [vmem:[#allocation6 + $0x2b0] sm:$0xff]
    %v618 = vld [vmem:[#allocation6 + $0x2b8] sm:$0xff]
    %v619 = vld [vmem:[#allocation6 + $0x2c0] sm:$0xff]
    %v620 = vld [vmem:[#allocation6 + $0x2c8] sm:$0xff]
    %v621 = vld [vmem:[#allocation6 + $0x2d0] sm:$0xff]
    %v622 = vld [vmem:[#allocation6 + $0x2d8] sm:$0xff]
    %v623 = vld [vmem:[#allocation6 + $0x2e0] sm:$0xff]
    %v624 = vld [vmem:[#allocation6 + $0x2e8] sm:$0xff]
    %v625 = vld [vmem:[#allocation6 + $0x2f0] sm:$0xff]
    %v626 = vld [vmem:[#allocation6 + $0x2f8] sm:$0xff]
    %v627 = vld [vmem:[#allocation6 + $0x300] sm:$0xff]
    %v628 = vld [vmem:[#allocation6 + $0x308] sm:$0xff]
    %v629 = vld [vmem:[#allocation6 + $0x310] sm:$0xff]
    %v630 = vld [vmem:[#allocation6 + $0x318] sm:$0xff]
    %v631 = vld [vmem:[#allocation6 + $0x320] sm:$0xff]
    %v632 = vld [vmem:[#allocation6 + $0x328] sm:$0xff]
    %v633 = vld [vmem:[#allocation6 + $0x330] sm:$0xff]
    %v634 = vld [vmem:[#allocation6 + $0x338] sm:$0xff]
    %v635 = vld [vmem:[#allocation6 + $0x340] sm:$0xff]
    %v636 = vld [vmem:[#allocation6 + $0x348] sm:$0xff]
    %v637 = vld [vmem:[#allocation6 + $0x350] sm:$0xff]
    %v638 = vld [vmem:[#allocation6 + $0x358] sm:$0xff]
    %v639 = vld [vmem:[#allocation6 + $0x360] sm:$0xff]
    %v640 = vld [vmem:[#allocation6 + $0x368] sm:$0xff]
    %v641 = vld [vmem:[#allocation6 + $0x370] sm:$0xff]
    %v642 = vld [vmem:[#allocation6 + $0x378] sm:$0xff]
    %v643 = vld [vmem:[#allocation6 + $0x380] sm:$0xff]
    %v644 = vld [vmem:[#allocation6 + $0x388] sm:$0xff]
    %v645 = vld [vmem:[#allocation6 + $0x390] sm:$0xff]
    %v646 = vld [vmem:[#allocation6 + $0x398] sm:$0xff]
    %v647 = vld [vmem:[#allocation6 + $0x3a0] sm:$0xff]
    %v648 = vld [vmem:[#allocation6 + $0x3a8] sm:$0xff]
    %v649 = vld [vmem:[#allocation6 + $0x3b0] sm:$0xff]
    %v650 = vld [vmem:[#allocation6 + $0x3b8] sm:$0xff]
    %v651 = vld [vmem:[#allocation6 + $0x3c0] sm:$0xff]
    %v652 = vld [vmem:[#allocation6 + $0x3c8] sm:$0xff]
    %v653 = vld [vmem:[#allocation6 + $0x3d0] sm:$0xff]
    %v654 = vld [vmem:[#allocation6 + $0x3d8] sm:$0xff]
    %v655 = vld [vmem:[#allocation6 + $0x3e0] sm:$0xff]
    %v656 = vld [vmem:[#allocation6 + $0x3e8] sm:$0xff]
    %v657 = vld [vmem:[#allocation6 + $0x3f0] sm:$0xff]
    %v658 = vld [vmem:[#allocation6 + $0x3f8] sm:$0xff]
    %v659 = vld [vmem:[#allocation6 + $0x400] sm:$0xff]
    %v660 = vld [vmem:[#allocation6 + $0x408] sm:$0xff]
    %v661 = vld [vmem:[#allocation6 + $0x410] sm:$0xff]
    %v662 = vld [vmem:[#allocation6 + $0x418] sm:$0xff]
    %v663 = vld [vmem:[#allocation6 + $0x420] sm:$0xff]
    %v664 = vld [vmem:[#allocation6 + $0x428] sm:$0xff]
    %v665 = vld [vmem:[#allocation6 + $0x430] sm:$0xff]
    %v666 = vld [vmem:[#allocation6 + $0x438] sm:$0xff]
    %v667 = vld [vmem:[#allocation6 + $0x440] sm:$0xff]
    %v668 = vld [vmem:[#allocation6 + $0x448] sm:$0xff]
    %v669 = vld [vmem:[#allocation6 + $0x450] sm:$0xff]
    %v670 = vld [vmem:[#allocation6 + $0x458] sm:$0xff]
    %v671 = vld [vmem:[#allocation6 + $0x460] sm:$0xff]
    %v672 = vld [vmem:[#allocation6 + $0x468] sm:$0xff]
    %v673 = vld [vmem:[#allocation6 + $0x470] sm:$0xff]
    %v674 = vld [vmem:[#allocation6 + $0x478] sm:$0xff]
    %v675 = vld [vmem:[#allocation6 + $0x480] sm:$0xff]
    %v676 = vld [vmem:[#allocation6 + $0x488] sm:$0xff]
    %v677 = vld [vmem:[#allocation6 + $0x490] sm:$0xff]
    %v678 = vld [vmem:[#allocation6 + $0x498] sm:$0xff]
    %v679 = vld [vmem:[#allocation6 + $0x4a0] sm:$0xff]
    %v680 = vld [vmem:[#allocation6 + $0x4a8] sm:$0xff]
    %v681 = vld [vmem:[#allocation6 + $0x4b0] sm:$0xff]
    %v682 = vld [vmem:[#allocation6 + $0x4b8] sm:$0xff]
    %v683 = vld [vmem:[#allocation6 + $0x4c0] sm:$0xff]
    %v684 = vld [vmem:[#allocation6 + $0x4c8] sm:$0xff]
    %v685 = vld [vmem:[#allocation6 + $0x4d0] sm:$0xff]
    %v686 = vld [vmem:[#allocation6 + $0x4d8] sm:$0xff]
    %v687 = vld [vmem:[#allocation6 + $0x4e0] sm:$0xff]
    %v688 = vld [vmem:[#allocation6 + $0x4e8] sm:$0xff]
    %v689 = vld [vmem:[#allocation6 + $0x4f0] sm:$0xff]
    %v690 = vld [vmem:[#allocation6 + $0x4f8] sm:$0xff]
    %v691 = vld [vmem:[#allocation6 + $0x500] sm:$0xff]
    %v692 = vld [vmem:[#allocation6 + $0x508] sm:$0xff]
    %v693 = vld [vmem:[#allocation6 + $0x510] sm:$0xff]
    %v694 = vld [vmem:[#allocation6 + $0x518] sm:$0xff]
    %v695 = vld [vmem:[#allocation6 + $0x520] sm:$0xff]
    %v696 = vld [vmem:[#allocation6 + $0x528] sm:$0xff]
    %v697 = vld [vmem:[#allocation6 + $0x530] sm:$0xff]
    %v698 = vld [vmem:[#allocation6 + $0x538] sm:$0xff]
    %v699 = vld [vmem:[#allocation6 + $0x540] sm:$0xff]
    %v700 = vld [vmem:[#allocation6 + $0x548] sm:$0xff]
    %v701 = vld [vmem:[#allocation6 + $0x550] sm:$0xff]
    %v702 = vld [vmem:[#allocation6 + $0x558] sm:$0xff]
    %v703 = vld [vmem:[#allocation6 + $0x560] sm:$0xff]
    %v704 = vld [vmem:[#allocation6 + $0x568] sm:$0xff]
    %v705 = vld [vmem:[#allocation6 + $0x570] sm:$0xff]
    %v706 = vld [vmem:[#allocation6 + $0x578] sm:$0xff]
    %v707 = vld [vmem:[#allocation6 + $0x580] sm:$0xff]
    %v708 = vld [vmem:[#allocation6 + $0x588] sm:$0xff]
    %v709 = vld [vmem:[#allocation6 + $0x590] sm:$0xff]
    %v710 = vld [vmem:[#allocation6 + $0x598] sm:$0xff]
    %v711 = vld [vmem:[#allocation6 + $0x5a0] sm:$0xff]
    %v712 = vld [vmem:[#allocation6 + $0x5a8] sm:$0xff]
    %v713 = vld [vmem:[#allocation6 + $0x5b0] sm:$0xff]
    %v714 = vld [vmem:[#allocation6 + $0x5b8] sm:$0xff]
    %v715 = vld [vmem:[#allocation6 + $0x5c0] sm:$0xff]
    %v716 = vld [vmem:[#allocation6 + $0x5c8] sm:$0xff]
    %v717 = vld [vmem:[#allocation6 + $0x5d0] sm:$0xff]
    %v718 = vld [vmem:[#allocation6 + $0x5d8] sm:$0xff]
    %v719 = vld [vmem:[#allocation6 + $0x5e0] sm:$0xff]
    %v720 = vld [vmem:[#allocation6 + $0x5e8] sm:$0xff]
    %v721 = vld [vmem:[#allocation6 + $0x5f0] sm:$0xff]
    %v722 = vld [vmem:[#allocation6 + $0x5f8] sm:$0xff]
    %v723 = vld [vmem:[#allocation6 + $0x600] sm:$0xff]
    %v724 = vld [vmem:[#allocation6 + $0x608] sm:$0xff]
    %v725 = vld [vmem:[#allocation6 + $0x610] sm:$0xff]
    %v726 = vld [vmem:[#allocation6 + $0x618] sm:$0xff]
    %v727 = vld [vmem:[#allocation6 + $0x620] sm:$0xff]
    %v728 = vld [vmem:[#allocation6 + $0x628] sm:$0xff]
    %v729 = vld [vmem:[#allocation6 + $0x630] sm:$0xff]
    %v730 = vld [vmem:[#allocation6 + $0x638] sm:$0xff]
    %v731 = vld [vmem:[#allocation6 + $0x640] sm:$0xff]
    %v732 = vld [vmem:[#allocation6 + $0x648] sm:$0xff]
    %v733 = vld [vmem:[#allocation6 + $0x650] sm:$0xff]
    %v734 = vld [vmem:[#allocation6 + $0x658] sm:$0xff]
    %v735 = vld [vmem:[#allocation6 + $0x660] sm:$0xff]
    %v736 = vld [vmem:[#allocation6 + $0x668] sm:$0xff]
    %v737 = vld [vmem:[#allocation6 + $0x670] sm:$0xff]
    %v738 = vld [vmem:[#allocation6 + $0x678] sm:$0xff]
    %v739 = vld [vmem:[#allocation6 + $0x680] sm:$0xff]
    %v740 = vld [vmem:[#allocation6 + $0x688] sm:$0xff]
    %v741 = vld [vmem:[#allocation6 + $0x690] sm:$0xff]
    %v742 = vld [vmem:[#allocation6 + $0x698] sm:$0xff]
    %v743 = vld [vmem:[#allocation6 + $0x6a0] sm:$0xff]
    %v744 = vld [vmem:[#allocation6 + $0x6a8] sm:$0xff]
    %v745 = vld [vmem:[#allocation6 + $0x6b0] sm:$0xff]
    %v746 = vld [vmem:[#allocation6 + $0x6b8] sm:$0xff]
    %v747 = vld [vmem:[#allocation6 + $0x6c0] sm:$0xff]
    %v748 = vld [vmem:[#allocation6 + $0x6c8] sm:$0xff]
    %v749 = vld [vmem:[#allocation6 + $0x6d0] sm:$0xff]
    %v750 = vld [vmem:[#allocation6 + $0x6d8] sm:$0xff]
    %v751 = vld [vmem:[#allocation6 + $0x6e0] sm:$0xff]
    %v752 = vld [vmem:[#allocation6 + $0x6e8] sm:$0xff]
    %v753 = vld [vmem:[#allocation6 + $0x6f0] sm:$0xff]
    %v754 = vld [vmem:[#allocation6 + $0x6f8] sm:$0xff]
    %v755 = vld [vmem:[#allocation6 + $0x700] sm:$0xff]
    %v756 = vld [vmem:[#allocation6 + $0x708] sm:$0xff]
    %v757 = vld [vmem:[#allocation6 + $0x710] sm:$0xff]
    %v758 = vld [vmem:[#allocation6 + $0x718] sm:$0xff]
    %v759 = vld [vmem:[#allocation6 + $0x720] sm:$0xff]
    %v760 = vld [vmem:[#allocation6 + $0x728] sm:$0xff]
    %v761 = vld [vmem:[#allocation6 + $0x730] sm:$0xff]
    %v762 = vld [vmem:[#allocation6 + $0x738] sm:$0xff]
    %v763 = vld [vmem:[#allocation6 + $0x740] sm:$0xff]
    %v764 = vld [vmem:[#allocation6 + $0x748] sm:$0xff]
    %v765 = vld [vmem:[#allocation6 + $0x750] sm:$0xff]
    %v766 = vld [vmem:[#allocation6 + $0x758] sm:$0xff]
    %v767 = vld [vmem:[#allocation6 + $0x760] sm:$0xff]
    %v768 = vld [vmem:[#allocation6 + $0x768] sm:$0xff]
    %v769 = vld [vmem:[#allocation6 + $0x770] sm:$0xff]
    %v770 = vld [vmem:[#allocation6 + $0x778] sm:$0xff]
    %v771 = vld [vmem:[#allocation6 + $0x780] sm:$0xff]
    %v772 = vld [vmem:[#allocation6 + $0x788] sm:$0xff]
    %v773 = vld [vmem:[#allocation6 + $0x790] sm:$0xff]
    %v774 = vld [vmem:[#allocation6 + $0x798] sm:$0xff]
    %v775 = vld [vmem:[#allocation6 + $0x7a0] sm:$0xff]
    %v776 = vld [vmem:[#allocation6 + $0x7a8] sm:$0xff]
    %v777 = vld [vmem:[#allocation6 + $0x7b0] sm:$0xff]
    %v778 = vld [vmem:[#allocation6 + $0x7b8] sm:$0xff]
    %v779 = vld [vmem:[#allocation6 + $0x7c0] sm:$0xff]
    %v780 = vld [vmem:[#allocation6 + $0x7c8] sm:$0xff]
    %v781 = vld [vmem:[#allocation6 + $0x7d0] sm:$0xff]
    %v782 = vld [vmem:[#allocation6 + $0x7d8] sm:$0xff]
    %v783 = vld [vmem:[#allocation6 + $0x7e0] sm:$0xff]
    %v784 = vld [vmem:[#allocation6 + $0x7e8] sm:$0xff]
    %v785 = vld [vmem:[#allocation6 + $0x7f0] sm:$0xff]
    %v786 = vld [vmem:[#allocation6 + $0x7f8] sm:$0xff]
    %v787 = vld [vmem:[#allocation6 + $0x800] sm:$0xff]
    %v788 = vld [vmem:[#allocation6 + $0x808] sm:$0xff]
    %v789 = vld [vmem:[#allocation6 + $0x810] sm:$0xff]
    %v790 = vld [vmem:[#allocation6 + $0x818] sm:$0xff]
    %v791 = vld [vmem:[#allocation6 + $0x820] sm:$0xff]
    %v792 = vld [vmem:[#allocation6 + $0x828] sm:$0xff]
    %v793 = vld [vmem:[#allocation6 + $0x830] sm:$0xff]
    %v794 = vld [vmem:[#allocation6 + $0x838] sm:$0xff]
    %v795 = vld [vmem:[#allocation6 + $0x840] sm:$0xff]
    %v796 = vld [vmem:[#allocation6 + $0x848] sm:$0xff]
    %v797 = vld [vmem:[#allocation6 + $0x850] sm:$0xff]
    %v798 = vld [vmem:[#allocation6 + $0x858] sm:$0xff]
    %v799 = vld [vmem:[#allocation6 + $0x860] sm:$0xff]
    %v800 = vld [vmem:[#allocation6 + $0x868] sm:$0xff]
    %v801 = vld [vmem:[#allocation6 + $0x870] sm:$0xff]
    %v802 = vld [vmem:[#allocation6 + $0x878] sm:$0xff]
    %v803 = vld [vmem:[#allocation6 + $0x880] sm:$0xff]
    %v804 = vld [vmem:[#allocation6 + $0x888] sm:$0xff]
    %v805 = vld [vmem:[#allocation6 + $0x890] sm:$0xff]
    %v806 = vld [vmem:[#allocation6 + $0x898] sm:$0xff]
    %v807 = vld [vmem:[#allocation6 + $0x8a0] sm:$0xff]
    %v808 = vld [vmem:[#allocation6 + $0x8a8] sm:$0xff]
    %v809 = vld [vmem:[#allocation6 + $0x8b0] sm:$0xff]
    %v810 = vld [vmem:[#allocation6 + $0x8b8] sm:$0xff]
    %v811 = vld [vmem:[#allocation6 + $0x8c0] sm:$0xff]
    %v812 = vld [vmem:[#allocation6 + $0x8c8] sm:$0xff]
    %v813 = vld [vmem:[#allocation6 + $0x8d0] sm:$0xff]
    %v814 = vld [vmem:[#allocation6 + $0x8d8] sm:$0xff]
    %v815 = vld [vmem:[#allocation6 + $0x8e0] sm:$0xff]
    %v816 = vld [vmem:[#allocation6 + $0x8e8] sm:$0xff]
    %v817 = vld [vmem:[#allocation6 + $0x8f0] sm:$0xff]
    %v818 = vld [vmem:[#allocation6 + $0x8f8] sm:$0xff]
    %v819 = vld [vmem:[#allocation6 + $0x900] sm:$0xff]
    %v820 = vld [vmem:[#allocation6 + $0x908] sm:$0xff]
    %v821 = vld [vmem:[#allocation6 + $0x910] sm:$0xff]
    %v822 = vld [vmem:[#allocation6 + $0x918] sm:$0xff]
    %v823 = vld [vmem:[#allocation6 + $0x920] sm:$0xff]
    %v824 = vld [vmem:[#allocation6 + $0x928] sm:$0xff]
    %v825 = vld [vmem:[#allocation6 + $0x930] sm:$0xff]
    %v826 = vld [vmem:[#allocation6 + $0x938] sm:$0xff]
    %v827 = vld [vmem:[#allocation6 + $0x940] sm:$0xff]
    %v828 = vld [vmem:[#allocation6 + $0x948] sm:$0xff]
    %v829 = vld [vmem:[#allocation6 + $0x950] sm:$0xff]
    %v830 = vld [vmem:[#allocation6 + $0x958] sm:$0xff]
    %v831 = vld [vmem:[#allocation6 + $0x960] sm:$0xff]
    %v832 = vld [vmem:[#allocation6 + $0x968] sm:$0xff]
    %v833 = vld [vmem:[#allocation6 + $0x970] sm:$0xff]
    %v834 = vld [vmem:[#allocation6 + $0x978] sm:$0xff]
    %v835 = vld [vmem:[#allocation6 + $0x980] sm:$0xff]
    %v836 = vld [vmem:[#allocation6 + $0x988] sm:$0xff]
    %v837 = vld [vmem:[#allocation6 + $0x990] sm:$0xff]
    %v838 = vld [vmem:[#allocation6 + $0x998] sm:$0xff]
    %v839 = vld [vmem:[#allocation6 + $0x9a0] sm:$0xff]
    %v840 = vld [vmem:[#allocation6 + $0x9a8] sm:$0xff]
    %v841 = vld [vmem:[#allocation6 + $0x9b0] sm:$0xff]
    %v842 = vld [vmem:[#allocation6 + $0x9b8] sm:$0xff]
    %v843 = vld [vmem:[#allocation6 + $0x9c0] sm:$0xff]
    %v844 = vld [vmem:[#allocation6 + $0x9c8] sm:$0xff]
    %v845 = vld [vmem:[#allocation6 + $0x9d0] sm:$0xff]
    %v846 = vld [vmem:[#allocation6 + $0x9d8] sm:$0xff]
    %v847 = vld [vmem:[#allocation6 + $0x9e0] sm:$0xff]
    %v848 = vld [vmem:[#allocation6 + $0x9e8] sm:$0xff]
    %v849 = vld [vmem:[#allocation6 + $0x9f0] sm:$0xff]
    %v850 = vld [vmem:[#allocation6 + $0x9f8] sm:$0xff]
    %v851 = vld [vmem:[#allocation6 + $0xa00] sm:$0xff]
    %v852 = vld [vmem:[#allocation6 + $0xa08] sm:$0xff]
    %v853 = vld [vmem:[#allocation6 + $0xa10] sm:$0xff]
    %v854 = vld [vmem:[#allocation6 + $0xa18] sm:$0xff]
    %v855 = vld [vmem:[#allocation6 + $0xa20] sm:$0xff]
    %v856 = vld [vmem:[#allocation6 + $0xa28] sm:$0xff]
    %v857 = vld [vmem:[#allocation6 + $0xa30] sm:$0xff]
    %v858 = vld [vmem:[#allocation6 + $0xa38] sm:$0xff]
    %v859 = vld [vmem:[#allocation6 + $0xa40] sm:$0xff]
    %v860 = vld [vmem:[#allocation6 + $0xa48] sm:$0xff]
    %v861 = vld [vmem:[#allocation6 + $0xa50] sm:$0xff]
    %v862 = vld [vmem:[#allocation6 + $0xa58] sm:$0xff]
    %v863 = vld [vmem:[#allocation6 + $0xa60] sm:$0xff]
    %v864 = vld [vmem:[#allocation6 + $0xa68] sm:$0xff]
    %v865 = vld [vmem:[#allocation6 + $0xa70] sm:$0xff]
    %v866 = vld [vmem:[#allocation6 + $0xa78] sm:$0xff]
    %v867 = vld [vmem:[#allocation6 + $0xa80] sm:$0xff]
    %v868 = vld [vmem:[#allocation6 + $0xa88] sm:$0xff]
    %v869 = vld [vmem:[#allocation6 + $0xa90] sm:$0xff]
    %v870 = vld [vmem:[#allocation6 + $0xa98] sm:$0xff]
    %v871 = vld [vmem:[#allocation6 + $0xaa0] sm:$0xff]
    %v872 = vld [vmem:[#allocation6 + $0xaa8] sm:$0xff]
    %v873 = vld [vmem:[#allocation6 + $0xab0] sm:$0xff]
    %v874 = vld [vmem:[#allocation6 + $0xab8] sm:$0xff]
    %v875 = vld [vmem:[#allocation6 + $0xac0] sm:$0xff]
    %v876 = vld [vmem:[#allocation6 + $0xac8] sm:$0xff]
    %v877 = vld [vmem:[#allocation6 + $0xad0] sm:$0xff]
    %v878 = vld [vmem:[#allocation6 + $0xad8] sm:$0xff]
    %v879 = vld [vmem:[#allocation6 + $0xae0] sm:$0xff]
    %v880 = vld [vmem:[#allocation6 + $0xae8] sm:$0xff]
    %v881 = vld [vmem:[#allocation6 + $0xaf0] sm:$0xff]
    %v882 = vld [vmem:[#allocation6 + $0xaf8] sm:$0xff]
    %v883 = vld [vmem:[#allocation6 + $0xb00] sm:$0xff]
    %v884 = vld [vmem:[#allocation6 + $0xb08] sm:$0xff]
    %v885 = vld [vmem:[#allocation6 + $0xb10] sm:$0xff]
    %v886 = vld [vmem:[#allocation6 + $0xb18] sm:$0xff]
    %v887 = vld [vmem:[#allocation6 + $0xb20] sm:$0xff]
    %v888 = vld [vmem:[#allocation6 + $0xb28] sm:$0xff]
    %v889 = vld [vmem:[#allocation6 + $0xb30] sm:$0xff]
    %v890 = vld [vmem:[#allocation6 + $0xb38] sm:$0xff]
    %v891 = vld [vmem:[#allocation6 + $0xb40] sm:$0xff]
    %v892 = vld [vmem:[#allocation6 + $0xb48] sm:$0xff]
    %v893 = vld [vmem:[#allocation6 + $0xb50] sm:$0xff]
    %v894 = vld [vmem:[#allocation6 + $0xb58] sm:$0xff]
    %v895 = vld [vmem:[#allocation6 + $0xb60] sm:$0xff]
    %v896 = vld [vmem:[#allocation6 + $0xb68] sm:$0xff]
    %v897 = vld [vmem:[#allocation6 + $0xb70] sm:$0xff]
    %v898 = vld [vmem:[#allocation6 + $0xb78] sm:$0xff]
    %v899 = vld [vmem:[#allocation6 + $0xb80] sm:$0xff]
    %v900 = vld [vmem:[#allocation6 + $0xb88] sm:$0xff]
    %v901 = vld [vmem:[#allocation6 + $0xb90] sm:$0xff]
    %v902 = vld [vmem:[#allocation6 + $0xb98] sm:$0xff]
    %v903 = vld [vmem:[#allocation6 + $0xba0] sm:$0xff]
    %v904 = vld [vmem:[#allocation6 + $0xba8] sm:$0xff]
    %v905 = vld [vmem:[#allocation6 + $0xbb0] sm:$0xff]
    %v906 = vld [vmem:[#allocation6 + $0xbb8] sm:$0xff]
    %v907 = vld [vmem:[#allocation6 + $0xbc0] sm:$0xff]
    %v908 = vld [vmem:[#allocation6 + $0xbc8] sm:$0xff]
    %v909 = vld [vmem:[#allocation6 + $0xbd0] sm:$0xff]
    %v910 = vld [vmem:[#allocation6 + $0xbd8] sm:$0xff]
    %v911 = vld [vmem:[#allocation6 + $0xbe0] sm:$0xff]
    %v912 = vld [vmem:[#allocation6 + $0xbe8] sm:$0xff]
    %v913 = vld [vmem:[#allocation6 + $0xbf0] sm:$0xff]
    %v914 = vld [vmem:[#allocation6 + $0xbf8] sm:$0xff]
    %v915 = vld [vmem:[#allocation6 + $0xc00] sm:$0xff]
    %v916 = vld [vmem:[#allocation6 + $0xc08] sm:$0xff]
    %v917 = vld [vmem:[#allocation6 + $0xc10] sm:$0xff]
    %v918 = vld [vmem:[#allocation6 + $0xc18] sm:$0xff]
    %v919 = vld [vmem:[#allocation6 + $0xc20] sm:$0xff]
    %v920 = vld [vmem:[#allocation6 + $0xc28] sm:$0xff]
    %v921 = vld [vmem:[#allocation6 + $0xc30] sm:$0xff]
    %v922 = vld [vmem:[#allocation6 + $0xc38] sm:$0xff]
    %v923 = vld [vmem:[#allocation6 + $0xc40] sm:$0xff]
    %v924 = vld [vmem:[#allocation6 + $0xc48] sm:$0xff]
    %v925 = vld [vmem:[#allocation6 + $0xc50] sm:$0xff]
    %v926 = vld [vmem:[#allocation6 + $0xc58] sm:$0xff]
    %v927 = vld [vmem:[#allocation6 + $0xc60] sm:$0xff]
    %v928 = vld [vmem:[#allocation6 + $0xc68] sm:$0xff]
    %v929 = vld [vmem:[#allocation6 + $0xc70] sm:$0xff]
    %v930 = vld [vmem:[#allocation6 + $0xc78] sm:$0xff]
    %v931 = vld [vmem:[#allocation6 + $0xc80] sm:$0xff]
    %v932 = vld [vmem:[#allocation6 + $0xc88] sm:$0xff]
    %v933 = vld [vmem:[#allocation6 + $0xc90] sm:$0xff]
    %v934 = vld [vmem:[#allocation6 + $0xc98] sm:$0xff]
    %v935 = vld [vmem:[#allocation6 + $0xca0] sm:$0xff]
    %v936 = vld [vmem:[#allocation6 + $0xca8] sm:$0xff]
    %v937 = vld [vmem:[#allocation6 + $0xcb0] sm:$0xff]
    %v938 = vld [vmem:[#allocation6 + $0xcb8] sm:$0xff]
    %v939 = vld [vmem:[#allocation6 + $0xcc0] sm:$0xff]
    %v940 = vld [vmem:[#allocation6 + $0xcc8] sm:$0xff]
    %v941 = vld [vmem:[#allocation6 + $0xcd0] sm:$0xff]
    %v942 = vld [vmem:[#allocation6 + $0xcd8] sm:$0xff]
    %v943 = vld [vmem:[#allocation6 + $0xce0] sm:$0xff]
    %v944 = vld [vmem:[#allocation6 + $0xce8] sm:$0xff]
    %v945 = vld [vmem:[#allocation6 + $0xcf0] sm:$0xff]
    %v946 = vld [vmem:[#allocation6 + $0xcf8] sm:$0xff]
    %v947 = vld [vmem:[#allocation6 + $0xd00] sm:$0xff]
    %v948 = vld [vmem:[#allocation6 + $0xd08] sm:$0xff]
    %v949 = vld [vmem:[#allocation6 + $0xd10] sm:$0xff]
    %v950 = vld [vmem:[#allocation6 + $0xd18] sm:$0xff]
    %v951 = vld [vmem:[#allocation6 + $0xd20] sm:$0xff]
    %v952 = vld [vmem:[#allocation6 + $0xd28] sm:$0xff]
    %v953 = vld [vmem:[#allocation6 + $0xd30] sm:$0xff]
    %v954 = vld [vmem:[#allocation6 + $0xd38] sm:$0xff]
    %v955 = vld [vmem:[#allocation6 + $0xd40] sm:$0xff]
    %v956 = vld [vmem:[#allocation6 + $0xd48] sm:$0xff]
    %v957 = vld [vmem:[#allocation6 + $0xd50] sm:$0xff]
    %v958 = vld [vmem:[#allocation6 + $0xd58] sm:$0xff]
    %v959 = vld [vmem:[#allocation6 + $0xd60] sm:$0xff]
    %v960 = vld [vmem:[#allocation6 + $0xd68] sm:$0xff]
    %v961 = vld [vmem:[#allocation6 + $0xd70] sm:$0xff]
    %v962 = vld [vmem:[#allocation6 + $0xd78] sm:$0xff]
    %v963 = vld [vmem:[#allocation6 + $0xd80] sm:$0xff]
    %v964 = vld [vmem:[#allocation6 + $0xd88] sm:$0xff]
    %v965 = vld [vmem:[#allocation6 + $0xd90] sm:$0xff]
    %v966 = vld [vmem:[#allocation6 + $0xd98] sm:$0xff]
    %v967 = vld [vmem:[#allocation6 + $0xda0] sm:$0xff]
    %v968 = vld [vmem:[#allocation6 + $0xda8] sm:$0xff]
    %v969 = vld [vmem:[#allocation6 + $0xdb0] sm:$0xff]
    %v970 = vld [vmem:[#allocation6 + $0xdb8] sm:$0xff]
    %v971 = vld [vmem:[#allocation6 + $0xdc0] sm:$0xff]
    %v972 = vld [vmem:[#allocation6 + $0xdc8] sm:$0xff]
    %v973 = vld [vmem:[#allocation6 + $0xdd0] sm:$0xff]
    %v974 = vld [vmem:[#allocation6 + $0xdd8] sm:$0xff]
    %v975 = vld [vmem:[#allocation6 + $0xde0] sm:$0xff]
    %v976 = vld [vmem:[#allocation6 + $0xde8] sm:$0xff]
    %v977 = vld [vmem:[#allocation6 + $0xdf0] sm:$0xff]
    %v978 = vld [vmem:[#allocation6 + $0xdf8] sm:$0xff]
    %v979 = vld [vmem:[#allocation6 + $0xe00] sm:$0xff]
    %v980 = vld [vmem:[#allocation6 + $0xe08] sm:$0xff]
    %v981 = vld [vmem:[#allocation6 + $0xe10] sm:$0xff]
    %v982 = vld [vmem:[#allocation6 + $0xe18] sm:$0xff]
    %v983 = vld [vmem:[#allocation6 + $0xe20] sm:$0xff]
    %v984 = vld [vmem:[#allocation6 + $0xe28] sm:$0xff]
    %v985 = vld [vmem:[#allocation6 + $0xe30] sm:$0xff]
    %v986 = vld [vmem:[#allocation6 + $0xe38] sm:$0xff]
    %v987 = vld [vmem:[#allocation6 + $0xe40] sm:$0xff]
    %v988 = vld [vmem:[#allocation6 + $0xe48] sm:$0xff]
    %v989 = vld [vmem:[#allocation6 + $0xe50] sm:$0xff]
    %v990 = vld [vmem:[#allocation6 + $0xe58] sm:$0xff]
    %v991 = vld [vmem:[#allocation6 + $0xe60] sm:$0xff]
    %v992 = vld [vmem:[#allocation6 + $0xe68] sm:$0xff]
    %v993 = vld [vmem:[#allocation6 + $0xe70] sm:$0xff]
    %v994 = vld [vmem:[#allocation6 + $0xe78] sm:$0xff]
    %v995 = vld [vmem:[#allocation6 + $0xe80] sm:$0xff]
    %v996 = vld [vmem:[#allocation6 + $0xe88] sm:$0xff]
    %v997 = vld [vmem:[#allocation6 + $0xe90] sm:$0xff]
    %v998 = vld [vmem:[#allocation6 + $0xe98] sm:$0xff]
    %v999 = vld [vmem:[#allocation6 + $0xea0] sm:$0xff]
    %v1000 = vld [vmem:[#allocation6 + $0xea8] sm:$0xff]
    %v1001 = vld [vmem:[#allocation6 + $0xeb0] sm:$0xff]
    %v1002 = vld [vmem:[#allocation6 + $0xeb8] sm:$0xff]
    %v1003 = vld [vmem:[#allocation6 + $0xec0] sm:$0xff]
    %v1004 = vld [vmem:[#allocation6 + $0xec8] sm:$0xff]
    %v1005 = vld [vmem:[#allocation6 + $0xed0] sm:$0xff]
    %v1006 = vld [vmem:[#allocation6 + $0xed8] sm:$0xff]
    %v1007 = vld [vmem:[#allocation6 + $0xee0] sm:$0xff]
    %v1008 = vld [vmem:[#allocation6 + $0xee8] sm:$0xff]
    %v1009 = vld [vmem:[#allocation6 + $0xef0] sm:$0xff]
    %v1010 = vld [vmem:[#allocation6 + $0xef8] sm:$0xff]
    %v1011 = vld [vmem:[#allocation6 + $0xf00] sm:$0xff]
    %v1012 = vld [vmem:[#allocation6 + $0xf08] sm:$0xff]
    %v1013 = vld [vmem:[#allocation6 + $0xf10] sm:$0xff]
    %v1014 = vld [vmem:[#allocation6 + $0xf18] sm:$0xff]
    %v1015 = vld [vmem:[#allocation6 + $0xf20] sm:$0xff]
    %v1016 = vld [vmem:[#allocation6 + $0xf28] sm:$0xff]
    %v1017 = vld [vmem:[#allocation6 + $0xf30] sm:$0xff]
    %v1018 = vld [vmem:[#allocation6 + $0xf38] sm:$0xff]
    %v1019 = vld [vmem:[#allocation6 + $0xf40] sm:$0xff]
    %v1020 = vld [vmem:[#allocation6 + $0xf48] sm:$0xff]
    %v1021 = vld [vmem:[#allocation6 + $0xf50] sm:$0xff]
    %v1022 = vld [vmem:[#allocation6 + $0xf58] sm:$0xff]
    %v1023 = vld [vmem:[#allocation6 + $0xf60] sm:$0xff]
    %v1024 = vld [vmem:[#allocation6 + $0xf68] sm:$0xff]
    %v1025 = vld [vmem:[#allocation6 + $0xf70] sm:$0xff]
    %v1026 = vld [vmem:[#allocation6 + $0xf78] sm:$0xff]
    %v1027 = vld [vmem:[#allocation6 + $0xf80] sm:$0xff]
    %v1028 = vld [vmem:[#allocation6 + $0xf88] sm:$0xff]
    %v1029 = vld [vmem:[#allocation6 + $0xf90] sm:$0xff]
    %v1030 = vld [vmem:[#allocation6 + $0xf98] sm:$0xff]
    %v1031 = vld [vmem:[#allocation6 + $0xfa0] sm:$0xff]
    %v1032 = vld [vmem:[#allocation6 + $0xfa8] sm:$0xff]
    %v1033 = vld [vmem:[#allocation6 + $0xfb0] sm:$0xff]
    %v1034 = vld [vmem:[#allocation6 + $0xfb8] sm:$0xff]
    %v1035 = vld [vmem:[#allocation6 + $0xfc0] sm:$0xff]
    %v1036 = vld [vmem:[#allocation6 + $0xfc8] sm:$0xff]
    %v1037 = vld [vmem:[#allocation6 + $0xfd0] sm:$0xff]
    %v1038 = vld [vmem:[#allocation6 + $0xfd8] sm:$0xff]
    %v1039 = vld [vmem:[#allocation6 + $0xfe0] sm:$0xff]
    %v1040 = vld [vmem:[#allocation6 + $0xfe8] sm:$0xff]
    %v1041 = vld [vmem:[#allocation6 + $0xff0] sm:$0xff]
    %v1042 = vld [vmem:[#allocation6 + $0xff8] sm:$0xff]
    %1043 = vmatprep.subr.mxu0 %v532
    %1044 = vmatpush1.msra.mxu0 %v531
    %1045 = vmatprep.subr.mxu0 %v540
    %1046 = vmatpush1.msra.mxu0 %v539
    %1047 = vmatprep.subr.mxu0 %v548
    %1048 = vmatpush1.msra.mxu0 %v547
    %1049 = vmatprep.subr.mxu0 %v556
    %1050 = vmatpush1.msra.mxu0 %v555
    %1051 = vmatprep.subr.mxu0 %v564
    %1052 = vmatpush1.msra.mxu0 %v563
    %1053 = vmatprep.subr.mxu0 %v572
    %1054 = vmatpush1.msra.mxu0 %v571
    %1055 = vmatprep.subr.mxu0 %v580
    %1056 = vmatpush1.msra.mxu0 %v579
    %1057 = vmatprep.subr.mxu0 %v588
    %1058 = vmatpush1.msra.mxu0 %v587
    %1059 = vmatprep.subr.mxu0 %v596
    %1060 = vmatpush1.msra.mxu0 %v595
    %1061 = vmatprep.subr.mxu0 %v604
    %1062 = vmatpush1.msra.mxu0 %v603
    %1063 = vmatprep.subr.mxu0 %v612
    %1064 = vmatpush1.msra.mxu0 %v611
    %1065 = vmatprep.subr.mxu0 %v620
    %1066 = vmatpush1.msra.mxu0 %v619
    %1067 = vmatprep.subr.mxu0 %v628
    %1068 = vmatpush1.msra.mxu0 %v627
    %1069 = vmatprep.subr.mxu0 %v636
    %1070 = vmatpush1.msra.mxu0 %v635
    %1071 = vmatprep.subr.mxu0 %v644
    %1072 = vmatpush1.msra.mxu0 %v643
    %1073 = vmatprep.subr.mxu0 %v652
    %1074 = vmatpush1.msra.mxu0 %v651
    %1075 = vmatprep.subr.mxu0 %v660
    %1076 = vmatpush1.msra.mxu0 %v659
    %1077 = vmatprep.subr.mxu0 %v668
    %1078 = vmatpush1.msra.mxu0 %v667
    %1079 = vmatprep.subr.mxu0 %v676
    %1080 = vmatpush1.msra.mxu0 %v675
    %1081 = vmatprep.subr.mxu0 %v684
    %1082 = vmatpush1.msra.mxu0 %v683
    %1083 = vmatprep.subr.mxu0 %v692
    %1084 = vmatpush1.msra.mxu0 %v691
    %1085 = vmatprep.subr.mxu0 %v700
    %1086 = vmatpush1.msra.mxu0 %v699
    %1087 = vmatprep.subr.mxu0 %v708
    %1088 = vmatpush1.msra.mxu0 %v707
    %1089 = vmatprep.subr.mxu0 %v716
    %1090 = vmatpush1.msra.mxu0 %v715
    %1091 = vmatprep.subr.mxu0 %v724
    %1092 = vmatpush1.msra.mxu0 %v723
    %1093 = vmatprep.subr.mxu0 %v732
    %1094 = vmatpush1.msra.mxu0 %v731
    %1095 = vmatprep.subr.mxu0 %v740
    %1096 = vmatpush1.msra.mxu0 %v739
    %1097 = vmatprep.subr.mxu0 %v748
    %1098 = vmatpush1.msra.mxu0 %v747
    %1099 = vmatprep.subr.mxu0 %v756
    %1100 = vmatpush1.msra.mxu0 %v755
    %1101 = vmatprep.subr.mxu0 %v764
    %1102 = vmatpush1.msra.mxu0 %v763
    %1103 = vmatprep.subr.mxu0 %v772
    %1104 = vmatpush1.msra.mxu0 %v771
    %1105 = vmatprep.subr.mxu0 %v780
    %1106 = vmatpush1.msra.mxu0 %v779
    %1107 = vmatprep.mubr.f32.mxu0 %v524
    %1108 = vmatmul.mubr.f32.gmra.mrb[0].mxu0 %v523
    %v1109 = vpop.f32.mrb[0].mxu0
    %v1110 = vadd.f32 0.0, %v1109
    %v1111 = vpop.f32.mrb[0].mxu0
    %v1112 = vadd.f32 0.0, %v1111
    %1113 = vmatprep.mubr.f32.mxu0 %v528
    %1114 = vmatmul.mubr.f32.gmra.mrb[0].mxu0 %v527
    %v1115 = vpop.f32.mrb[0].mxu0
    %v1116 = vadd.f32 0.0, %v1115
    %v1117 = vpop.f32.mrb[0].mxu0
    %v1118 = vadd.f32 0.0, %v1117
    %1119 = vdwg.mxu0
    %1120 = vmatprep.subr.mxu0 %v788
    %1121 = vmatpush1.msra.mxu0 %v787
    %1122 = vmatprep.subr.mxu0 %v796
    %1123 = vmatpush1.msra.mxu0 %v795
    %1124 = vmatprep.subr.mxu0 %v804
    %1125 = vmatpush1.msra.mxu0 %v803
    %1126 = vmatprep.subr.mxu0 %v812
    %1127 = vmatpush1.msra.mxu0 %v811
    %1128 = vmatprep.subr.mxu0 %v820
    %1129 = vmatpush1.msra.mxu0 %v819
    %1130 = vmatprep.subr.mxu0 %v828
    %1131 = vmatpush1.msra.mxu0 %v827
    %1132 = vmatprep.subr.mxu0 %v836
    %1133 = vmatpush1.msra.mxu0 %v835
    %1134 = vmatprep.subr.mxu0 %v844
    %1135 = vmatpush1.msra.mxu0 %v843
    %1136 = vmatprep.subr.mxu0 %v852
    %1137 = vmatpush1.msra.mxu0 %v851
    %1138 = vmatprep.subr.mxu0 %v860
    %1139 = vmatpush1.msra.mxu0 %v859
    %1140 = vmatprep.subr.mxu0 %v868
    %1141 = vmatpush1.msra.mxu0 %v867
    %1142 = vmatprep.subr.mxu0 %v876
    %1143 = vmatpush1.msra.mxu0 %v875
    %1144 = vmatprep.subr.mxu0 %v884
    %1145 = vmatpush1.msra.mxu0 %v883
    %1146 = vmatprep.subr.mxu0 %v892
    %1147 = vmatpush1.msra.mxu0 %v891
    %1148 = vmatprep.subr.mxu0 %v900
    %1149 = vmatpush1.msra.mxu0 %v899
    %1150 = vmatprep.subr.mxu0 %v908
    %1151 = vmatpush1.msra.mxu0 %v907
    %1152 = vmatprep.subr.mxu0 %v916
    %1153 = vmatpush1.msra.mxu0 %v915
    %1154 = vmatprep.subr.mxu0 %v924
    %1155 = vmatpush1.msra.mxu0 %v923
    %1156 = vmatprep.subr.mxu0 %v932
    %1157 = vmatpush1.msra.mxu0 %v931
    %1158 = vmatprep.subr.mxu0 %v940
    %1159 = vmatpush1.msra.mxu0 %v939
    %1160 = vmatprep.subr.mxu0 %v948
    %1161 = vmatpush1.msra.mxu0 %v947
    %1162 = vmatprep.subr.mxu0 %v956
    %1163 = vmatpush1.msra.mxu0 %v955
    %1164 = vmatprep.subr.mxu0 %v964
    %1165 = vmatpush1.msra.mxu0 %v963
    %1166 = vmatprep.subr.mxu0 %v972
    %1167 = vmatpush1.msra.mxu0 %v971
    %1168 = vmatprep.subr.mxu0 %v980
    %1169 = vmatpush1.msra.mxu0 %v979
    %1170 = vmatprep.subr.mxu0 %v988
    %1171 = vmatpush1.msra.mxu0 %v987
    %1172 = vmatprep.subr.mxu0 %v996
    %1173 = vmatpush1.msra.mxu0 %v995
    %1174 = vmatprep.subr.mxu0 %v1004
    %1175 = vmatpush1.msra.mxu0 %v1003
    %1176 = vmatprep.subr.mxu0 %v1012
    %1177 = vmatpush1.msra.mxu0 %v1011
    %1178 = vmatprep.subr.mxu0 %v1020
    %1179 = vmatpush1.msra.mxu0 %v1019
    %1180 = vmatprep.subr.mxu0 %v1028
    %1181 = vmatpush1.msra.mxu0 %v1027
    %1182 = vmatprep.subr.mxu0 %v1036
    %1183 = vmatpush1.msra.mxu0 %v1035
    %1184 = vmatprep.mubr.f32.mxu0 %v526
    %1185 = vmatmul.mubr.f32.gmra.mrb[0].mxu0 %v525
    %v1186 = vpop.f32.mrb[0].mxu0
    %v1187 = vadd.f32 %v1110, %v1186
    %v1188 = vpop.f32.mrb[0].mxu0
    %v1189 = vadd.f32 %v1112, %v1188
    %1190 = vmatprep.mubr.f32.mxu0 %v530
    %1191 = vmatmul.mubr.f32.gmra.mrb[0].mxu0 %v529
    %v1192 = vpop.f32.mrb[0].mxu0
    %v1193 = vadd.f32 %v1116, %v1192
    %v1194 = vpop.f32.mrb[0].mxu0
    %v1195 = vadd.f32 %v1118, %v1194
    %1196 = vdwg.mxu0
    %1197 = vmatprep.subr.mxu0 %v534
    %1198 = vmatpush1.msra.mxu0 %v533
    %1199 = vmatprep.subr.mxu0 %v542
    %1200 = vmatpush1.msra.mxu0 %v541
    %1201 = vmatprep.subr.mxu0 %v550
    %1202 = vmatpush1.msra.mxu0 %v549
    %1203 = vmatprep.subr.mxu0 %v558
    %1204 = vmatpush1.msra.mxu0 %v557
    %1205 = vmatprep.subr.mxu0 %v566
    %1206 = vmatpush1.msra.mxu0 %v565
    %1207 = vmatprep.subr.mxu0 %v574
    %1208 = vmatpush1.msra.mxu0 %v573
    %1209 = vmatprep.subr.mxu0 %v582
    %1210 = vmatpush1.msra.mxu0 %v581
    %1211 = vmatprep.subr.mxu0 %v590
    %1212 = vmatpush1.msra.mxu0 %v589
    %1213 = vmatprep.subr.mxu0 %v598
    %1214 = vmatpush1.msra.mxu0 %v597
    %1215 = vmatprep.subr.mxu0 %v606
    %1216 = vmatpush1.msra.mxu0 %v605
    %1217 = vmatprep.subr.mxu0 %v614
    %1218 = vmatpush1.msra.mxu0 %v613
    %1219 = vmatprep.subr.mxu0 %v622
    %1220 = vmatpush1.msra.mxu0 %v621
    %1221 = vmatprep.subr.mxu0 %v630
    %1222 = vmatpush1.msra.mxu0 %v629
    %1223 = vmatprep.subr.mxu0 %v638
    %1224 = vmatpush1.msra.mxu0 %v637
    %1225 = vmatprep.subr.mxu0 %v646
    %1226 = vmatpush1.msra.mxu0 %v645
    %1227 = vmatprep.subr.mxu0 %v654
    %1228 = vmatpush1.msra.mxu0 %v653
    %1229 = vmatprep.subr.mxu0 %v662
    %1230 = vmatpush1.msra.mxu0 %v661
    %1231 = vmatprep.subr.mxu0 %v670
    %1232 = vmatpush1.msra.mxu0 %v669
    %1233 = vmatprep.subr.mxu0 %v678
    %1234 = vmatpush1.msra.mxu0 %v677
    %1235 = vmatprep.subr.mxu0 %v686
    %1236 = vmatpush1.msra.mxu0 %v685
    %1237 = vmatprep.subr.mxu0 %v694
    %1238 = vmatpush1.msra.mxu0 %v693
    %1239 = vmatprep.subr.mxu0 %v702
    %1240 = vmatpush1.msra.mxu0 %v701
    %1241 = vmatprep.subr.mxu0 %v710
    %1242 = vmatpush1.msra.mxu0 %v709
    %1243 = vmatprep.subr.mxu0 %v718
    %1244 = vmatpush1.msra.mxu0 %v717
    %1245 = vmatprep.subr.mxu0 %v726
    %1246 = vmatpush1.msra.mxu0 %v725
    %1247 = vmatprep.subr.mxu0 %v734
    %1248 = vmatpush1.msra.mxu0 %v733
    %1249 = vmatprep.subr.mxu0 %v742
    %1250 = vmatpush1.msra.mxu0 %v741
    %1251 = vmatprep.subr.mxu0 %v750
    %1252 = vmatpush1.msra.mxu0 %v749
    %1253 = vmatprep.subr.mxu0 %v758
    %1254 = vmatpush1.msra.mxu0 %v757
    %1255 = vmatprep.subr.mxu0 %v766
    %1256 = vmatpush1.msra.mxu0 %v765
    %1257 = vmatprep.subr.mxu0 %v774
    %1258 = vmatpush1.msra.mxu0 %v773
    %1259 = vmatprep.subr.mxu0 %v782
    %1260 = vmatpush1.msra.mxu0 %v781
    %1261 = vmatprep.mubr.f32.mxu0 %v524
    %1262 = vmatmul.mubr.f32.gmra.mrb[0].mxu0 %v523
    %v1263 = vpop.f32.mrb[0].mxu0
    %v1264 = vadd.f32 0.0, %v1263
    %v1265 = vpop.f32.mrb[0].mxu0
    %v1266 = vadd.f32 0.0, %v1265
    %1267 = vmatprep.mubr.f32.mxu0 %v528
    %1268 = vmatmul.mubr.f32.gmra.mrb[0].mxu0 %v527
    %v1269 = vpop.f32.mrb[0].mxu0
    %v1270 = vadd.f32 0.0, %v1269
    %v1271 = vpop.f32.mrb[0].mxu0
    %v1272 = vadd.f32 0.0, %v1271
    %1273 = vdwg.mxu0
    %1274 = vmatprep.subr.mxu0 %v790
    %1275 = vmatpush1.msra.mxu0 %v789
    %1276 = vmatprep.subr.mxu0 %v798
    %1277 = vmatpush1.msra.mxu0 %v797
    %1278 = vmatprep.subr.mxu0 %v806
    %1279 = vmatpush1.msra.mxu0 %v805
    %1280 = vmatprep.subr.mxu0 %v814
    %1281 = vmatpush1.msra.mxu0 %v813
    %1282 = vmatprep.subr.mxu0 %v822
    %1283 = vmatpush1.msra.mxu0 %v821
    %1284 = vmatprep.subr.mxu0 %v830
    %1285 = vmatpush1.msra.mxu0 %v829
    %1286 = vmatprep.subr.mxu0 %v838
    %1287 = vmatpush1.msra.mxu0 %v837
    %1288 = vmatprep.subr.mxu0 %v846
    %1289 = vmatpush1.msra.mxu0 %v845
    %1290 = vmatprep.subr.mxu0 %v854
    %1291 = vmatpush1.msra.mxu0 %v853
    %1292 = vmatprep.subr.mxu0 %v862
    %1293 = vmatpush1.msra.mxu0 %v861
    %1294 = vmatprep.subr.mxu0 %v870
    %1295 = vmatpush1.msra.mxu0 %v869
    %1296 = vmatprep.subr.mxu0 %v878
    %1297 = vmatpush1.msra.mxu0 %v877
    %1298 = vmatprep.subr.mxu0 %v886
    %1299 = vmatpush1.msra.mxu0 %v885
    %1300 = vmatprep.subr.mxu0 %v894
    %1301 = vmatpush1.msra.mxu0 %v893
    %1302 = vmatprep.subr.mxu0 %v902
    %1303 = vmatpush1.msra.mxu0 %v901
    %1304 = vmatprep.subr.mxu0 %v910
    %1305 = vmatpush1.msra.mxu0 %v909
    %1306 = vmatprep.subr.mxu0 %v918
    %1307 = vmatpush1.msra.mxu0 %v917
    %1308 = vmatprep.subr.mxu0 %v926
    %1309 = vmatpush1.msra.mxu0 %v925
    %1310 = vmatprep.subr.mxu0 %v934
    %1311 = vmatpush1.msra.mxu0 %v933
    %1312 = vmatprep.subr.mxu0 %v942
    %1313 = vmatpush1.msra.mxu0 %v941
    %1314 = vmatprep.subr.mxu0 %v950
    %1315 = vmatpush1.msra.mxu0 %v949
    %1316 = vmatprep.subr.mxu0 %v958
    %1317 = vmatpush1.msra.mxu0 %v957
    %1318 = vmatprep.subr.mxu0 %v966
    %1319 = vmatpush1.msra.mxu0 %v965
    %1320 = vmatprep.subr.mxu0 %v974
    %1321 = vmatpush1.msra.mxu0 %v973
    %1322 = vmatprep.subr.mxu0 %v982
    %1323 = vmatpush1.msra.mxu0 %v981
    %1324 = vmatprep.subr.mxu0 %v990
    %1325 = vmatpush1.msra.mxu0 %v989
    %1326 = vmatprep.subr.mxu0 %v998
    %1327 = vmatpush1.msra.mxu0 %v997
    %1328 = vmatprep.subr.mxu0 %v1006
    %1329 = vmatpush1.msra.mxu0 %v1005
    %1330 = vmatprep.subr.mxu0 %v1014
    %1331 = vmatpush1.msra.mxu0 %v1013
    %1332 = vmatprep.subr.mxu0 %v1022
    %1333 = vmatpush1.msra.mxu0 %v1021
    %1334 = vmatprep.subr.mxu0 %v1030
    %1335 = vmatpush1.msra.mxu0 %v1029
    %1336 = vmatprep.subr.mxu0 %v1038
    %1337 = vmatpush1.msra.mxu0 %v1037
    %1338 = vmatprep.mubr.f32.mxu0 %v526
    %1339 = vmatmul.mubr.f32.gmra.mrb[0].mxu0 %v525
    %v1340 = vpop.f32.mrb[0].mxu0
    %v1341 = vadd.f32 %v1264, %v1340
    %v1342 = vpop.f32.mrb[0].mxu0
    %v1343 = vadd.f32 %v1266, %v1342
    %1344 = vmatprep.mubr.f32.mxu0 %v530
    %1345 = vmatmul.mubr.f32.gmra.mrb[0].mxu0 %v529
    %v1346 = vpop.f32.mrb[0].mxu0
    %v1347 = vadd.f32 %v1270, %v1346
    %v1348 = vpop.f32.mrb[0].mxu0
    %v1349 = vadd.f32 %v1272, %v1348
    %1350 = vdwg.mxu0
    %1351 = vmatprep.subr.mxu0 %v536
    %1352 = vmatpush1.msra.mxu0 %v535
    %1353 = vmatprep.subr.mxu0 %v544
    %1354 = vmatpush1.msra.mxu0 %v543
    %1355 = vmatprep.subr.mxu0 %v552
    %1356 = vmatpush1.msra.mxu0 %v551
    %1357 = vmatprep.subr.mxu0 %v560
    %1358 = vmatpush1.msra.mxu0 %v559
    %1359 = vmatprep.subr.mxu0 %v568
    %1360 = vmatpush1.msra.mxu0 %v567
    %1361 = vmatprep.subr.mxu0 %v576
    %1362 = vmatpush1.msra.mxu0 %v575
    %1363 = vmatprep.subr.mxu0 %v584
    %1364 = vmatpush1.msra.mxu0 %v583
    %1365 = vmatprep.subr.mxu0 %v592
    %1366 = vmatpush1.msra.mxu0 %v591
    %1367 = vmatprep.subr.mxu0 %v600
    %1368 = vmatpush1.msra.mxu0 %v599
    %1369 = vmatprep.subr.mxu0 %v608
    %1370 = vmatpush1.msra.mxu0 %v607
    %1371 = vmatprep.subr.mxu0 %v616
    %1372 = vmatpush1.msra.mxu0 %v615
    %1373 = vmatprep.subr.mxu0 %v624
    %1374 = vmatpush1.msra.mxu0 %v623
    %1375 = vmatprep.subr.mxu0 %v632
    %1376 = vmatpush1.msra.mxu0 %v631
    %1377 = vmatprep.subr.mxu0 %v640
    %1378 = vmatpush1.msra.mxu0 %v639
    %1379 = vmatprep.subr.mxu0 %v648
    %1380 = vmatpush1.msra.mxu0 %v647
    %1381 = vmatprep.subr.mxu0 %v656
    %1382 = vmatpush1.msra.mxu0 %v655
    %1383 = vmatprep.subr.mxu0 %v664
    %1384 = vmatpush1.msra.mxu0 %v663
    %1385 = vmatprep.subr.mxu0 %v672
    %1386 = vmatpush1.msra.mxu0 %v671
    %1387 = vmatprep.subr.mxu0 %v680
    %1388 = vmatpush1.msra.mxu0 %v679
    %1389 = vmatprep.subr.mxu0 %v688
    %1390 = vmatpush1.msra.mxu0 %v687
    %1391 = vmatprep.subr.mxu0 %v696
    %1392 = vmatpush1.msra.mxu0 %v695
    %1393 = vmatprep.subr.mxu0 %v704
    %1394 = vmatpush1.msra.mxu0 %v703
    %1395 = vmatprep.subr.mxu0 %v712
    %1396 = vmatpush1.msra.mxu0 %v711
    %1397 = vmatprep.subr.mxu0 %v720
    %1398 = vmatpush1.msra.mxu0 %v719
    %1399 = vmatprep.subr.mxu0 %v728
    %1400 = vmatpush1.msra.mxu0 %v727
    %1401 = vmatprep.subr.mxu0 %v736
    %1402 = vmatpush1.msra.mxu0 %v735
    %1403 = vmatprep.subr.mxu0 %v744
    %1404 = vmatpush1.msra.mxu0 %v743
    %1405 = vmatprep.subr.mxu0 %v752
    %1406 = vmatpush1.msra.mxu0 %v751
    %1407 = vmatprep.subr.mxu0 %v760
    %1408 = vmatpush1.msra.mxu0 %v759
    %1409 = vmatprep.subr.mxu0 %v768
    %1410 = vmatpush1.msra.mxu0 %v767
    %1411 = vmatprep.subr.mxu0 %v776
    %1412 = vmatpush1.msra.mxu0 %v775
    %1413 = vmatprep.subr.mxu0 %v784
    %1414 = vmatpush1.msra.mxu0 %v783
    %1415 = vmatprep.mubr.f32.mxu0 %v524
    %1416 = vmatmul.mubr.f32.gmra.mrb[0].mxu0 %v523
    %v1417 = vpop.f32.mrb[0].mxu0
    %v1418 = vadd.f32 0.0, %v1417
    %v1419 = vpop.f32.mrb[0].mxu0
    %v1420 = vadd.f32 0.0, %v1419
    %1421 = vmatprep.mubr.f32.mxu0 %v528
    %1422 = vmatmul.mubr.f32.gmra.mrb[0].mxu0 %v527
    %v1423 = vpop.f32.mrb[0].mxu0
    %v1424 = vadd.f32 0.0, %v1423
    %v1425 = vpop.f32.mrb[0].mxu0
    %v1426 = vadd.f32 0.0, %v1425
    %1427 = vdwg.mxu0
    %1428 = vmatprep.subr.mxu0 %v792
    %1429 = vmatpush1.msra.mxu0 %v791
    %1430 = vmatprep.subr.mxu0 %v800
    %1431 = vmatpush1.msra.mxu0 %v799
    %1432 = vmatprep.subr.mxu0 %v808
    %1433 = vmatpush1.msra.mxu0 %v807
    %1434 = vmatprep.subr.mxu0 %v816
    %1435 = vmatpush1.msra.mxu0 %v815
    %1436 = vmatprep.subr.mxu0 %v824
    %1437 = vmatpush1.msra.mxu0 %v823
    %1438 = vmatprep.subr.mxu0 %v832
    %1439 = vmatpush1.msra.mxu0 %v831
    %1440 = vmatprep.subr.mxu0 %v840
    %1441 = vmatpush1.msra.mxu0 %v839
    %1442 = vmatprep.subr.mxu0 %v848
    %1443 = vmatpush1.msra.mxu0 %v847
    %1444 = vmatprep.subr.mxu0 %v856
    %1445 = vmatpush1.msra.mxu0 %v855
    %1446 = vmatprep.subr.mxu0 %v864
    %1447 = vmatpush1.msra.mxu0 %v863
    %1448 = vmatprep.subr.mxu0 %v872
    %1449 = vmatpush1.msra.mxu0 %v871
    %1450 = vmatprep.subr.mxu0 %v880
    %1451 = vmatpush1.msra.mxu0 %v879
    %1452 = vmatprep.subr.mxu0 %v888
    %1453 = vmatpush1.msra.mxu0 %v887
    %1454 = vmatprep.subr.mxu0 %v896
    %1455 = vmatpush1.msra.mxu0 %v895
    %1456 = vmatprep.subr.mxu0 %v904
    %1457 = vmatpush1.msra.mxu0 %v903
    %1458 = vmatprep.subr.mxu0 %v912
    %1459 = vmatpush1.msra.mxu0 %v911
    %1460 = vmatprep.subr.mxu0 %v920
    %1461 = vmatpush1.msra.mxu0 %v919
    %1462 = vmatprep.subr.mxu0 %v928
    %1463 = vmatpush1.msra.mxu0 %v927
    %1464 = vmatprep.subr.mxu0 %v936
    %1465 = vmatpush1.msra.mxu0 %v935
    %1466 = vmatprep.subr.mxu0 %v944
    %1467 = vmatpush1.msra.mxu0 %v943
    %1468 = vmatprep.subr.mxu0 %v952
    %1469 = vmatpush1.msra.mxu0 %v951
    %1470 = vmatprep.subr.mxu0 %v960
    %1471 = vmatpush1.msra.mxu0 %v959
    %1472 = vmatprep.subr.mxu0 %v968
    %1473 = vmatpush1.msra.mxu0 %v967
    %1474 = vmatprep.subr.mxu0 %v976
    %1475 = vmatpush1.msra.mxu0 %v975
    %1476 = vmatprep.subr.mxu0 %v984
    %1477 = vmatpush1.msra.mxu0 %v983
    %1478 = vmatprep.subr.mxu0 %v992
    %1479 = vmatpush1.msra.mxu0 %v991
    %1480 = vmatprep.subr.mxu0 %v1000
    %1481 = vmatpush1.msra.mxu0 %v999
    %1482 = vmatprep.subr.mxu0 %v1008
    %1483 = vmatpush1.msra.mxu0 %v1007
    %1484 = vmatprep.subr.mxu0 %v1016
    %1485 = vmatpush1.msra.mxu0 %v1015
    %1486 = vmatprep.subr.mxu0 %v1024
    %1487 = vmatpush1.msra.mxu0 %v1023
    %1488 = vmatprep.subr.mxu0 %v1032
    %1489 = vmatpush1.msra.mxu0 %v1031
    %1490 = vmatprep.subr.mxu0 %v1040
    %1491 = vmatpush1.msra.mxu0 %v1039
    %1492 = vmatprep.mubr.f32.mxu0 %v526
    %1493 = vmatmul.mubr.f32.gmra.mrb[0].mxu0 %v525
    %v1494 = vpop.f32.mrb[0].mxu0
    %v1495 = vadd.f32 %v1418, %v1494
    %v1496 = vpop.f32.mrb[0].mxu0
    %v1497 = vadd.f32 %v1420, %v1496
    %1498 = vmatprep.mubr.f32.mxu0 %v530
    %1499 = vmatmul.mubr.f32.gmra.mrb[0].mxu0 %v529
    %v1500 = vpop.f32.mrb[0].mxu0
    %v1501 = vadd.f32 %v1424, %v1500
    %v1502 = vpop.f32.mrb[0].mxu0
    %v1503 = vadd.f32 %v1426, %v1502
    %1504 = vdwg.mxu0
    %1505 = vmatprep.subr.mxu0 %v538
    %1506 = vmatpush1.msra.mxu0 %v537
    %1507 = vmatprep.subr.mxu0 %v546
    %1508 = vmatpush1.msra.mxu0 %v545
    %1509 = vmatprep.subr.mxu0 %v554
    %1510 = vmatpush1.msra.mxu0 %v553
    %1511 = vmatprep.subr.mxu0 %v562
    %1512 = vmatpush1.msra.mxu0 %v561
    %1513 = vmatprep.subr.mxu0 %v570
    %1514 = vmatpush1.msra.mxu0 %v569
    %1515 = vmatprep.subr.mxu0 %v578
    %1516 = vmatpush1.msra.mxu0 %v577
    %1517 = vmatprep.subr.mxu0 %v586
    %1518 = vmatpush1.msra.mxu0 %v585
    %1519 = vmatprep.subr.mxu0 %v594
    %1520 = vmatpush1.msra.mxu0 %v593
    %1521 = vmatprep.subr.mxu0 %v602
    %1522 = vmatpush1.msra.mxu0 %v601
    %1523 = vmatprep.subr.mxu0 %v610
    %1524 = vmatpush1.msra.mxu0 %v609
    %1525 = vmatprep.subr.mxu0 %v618
    %1526 = vmatpush1.msra.mxu0 %v617
    %1527 = vmatprep.subr.mxu0 %v626
    %1528 = vmatpush1.msra.mxu0 %v625
    %1529 = vmatprep.subr.mxu0 %v634
    %1530 = vmatpush1.msra.mxu0 %v633
    %1531 = vmatprep.subr.mxu0 %v642
    %1532 = vmatpush1.msra.mxu0 %v641
    %1533 = vmatprep.subr.mxu0 %v650
    %1534 = vmatpush1.msra.mxu0 %v649
    %1535 = vmatprep.subr.mxu0 %v658
    %1536 = vmatpush1.msra.mxu0 %v657
    %1537 = vmatprep.subr.mxu0 %v666
    %1538 = vmatpush1.msra.mxu0 %v665
    %1539 = vmatprep.subr.mxu0 %v674
    %1540 = vmatpush1.msra.mxu0 %v673
    %1541 = vmatprep.subr.mxu0 %v682
    %1542 = vmatpush1.msra.mxu0 %v681
    %1543 = vmatprep.subr.mxu0 %v690
    %1544 = vmatpush1.msra.mxu0 %v689
    %1545 = vmatprep.subr.mxu0 %v698
    %1546 = vmatpush1.msra.mxu0 %v697
    %1547 = vmatprep.subr.mxu0 %v706
    %1548 = vmatpush1.msra.mxu0 %v705
    %1549 = vmatprep.subr.mxu0 %v714
    %1550 = vmatpush1.msra.mxu0 %v713
    %1551 = vmatprep.subr.mxu0 %v722
    %1552 = vmatpush1.msra.mxu0 %v721
    %1553 = vmatprep.subr.mxu0 %v730
    %1554 = vmatpush1.msra.mxu0 %v729
    %1555 = vmatprep.subr.mxu0 %v738
    %1556 = vmatpush1.msra.mxu0 %v737
    %1557 = vmatprep.subr.mxu0 %v746
    %1558 = vmatpush1.msra.mxu0 %v745
    %1559 = vmatprep.subr.mxu0 %v754
    %1560 = vmatpush1.msra.mxu0 %v753
    %1561 = vmatprep.subr.mxu0 %v762
    %1562 = vmatpush1.msra.mxu0 %v761
    %1563 = vmatprep.subr.mxu0 %v770
    %1564 = vmatpush1.msra.mxu0 %v769
    %1565 = vmatprep.subr.mxu0 %v778
    %1566 = vmatpush1.msra.mxu0 %v777
    %1567 = vmatprep.subr.mxu0 %v786
    %1568 = vmatpush1.msra.mxu0 %v785
    %1569 = vmatprep.mubr.f32.mxu0 %v524
    %1570 = vmatmul.mubr.f32.gmra.mrb[0].mxu0 %v523
    %v1571 = vpop.f32.mrb[0].mxu0
    %v1572 = vadd.f32 0.0, %v1571
    %v1573 = vpop.f32.mrb[0].mxu0
    %v1574 = vadd.f32 0.0, %v1573
    %1575 = vmatprep.mubr.f32.mxu0 %v528
    %1576 = vmatmul.mubr.f32.gmra.mrb[0].mxu0 %v527
    %v1577 = vpop.f32.mrb[0].mxu0
    %v1578 = vadd.f32 0.0, %v1577
    %v1579 = vpop.f32.mrb[0].mxu0
    %v1580 = vadd.f32 0.0, %v1579
    %1581 = vdwg.mxu0
    %1582 = vmatprep.subr.mxu0 %v794
    %1583 = vmatpush1.msra.mxu0 %v793
    %1584 = vmatprep.subr.mxu0 %v802
    %1585 = vmatpush1.msra.mxu0 %v801
    %1586 = vmatprep.subr.mxu0 %v810
    %1587 = vmatpush1.msra.mxu0 %v809
    %1588 = vmatprep.subr.mxu0 %v818
    %1589 = vmatpush1.msra.mxu0 %v817
    %1590 = vmatprep.subr.mxu0 %v826
    %1591 = vmatpush1.msra.mxu0 %v825
    %1592 = vmatprep.subr.mxu0 %v834
    %1593 = vmatpush1.msra.mxu0 %v833
    %1594 = vmatprep.subr.mxu0 %v842
    %1595 = vmatpush1.msra.mxu0 %v841
    %1596 = vmatprep.subr.mxu0 %v850
    %1597 = vmatpush1.msra.mxu0 %v849
    %1598 = vmatprep.subr.mxu0 %v858
    %1599 = vmatpush1.msra.mxu0 %v857
    %1600 = vmatprep.subr.mxu0 %v866
    %1601 = vmatpush1.msra.mxu0 %v865
    %1602 = vmatprep.subr.mxu0 %v874
    %1603 = vmatpush1.msra.mxu0 %v873
    %1604 = vmatprep.subr.mxu0 %v882
    %1605 = vmatpush1.msra.mxu0 %v881
    %1606 = vmatprep.subr.mxu0 %v890
    %1607 = vmatpush1.msra.mxu0 %v889
    %1608 = vmatprep.subr.mxu0 %v898
    %1609 = vmatpush1.msra.mxu0 %v897
    %1610 = vmatprep.subr.mxu0 %v906
    %1611 = vmatpush1.msra.mxu0 %v905
    %1612 = vmatprep.subr.mxu0 %v914
    %1613 = vmatpush1.msra.mxu0 %v913
    %1614 = vmatprep.subr.mxu0 %v922
    %1615 = vmatpush1.msra.mxu0 %v921
    %1616 = vmatprep.subr.mxu0 %v930
    %1617 = vmatpush1.msra.mxu0 %v929
    %1618 = vmatprep.subr.mxu0 %v938
    %1619 = vmatpush1.msra.mxu0 %v937
    %1620 = vmatprep.subr.mxu0 %v946
    %1621 = vmatpush1.msra.mxu0 %v945
    %1622 = vmatprep.subr.mxu0 %v954
    %1623 = vmatpush1.msra.mxu0 %v953
    %1624 = vmatprep.subr.mxu0 %v962
    %1625 = vmatpush1.msra.mxu0 %v961
    %1626 = vmatprep.subr.mxu0 %v970
    %1627 = vmatpush1.msra.mxu0 %v969
    %1628 = vmatprep.subr.mxu0 %v978
    %1629 = vmatpush1.msra.mxu0 %v977
    %1630 = vmatprep.subr.mxu0 %v986
    %1631 = vmatpush1.msra.mxu0 %v985
    %1632 = vmatprep.subr.mxu0 %v994
    %1633 = vmatpush1.msra.mxu0 %v993
    %1634 = vmatprep.subr.mxu0 %v1002
    %1635 = vmatpush1.msra.mxu0 %v1001
    %1636 = vmatprep.subr.mxu0 %v1010
    %1637 = vmatpush1.msra.mxu0 %v1009
    %1638 = vmatprep.subr.mxu0 %v1018
    %1639 = vmatpush1.msra.mxu0 %v1017
    %1640 = vmatprep.subr.mxu0 %v1026
    %1641 = vmatpush1.msra.mxu0 %v1025
    %1642 = vmatprep.subr.mxu0 %v1034
    %1643 = vmatpush1.msra.mxu0 %v1033
    %1644 = vmatprep.subr.mxu0 %v1042
    %1645 = vmatpush1.msra.mxu0 %v1041
    %1646 = vmatprep.mubr.f32.mxu0 %v526
    %1647 = vmatmul.mubr.f32.gmra.mrb[0].mxu0 %v525
    %v1648 = vpop.f32.mrb[0].mxu0
    %v1649 = vadd.f32 %v1572, %v1648
    %v1650 = vpop.f32.mrb[0].mxu0
    %v1651 = vadd.f32 %v1574, %v1650
    %1652 = vmatprep.mubr.f32.mxu0 %v530
    %1653 = vmatmul.mubr.f32.gmra.mrb[0].mxu0 %v529
    %v1654 = vpop.f32.mrb[0].mxu0
    %v1655 = vadd.f32 %v1578, %v1654
    %v1656 = vpop.f32.mrb[0].mxu0
    %v1657 = vadd.f32 %v1580, %v1656
    %1658 = vdwg.mxu0
    %v1659 = vmax.f32 %v1187, %v1495
    %v1660 = vmax.f32 %v1189, %v1497
    %v1661 = vmax.f32 %v1341, %v1649
    %v1662 = vmax.f32 %v1343, %v1651
    %v1663 = vmax.f32 %v1193, %v1501
    %v1664 = vmax.f32 %v1195, %v1503
    %v1665 = vmax.f32 %v1347, %v1655
    %v1666 = vmax.f32 %v1349, %v1657
    %v1667 = vlaneseq
    %v1668 = vshrl.u32 %v1667, 7
    %v1669 = vsub.s32 1, %v1668
    %v1670 = vrot.slane %v89, %v1669
    %v1671 = vlaneseq
    %v1672 = vshrl.u32 %v1671, 7
    %v1673 = vsub.s32 3, %v1672
    %v1674 = vrot.slane %v89, %v1673
    %v1675 = vlaneseq
    %v1676 = vshrl.u32 %v1675, 7
    %v1677 = vsub.s32 5, %v1676
    %v1678 = vrot.slane %v89, %v1677
    %v1679 = vlaneseq
    %v1680 = vshrl.u32 %v1679, 7
    %v1681 = vsub.s32 7, %v1680
    %v1682 = vrot.slane %v89, %v1681
    %v1687 = vlaneseq
    %v1688 = vshrl.u32 %v1687, 7
    %v1689 = vsub.s32 1, %v1688
    %v1690 = vrot.slane %v1670, %v1689
    %v1691 = vlaneseq
    %v1692 = vshrl.u32 %v1691, 7
    %v1693 = vsub.s32 1, %v1692
    %v1694 = vrot.slane %v1674, %v1693
    %v1695 = vlaneseq
    %v1696 = vshrl.u32 %v1695, 7
    %v1697 = vsub.s32 1, %v1696
    %v1698 = vrot.slane %v1678, %v1697
    %v1699 = vlaneseq
    %v1700 = vshrl.u32 %v1699, 7
    %v1701 = vsub.s32 1, %v1700
    %v1702 = vrot.slane %v1682, %v1701
    %v1703 = vadd.f32 %v1659, %v1690
    %v1704 = vadd.f32 %v1660, %v1694
    %v1705 = vadd.f32 %v1661, %v1698
    %v1706 = vadd.f32 %v1662, %v1702
    %v1707 = vadd.f32 %v1663, %v1690
    %v1708 = vadd.f32 %v1664, %v1694
    %v1709 = vadd.f32 %v1665, %v1698
    %v1710 = vadd.f32 %v1666, %v1702
    %v1711 = vmax.f32 %v1703, 0.0
    %v1712 = vmax.f32 %v1704, 0.0
    %v1713 = vmax.f32 %v1705, 0.0
    %v1714 = vmax.f32 %v1706, 0.0
    %v1715 = vmax.f32 %v1707, 0.0
    %v1716 = vmax.f32 %v1708, 0.0
    %v1717 = vmax.f32 %v1709, 0.0
    %v1718 = vmax.f32 %v1710, 0.0
    %v1719 = vld [vmem:[%s4] sm:$0xff]
    %v1720 = vld [vmem:[%s4 + $0x8] sm:$0xff]
    %v1721 = vld [vmem:[%s4 + $0x10] sm:$0xff]
    %v1722 = vld [vmem:[%s4 + $0x18] sm:$0xff]
    %v1723 = vld [vmem:[%s4 + $0x20] sm:$0xff]
    %v1724 = vld [vmem:[%s4 + $0x28] sm:$0xff]
    %v1725 = vld [vmem:[%s4 + $0x30] sm:$0xff]
    %v1726 = vld [vmem:[%s4 + $0x38] sm:$0xff]
    %v1727 = vld [vmem:[%s4 + $0x40] sm:$0xff]
    %v1728 = vld [vmem:[%s4 + $0x48] sm:$0xff]
    %v1729 = vld [vmem:[%s4 + $0x50] sm:$0xff]
    %v1730 = vld [vmem:[%s4 + $0x58] sm:$0xff]
    %v1731 = vld [vmem:[%s4 + $0x60] sm:$0xff]
    %v1732 = vld [vmem:[%s4 + $0x68] sm:$0xff]
    %v1733 = vld [vmem:[%s4 + $0x70] sm:$0xff]
    %v1734 = vld [vmem:[%s4 + $0x78] sm:$0xff]
    %v1735 = vld [vmem:[%s4 + $0x80] sm:$0xff]
    %v1736 = vld [vmem:[%s4 + $0x88] sm:$0xff]
    %v1737 = vld [vmem:[%s4 + $0x90] sm:$0xff]
    %v1738 = vld [vmem:[%s4 + $0x98] sm:$0xff]
    %v1739 = vld [vmem:[%s4 + $0xa0] sm:$0xff]
    %v1740 = vld [vmem:[%s4 + $0xa8] sm:$0xff]
    %v1741 = vld [vmem:[%s4 + $0xb0] sm:$0xff]
    %v1742 = vld [vmem:[%s4 + $0xb8] sm:$0xff]
    %v1743 = vld [vmem:[%s4 + $0xc0] sm:$0xff]
    %v1744 = vld [vmem:[%s4 + $0xc8] sm:$0xff]
    %v1745 = vld [vmem:[%s4 + $0xd0] sm:$0xff]
    %v1746 = vld [vmem:[%s4 + $0xd8] sm:$0xff]
    %v1747 = vld [vmem:[%s4 + $0xe0] sm:$0xff]
    %v1748 = vld [vmem:[%s4 + $0xe8] sm:$0xff]
    %v1749 = vld [vmem:[%s4 + $0xf0] sm:$0xff]
    %v1750 = vld [vmem:[%s4 + $0xf8] sm:$0xff]
    %v1751 = vld [vmem:[%s4 + $0x100] sm:$0xff]
    %v1752 = vld [vmem:[%s4 + $0x108] sm:$0xff]
    %v1753 = vld [vmem:[%s4 + $0x110] sm:$0xff]
    %v1754 = vld [vmem:[%s4 + $0x118] sm:$0xff]
    %v1755 = vld [vmem:[%s4 + $0x120] sm:$0xff]
    %v1756 = vld [vmem:[%s4 + $0x128] sm:$0xff]
    %v1757 = vld [vmem:[%s4 + $0x130] sm:$0xff]
    %v1758 = vld [vmem:[%s4 + $0x138] sm:$0xff]
    %v1759 = vld [vmem:[%s4 + $0x140] sm:$0xff]
    %v1760 = vld [vmem:[%s4 + $0x148] sm:$0xff]
    %v1761 = vld [vmem:[%s4 + $0x150] sm:$0xff]
    %v1762 = vld [vmem:[%s4 + $0x158] sm:$0xff]
    %v1763 = vld [vmem:[%s4 + $0x160] sm:$0xff]
    %v1764 = vld [vmem:[%s4 + $0x168] sm:$0xff]
    %v1765 = vld [vmem:[%s4 + $0x170] sm:$0xff]
    %v1766 = vld [vmem:[%s4 + $0x178] sm:$0xff]
    %v1767 = vld [vmem:[%s4 + $0x180] sm:$0xff]
    %v1768 = vld [vmem:[%s4 + $0x188] sm:$0xff]
    %v1769 = vld [vmem:[%s4 + $0x190] sm:$0xff]
    %v1770 = vld [vmem:[%s4 + $0x198] sm:$0xff]
    %v1771 = vld [vmem:[%s4 + $0x1a0] sm:$0xff]
    %v1772 = vld [vmem:[%s4 + $0x1a8] sm:$0xff]
    %v1773 = vld [vmem:[%s4 + $0x1b0] sm:$0xff]
    %v1774 = vld [vmem:[%s4 + $0x1b8] sm:$0xff]
    %v1775 = vld [vmem:[%s4 + $0x1c0] sm:$0xff]
    %v1776 = vld [vmem:[%s4 + $0x1c8] sm:$0xff]
    %v1777 = vld [vmem:[%s4 + $0x1d0] sm:$0xff]
    %v1778 = vld [vmem:[%s4 + $0x1d8] sm:$0xff]
    %v1779 = vld [vmem:[%s4 + $0x1e0] sm:$0xff]
    %v1780 = vld [vmem:[%s4 + $0x1e8] sm:$0xff]
    %v1781 = vld [vmem:[%s4 + $0x1f0] sm:$0xff]
    %v1782 = vld [vmem:[%s4 + $0x1f8] sm:$0xff]
    %v1783 = vlaneseq
    %v1784 = vshrl.u32 %v1783, 7
    %v1785 = vsub.s32 0, %v1784
    %v1786 = vrot.slane %v90, %v1785
    %1787 = vmatprep.subr.mxu0 0.0
    %1788 = vmatpush1.msra.mxu0 %v1719
    %1789 = vmatprep.subr.mxu0 0.0
    %1790 = vmatpush1.msra.mxu0 %v1720
    %1791 = vmatprep.subr.mxu0 0.0
    %1792 = vmatpush1.msra.mxu0 %v1721
    %1793 = vmatprep.subr.mxu0 0.0
    %1794 = vmatpush1.msra.mxu0 %v1722
    %1795 = vmatprep.subr.mxu0 0.0
    %1796 = vmatpush1.msra.mxu0 %v1723
    %1797 = vmatprep.subr.mxu0 0.0
    %1798 = vmatpush1.msra.mxu0 %v1724
    %1799 = vmatprep.subr.mxu0 0.0
    %1800 = vmatpush1.msra.mxu0 %v1725
    %1801 = vmatprep.subr.mxu0 0.0
    %1802 = vmatpush1.msra.mxu0 %v1726
    %1803 = vmatprep.subr.mxu0 0.0
    %1804 = vmatpush1.msra.mxu0 %v1727
    %1805 = vmatprep.subr.mxu0 0.0
    %1806 = vmatpush1.msra.mxu0 %v1728
    %1807 = vmatprep.subr.mxu0 0.0
    %1808 = vmatpush1.msra.mxu0 %v1729
    %1809 = vmatprep.subr.mxu0 0.0
    %1810 = vmatpush1.msra.mxu0 %v1730
    %1811 = vmatprep.subr.mxu0 0.0
    %1812 = vmatpush1.msra.mxu0 %v1731
    %1813 = vmatprep.subr.mxu0 0.0
    %1814 = vmatpush1.msra.mxu0 %v1732
    %1815 = vmatprep.subr.mxu0 0.0
    %1816 = vmatpush1.msra.mxu0 %v1733
    %1817 = vmatprep.subr.mxu0 0.0
    %1818 = vmatpush1.msra.mxu0 %v1734
    %1819 = vmatprep.subr.mxu0 0.0
    %1820 = vmatpush1.msra.mxu0 %v1735
    %1821 = vmatprep.subr.mxu0 0.0
    %1822 = vmatpush1.msra.mxu0 %v1736
    %1823 = vmatprep.subr.mxu0 0.0
    %1824 = vmatpush1.msra.mxu0 %v1737
    %1825 = vmatprep.subr.mxu0 0.0
    %1826 = vmatpush1.msra.mxu0 %v1738
    %1827 = vmatprep.subr.mxu0 0.0
    %1828 = vmatpush1.msra.mxu0 %v1739
    %1829 = vmatprep.subr.mxu0 0.0
    %1830 = vmatpush1.msra.mxu0 %v1740
    %1831 = vmatprep.subr.mxu0 0.0
    %1832 = vmatpush1.msra.mxu0 %v1741
    %1833 = vmatprep.subr.mxu0 0.0
    %1834 = vmatpush1.msra.mxu0 %v1742
    %1835 = vmatprep.subr.mxu0 0.0
    %1836 = vmatpush1.msra.mxu0 %v1743
    %1837 = vmatprep.subr.mxu0 0.0
    %1838 = vmatpush1.msra.mxu0 %v1744
    %1839 = vmatprep.subr.mxu0 0.0
    %1840 = vmatpush1.msra.mxu0 %v1745
    %1841 = vmatprep.subr.mxu0 0.0
    %1842 = vmatpush1.msra.mxu0 %v1746
    %1843 = vmatprep.subr.mxu0 0.0
    %1844 = vmatpush1.msra.mxu0 %v1747
    %1845 = vmatprep.subr.mxu0 0.0
    %1846 = vmatpush1.msra.mxu0 %v1748
    %1847 = vmatprep.subr.mxu0 0.0
    %1848 = vmatpush1.msra.mxu0 %v1749
    %1849 = vmatprep.subr.mxu0 0.0
    %1850 = vmatpush1.msra.mxu0 %v1750
    %1851 = vmatprep.mubr.f32.mxu0 %v1712
    %1852 = vmatmul.mubr.f32.gmra.mrb[0].mxu0 %v1711
    %v1853 = vpop.f32.mrb[0].mxu0
    %v1854 = vadd.f32 %v1786, %v1853
    %v1855 = vpop.f32.mrb[0].mxu0
    %1856 = vmatprep.mubr.f32.mxu0 %v1716
    %1857 = vmatmul.mubr.f32.gmra.mrb[0].mxu0 %v1715
    %v1858 = vpop.f32.mrb[0].mxu0
    %v1859 = vadd.f32 %v1786, %v1858
    %v1860 = vpop.f32.mrb[0].mxu0
    %1861 = vdwg.mxu0
    %1862 = vmatprep.subr.mxu0 0.0
    %1863 = vmatpush1.msra.mxu0 %v1751
    %1864 = vmatprep.subr.mxu0 0.0
    %1865 = vmatpush1.msra.mxu0 %v1752
    %1866 = vmatprep.subr.mxu0 0.0
    %1867 = vmatpush1.msra.mxu0 %v1753
    %1868 = vmatprep.subr.mxu0 0.0
    %1869 = vmatpush1.msra.mxu0 %v1754
    %1870 = vmatprep.subr.mxu0 0.0
    %1871 = vmatpush1.msra.mxu0 %v1755
    %1872 = vmatprep.subr.mxu0 0.0
    %1873 = vmatpush1.msra.mxu0 %v1756
    %1874 = vmatprep.subr.mxu0 0.0
    %1875 = vmatpush1.msra.mxu0 %v1757
    %1876 = vmatprep.subr.mxu0 0.0
    %1877 = vmatpush1.msra.mxu0 %v1758
    %1878 = vmatprep.subr.mxu0 0.0
    %1879 = vmatpush1.msra.mxu0 %v1759
    %1880 = vmatprep.subr.mxu0 0.0
    %1881 = vmatpush1.msra.mxu0 %v1760
    %1882 = vmatprep.subr.mxu0 0.0
    %1883 = vmatpush1.msra.mxu0 %v1761
    %1884 = vmatprep.subr.mxu0 0.0
    %1885 = vmatpush1.msra.mxu0 %v1762
    %1886 = vmatprep.subr.mxu0 0.0
    %1887 = vmatpush1.msra.mxu0 %v1763
    %1888 = vmatprep.subr.mxu0 0.0
    %1889 = vmatpush1.msra.mxu0 %v1764
    %1890 = vmatprep.subr.mxu0 0.0
    %1891 = vmatpush1.msra.mxu0 %v1765
    %1892 = vmatprep.subr.mxu0 0.0
    %1893 = vmatpush1.msra.mxu0 %v1766
    %1894 = vmatprep.subr.mxu0 0.0
    %1895 = vmatpush1.msra.mxu0 %v1767
    %1896 = vmatprep.subr.mxu0 0.0
    %1897 = vmatpush1.msra.mxu0 %v1768
    %1898 = vmatprep.subr.mxu0 0.0
    %1899 = vmatpush1.msra.mxu0 %v1769
    %1900 = vmatprep.subr.mxu0 0.0
    %1901 = vmatpush1.msra.mxu0 %v1770
    %1902 = vmatprep.subr.mxu0 0.0
    %1903 = vmatpush1.msra.mxu0 %v1771
    %1904 = vmatprep.subr.mxu0 0.0
    %1905 = vmatpush1.msra.mxu0 %v1772
    %1906 = vmatprep.subr.mxu0 0.0
    %1907 = vmatpush1.msra.mxu0 %v1773
    %1908 = vmatprep.subr.mxu0 0.0
    %1909 = vmatpush1.msra.mxu0 %v1774
    %1910 = vmatprep.subr.mxu0 0.0
    %1911 = vmatpush1.msra.mxu0 %v1775
    %1912 = vmatprep.subr.mxu0 0.0
    %1913 = vmatpush1.msra.mxu0 %v1776
    %1914 = vmatprep.subr.mxu0 0.0
    %1915 = vmatpush1.msra.mxu0 %v1777
    %1916 = vmatprep.subr.mxu0 0.0
    %1917 = vmatpush1.msra.mxu0 %v1778
    %1918 = vmatprep.subr.mxu0 0.0
    %1919 = vmatpush1.msra.mxu0 %v1779
    %1920 = vmatprep.subr.mxu0 0.0
    %1921 = vmatpush1.msra.mxu0 %v1780
    %1922 = vmatprep.subr.mxu0 0.0
    %1923 = vmatpush1.msra.mxu0 %v1781
    %1924 = vmatprep.subr.mxu0 0.0
    %1925 = vmatpush1.msra.mxu0 %v1782
    %1926 = vmatprep.mubr.f32.mxu0 %v1714
    %1927 = vmatmul.mubr.f32.gmra.mrb[0].mxu0 %v1713
    %v1928 = vpop.f32.mrb[0].mxu0
    %v1929 = vadd.f32 %v1854, %v1928
    %v1930 = vpop.f32.mrb[0].mxu0
    %1931 = vmatprep.mubr.f32.mxu0 %v1718
    %1932 = vmatmul.mubr.f32.gmra.mrb[0].mxu0 %v1717
    %v1933 = vpop.f32.mrb[0].mxu0
    %v1934 = vadd.f32 %v1859, %v1933
    %v1935 = vpop.f32.mrb[0].mxu0
    %1936 = vdwg.mxu0
    %v1937 = vmax.f32 %v1929, 0.0
    %v1938 = vmax.f32 %v1934, 0.0
    %v1939 = vlaneseq
    %v1940 = vshrl.u32 %v1939, 7
    %v1941 = vsub.s32 1, %v1940
    %v1942 = vrot.slane %v90, %v1941
    %v1943 = vmul.f32 %v1937, %v1942
    %v1944 = vmul.f32 %v1938, %v1942
    %v1945 = vsel %vm155, %v1943, 0.0
    %1946 = vadd.xlane.f32.xlu0 %v1945
    %v1947 = vpop.xlane.xlu0 %1946
    %v1948 = vsel %vm155, %v1944, 0.0
    %1949 = vadd.xlane.f32.xlu0 %v1948
    %v1950 = vpop.xlane.xlu0 %1949
    %v1951 = vlaneseq
    %v1952 = vshrl.u32 %v1951, 7
    %v1953 = vsub.s32 2, %v1952
    %v1954 = vrot.slane %v90, %v1953
    %v1955 = vadd.f32 %v1947, %v1954
    %v1956 = vadd.f32 %v1950, %v1954
    %vm1957 = vcmask 7168
    %1958 = vst.msk [vmem:[%s6] sm:$0xff] %vm1957, %v1955
    %1959 = vst.msk [vmem:[%s6 + $0x8] sm:$0xff] %vm1957, %v1956
    // Predicated region
    $region46: #{cnn_forward_packed.1} parent=1 // pred_check
      _
    $region47: #{cnn_forward_packed.1} parent=1 // pred_check_branch
      %1961 = sbr.rel (0) target = $region49
    $region48: #{cnn_forward_packed.1} parent=1 // pred_region
      _
    $region49: #{cnn_forward_packed.1} parent=1 // pred_fallthru
      _
    // Predicated region
    $region50: #{cnn_forward_packed.1} parent=1 // pred_check
      _
    $region51: #{cnn_forward_packed.1} parent=1 // pred_check_branch
      %1963 = sbr.rel (0) target = $region53
    $region52: #{cnn_forward_packed.1} parent=1 // pred_region
      _
    $region53: #{cnn_forward_packed.1} parent=1 // pred_fallthru
      _
    %1964 = vsyncpa [#allocation3], 1
    %1965 = vsyncpa [#allocation5], 1
    %1966 = vsyncpa [#allocation8], 1

// kernel: cnn_forward_packed.1
$region0: #{cnn_forward_packed.1}
  #allocation0 [shape = 'u32[]', space=smem, size = 0x4, offset = 0x4, fixed_abs, tag = 'smem constant byte address 0x4 - core index']
  #allocation1 [shape = 'u32[144,128]{1,0:T(1,128)}', space=vmem, size = 0x12000, scoped, tag = 'internal scratch']
  %s0 = inlined_call_operand.hbm [shape: f32[16,64], index: 0, kind: input, shape index: {}]
  %s1 = inlined_call_operand.hbm [shape: f32[64,1024], index: 1, kind: input, shape index: {}]
  %s2 = inlined_call_operand.hbm [shape: f32[512,1024], index: 2, kind: input, shape index: {}]
  %s3 = inlined_call_operand.hbm [shape: f32[2,512], index: 3, kind: input, shape index: {}]
  %s4 = inlined_call_operand.vmem [shape: f32[512,64], index: 4, kind: input, shape index: {}]
  %s5 = inlined_call_operand.hbm [shape: f32[3,64], index: 5, kind: input, shape index: {}]
  %s6 = inlined_call_operand.vmem [shape: f32[16,1], index: 6, kind: output, shape index: {}]
  %s7 = sld [smem:[#allocation0]]
  $region54: #{cnn_forward_packed.1} parent=0
    _
  %s9 = ssub.s32 1, %s7
  %s10 = scalar_select 0, %s9, %s7
  $region1: #{cnn_forward_packed.1} parent=0
    #allocation2 [shape = 'u8[8192]{0}', space=vmem, size = 0x2000, scoped, tag = 'input window, operand 0, single buffered']
    #allocation3 [shape = 's32[1]{0}', space=sflag, size = 0x4, scoped, tag = 'scoped memory for cnn_forward_packed.1']
    #allocation4 [shape = 'u8[262144]{0}', space=vmem, size = 0x40000, scoped, tag = 'input window, operand 1, single buffered']
    #allocation5 [shape = 's32[1]{0}', space=sflag, size = 0x4, scoped, tag = 'scoped memory for cnn_forward_packed.1']
    #allocation6 [shape = 'u8[2097152]{0}', space=vmem, size = 0x200000, scoped, tag = 'input window, operand 2, single buffered']
    #allocation7 [shape = 'u8[4096]{0}', space=vmem, size = 0x1000, scoped, tag = 'input window, operand 3, single buffered']
    #allocation8 [shape = 's32[1]{0}', space=sflag, size = 0x4, scoped, tag = 'scoped memory for cnn_forward_packed.1']
    #allocation9 [shape = 'u8[2048]{0}', space=vmem, size = 0x800, scoped, tag = 'input window, operand 5, single buffered']
    %11 = vsyncpa [#allocation3], 0
    %12 = vsyncpa [#allocation5], 0
    %13 = vsyncpa [#allocation8], 0
    // Predicated region
    $region2: #{cnn_forward_packed.1} parent=1 // pred_check
      _
    $region3: #{cnn_forward_packed.1} parent=1 // pred_check_branch
      %15 = sbr.rel (0) target = $region5
    $region4: #{cnn_forward_packed.1} parent=1 // pred_region
      %s17 = ssub.s32 256, 256
      %18 = vsyncadd [#allocation3], %s17
      %s19 = sshll.u32 [#allocation2], 4
      %s20 = int_to_ptr.vmem [resolvable:$true] %s19
      %25 = dma.hbm_to_vmem [thread:$0]  %s0, 256, %s20, [#allocation3], 128, 128, 8
    $region5: #{cnn_forward_packed.1} parent=1 // pred_fallthru
      _
    // Predicated region
    $region6: #{cnn_forward_packed.1} parent=1 // pred_check
      _
    $region7: #{cnn_forward_packed.1} parent=1 // pred_check_branch
      %27 = sbr.rel (0) target = $region9
    $region8: #{cnn_forward_packed.1} parent=1 // pred_region
      %s29 = ssub.s32 8192, 8192
      %30 = vsyncadd [#allocation5], %s29
      %s31 = sshll.u32 [#allocation4], 4
      %s32 = int_to_ptr.vmem [resolvable:$true] %s31
      %37 = dma.hbm_to_vmem [thread:$0]  %s1, 8192, %s32, [#allocation5], 1024, 1024, 64
    $region9: #{cnn_forward_packed.1} parent=1 // pred_fallthru
      _
    // Predicated region
    $region10: #{cnn_forward_packed.1} parent=1 // pred_check
      _
    $region11: #{cnn_forward_packed.1} parent=1 // pred_check_branch
      %39 = sbr.rel (0) target = $region13
    $region12: #{cnn_forward_packed.1} parent=1 // pred_region
      %s41 = ssub.s32 65536, 65536
      %42 = vsyncadd [#allocation5], %s41
      %s43 = sshll.u32 [#allocation6], 4
      %s44 = int_to_ptr.vmem [resolvable:$true] %s43
      %49 = dma.hbm_to_vmem [thread:$0]  %s2, 65536, %s44, [#allocation5], 1024, 1024, 64
    $region13: #{cnn_forward_packed.1} parent=1 // pred_fallthru
      _
    // Predicated region
    $region14: #{cnn_forward_packed.1} parent=1 // pred_check
      _
    $region15: #{cnn_forward_packed.1} parent=1 // pred_check_branch
      %51 = sbr.rel (0) target = $region17
    $region16: #{cnn_forward_packed.1} parent=1 // pred_region
      %s53 = ssub.s32 128, 128
      %54 = vsyncadd [#allocation8], %s53
      %s56 = sshll.u32 [#allocation7], 4
      %s57 = int_to_ptr.vmem [resolvable:$true] %s56
      %59 = dma.hbm_to_vmem [thread:$0]  %s3, 128, %s57, [#allocation8]
    $region17: #{cnn_forward_packed.1} parent=1 // pred_fallthru
      _
    // Predicated region
    $region18: #{cnn_forward_packed.1} parent=1 // pred_check
      _
    $region19: #{cnn_forward_packed.1} parent=1 // pred_check_branch
      %61 = sbr.rel (0) target = $region21
    $region20: #{cnn_forward_packed.1} parent=1 // pred_region
      _
    $region21: #{cnn_forward_packed.1} parent=1 // pred_fallthru
      _
    // Predicated region
    $region22: #{cnn_forward_packed.1} parent=1 // pred_check
      _
    $region23: #{cnn_forward_packed.1} parent=1 // pred_check_branch
      %63 = sbr.rel (0) target = $region25
    $region24: #{cnn_forward_packed.1} parent=1 // pred_region
      %s65 = ssub.s32 64, 64
      %66 = vsyncadd [#allocation8], %s65
      %s68 = sshll.u32 [#allocation9], 4
      %s69 = int_to_ptr.vmem [resolvable:$true] %s68
      %71 = dma.hbm_to_vmem [thread:$0]  %s5, 64, %s69, [#allocation8]
    $region25: #{cnn_forward_packed.1} parent=1 // pred_fallthru
      _
    // Predicated region
    $region26: #{cnn_forward_packed.1} parent=1 // pred_check
      _
    $region27: #{cnn_forward_packed.1} parent=1 // pred_check_branch
      %73 = sbr.rel (0) target = $region29
    $region28: #{cnn_forward_packed.1} parent=1 // pred_region
      %74 = dma.done [#allocation3], 256
    $region29: #{cnn_forward_packed.1} parent=1 // pred_fallthru
      _
    // Predicated region
    $region30: #{cnn_forward_packed.1} parent=1 // pred_check
      _
    $region31: #{cnn_forward_packed.1} parent=1 // pred_check_branch
      %76 = sbr.rel (0) target = $region33
    $region32: #{cnn_forward_packed.1} parent=1 // pred_region
      %77 = dma.done [#allocation5], 8192
    $region33: #{cnn_forward_packed.1} parent=1 // pred_fallthru
      _
    // Predicated region
    $region34: #{cnn_forward_packed.1} parent=1 // pred_check
      _
    $region35: #{cnn_forward_packed.1} parent=1 // pred_check_branch
      %79 = sbr.rel (0) target = $region37
    $region36: #{cnn_forward_packed.1} parent=1 // pred_region
      %80 = dma.done [#allocation5], 65536
    $region37: #{cnn_forward_packed.1} parent=1 // pred_fallthru
      _
    // Predicated region
    $region38: #{cnn_forward_packed.1} parent=1 // pred_check
      _
    $region39: #{cnn_forward_packed.1} parent=1 // pred_check_branch
      %82 = sbr.rel (0) target = $region41
    $region40: #{cnn_forward_packed.1} parent=1 // pred_region
      %83 = dma.done [#allocation8], 128
    $region41: #{cnn_forward_packed.1} parent=1 // pred_fallthru
      _
    // Predicated region
    $region42: #{cnn_forward_packed.1} parent=1 // pred_check
      _
    $region43: #{cnn_forward_packed.1} parent=1 // pred_check_branch
      %85 = sbr.rel (0) target = $region45
    $region44: #{cnn_forward_packed.1} parent=1 // pred_region
      %86 = dma.done [#allocation8], 64
    $region45: #{cnn_forward_packed.1} parent=1 // pred_fallthru
      _
    %v87 = vld [vmem:[#allocation2] sm:$0xff]
    %v88 = vld [vmem:[#allocation2 + $0x8] sm:$0xff]
    %v89 = vld [vmem:[#allocation7] sm:$0xff]
    %v90 = vld [vmem:[#allocation9] sm:$0x7]
    %v91 = vld [vmem:[#allocation4] sm:$0xff]
    %v92 = vld [vmem:[#allocation4 + $0x8] sm:$0xff]
    %v93 = vld [vmem:[#allocation4 + $0x10] sm:$0xff]
    %v94 = vld [vmem:[#allocation4 + $0x18] sm:$0xff]
    %v95 = vld [vmem:[#allocation4 + $0x20] sm:$0xff]
    %v96 = vld [vmem:[#allocation4 + $0x28] sm:$0xff]
    %v97 = vld [vmem:[#allocation4 + $0x30] sm:$0xff]
    %v98 = vld [vmem:[#allocation4 + $0x38] sm:$0xff]
    %v99 = vld [vmem:[#allocation4 + $0x40] sm:$0xff]
    %v100 = vld [vmem:[#allocation4 + $0x48] sm:$0xff]
    %v101 = vld [vmem:[#allocation4 + $0x50] sm:$0xff]
    %v102 = vld [vmem:[#allocation4 + $0x58] sm:$0xff]
    %v103 = vld [vmem:[#allocation4 + $0x60] sm:$0xff]
    %v104 = vld [vmem:[#allocation4 + $0x68] sm:$0xff]
    %v105 = vld [vmem:[#allocation4 + $0x70] sm:$0xff]
    %v106 = vld [vmem:[#allocation4 + $0x78] sm:$0xff]
    %v107 = vld [vmem:[#allocation4 + $0x80] sm:$0xff]
    %v108 = vld [vmem:[#allocation4 + $0x88] sm:$0xff]
    %v109 = vld [vmem:[#allocation4 + $0x90] sm:$0xff]
    %v110 = vld [vmem:[#allocation4 + $0x98] sm:$0xff]
    %v111 = vld [vmem:[#allocation4 + $0xa0] sm:$0xff]
    %v112 = vld [vmem:[#allocation4 + $0xa8] sm:$0xff]
    %v113 = vld [vmem:[#allocation4 + $0xb0] sm:$0xff]
    %v114 = vld [vmem:[#allocation4 + $0xb8] sm:$0xff]
    %v115 = vld [vmem:[#allocation4 + $0xc0] sm:$0xff]
    %v116 = vld [vmem:[#allocation4 + $0xc8] sm:$0xff]
    %v117 = vld [vmem:[#allocation4 + $0xd0] sm:$0xff]
    %v118 = vld [vmem:[#allocation4 + $0xd8] sm:$0xff]
    %v119 = vld [vmem:[#allocation4 + $0xe0] sm:$0xff]
    %v120 = vld [vmem:[#allocation4 + $0xe8] sm:$0xff]
    %v121 = vld [vmem:[#allocation4 + $0xf0] sm:$0xff]
    %v122 = vld [vmem:[#allocation4 + $0xf8] sm:$0xff]
    %v123 = vld [vmem:[#allocation4 + $0x100] sm:$0xff]
    %v124 = vld [vmem:[#allocation4 + $0x108] sm:$0xff]
    %v125 = vld [vmem:[#allocation4 + $0x110] sm:$0xff]
    %v126 = vld [vmem:[#allocation4 + $0x118] sm:$0xff]
    %v127 = vld [vmem:[#allocation4 + $0x120] sm:$0xff]
    %v128 = vld [vmem:[#allocation4 + $0x128] sm:$0xff]
    %v129 = vld [vmem:[#allocation4 + $0x130] sm:$0xff]
    %v130 = vld [vmem:[#allocation4 + $0x138] sm:$0xff]
    %v131 = vld [vmem:[#allocation4 + $0x140] sm:$0xff]
    %v132 = vld [vmem:[#allocation4 + $0x148] sm:$0xff]
    %v133 = vld [vmem:[#allocation4 + $0x150] sm:$0xff]
    %v134 = vld [vmem:[#allocation4 + $0x158] sm:$0xff]
    %v135 = vld [vmem:[#allocation4 + $0x160] sm:$0xff]
    %v136 = vld [vmem:[#allocation4 + $0x168] sm:$0xff]
    %v137 = vld [vmem:[#allocation4 + $0x170] sm:$0xff]
    %v138 = vld [vmem:[#allocation4 + $0x178] sm:$0xff]
    %v139 = vld [vmem:[#allocation4 + $0x180] sm:$0xff]
    %v140 = vld [vmem:[#allocation4 + $0x188] sm:$0xff]
    %v141 = vld [vmem:[#allocation4 + $0x190] sm:$0xff]
    %v142 = vld [vmem:[#allocation4 + $0x198] sm:$0xff]
    %v143 = vld [vmem:[#allocation4 + $0x1a0] sm:$0xff]
    %v144 = vld [vmem:[#allocation4 + $0x1a8] sm:$0xff]
    %v145 = vld [vmem:[#allocation4 + $0x1b0] sm:$0xff]
    %v146 = vld [vmem:[#allocation4 + $0x1b8] sm:$0xff]
    %v147 = vld [vmem:[#allocation4 + $0x1c0] sm:$0xff]
    %v148 = vld [vmem:[#allocation4 + $0x1c8] sm:$0xff]
    %v149 = vld [vmem:[#allocation4 + $0x1d0] sm:$0xff]
    %v150 = vld [vmem:[#allocation4 + $0x1d8] sm:$0xff]
    %v151 = vld [vmem:[#allocation4 + $0x1e0] sm:$0xff]
    %v152 = vld [vmem:[#allocation4 + $0x1e8] sm:$0xff]
    %v153 = vld [vmem:[#allocation4 + $0x1f0] sm:$0xff]
    %v154 = vld [vmem:[#allocation4 + $0x1f8] sm:$0xff]
    %vm155 = vcmask 523264
    %v157 = vsel %vm155, %v87, 0
    %v160 = vsel %vm155, %v88, 0
    %162 = vmatprep.subr.mxu0 %v92
    %163 = vmatpush1.msra.mxu0 %v91
    %164 = vmatprep.subr.mxu0 %v100
    %165 = vmatpush1.msra.mxu0 %v99
    %166 = vmatprep.subr.mxu0 %v108
    %167 = vmatpush1.msra.mxu0 %v107
    %168 = vmatprep.subr.mxu0 %v116
    %169 = vmatpush1.msra.mxu0 %v115
    %170 = vmatprep.subr.mxu0 %v124
    %171 = vmatpush1.msra.mxu0 %v123
    %172 = vmatprep.subr.mxu0 %v132
    %173 = vmatpush1.msra.mxu0 %v131
    %174 = vmatprep.subr.mxu0 %v140
    %175 = vmatpush1.msra.mxu0 %v139
    %176 = vmatprep.subr.mxu0 %v148
    %177 = vmatpush1.msra.mxu0 %v147
    %178 = vmatprep.subr.mxu0 0.0
    %179 = vmatpush1.msra.mxu0 0.0
    %180 = vmatprep.subr.mxu0 0.0
    %181 = vmatpush1.msra.mxu0 0.0
    %182 = vmatprep.subr.mxu0 0.0
    %183 = vmatpush1.msra.mxu0 0.0
    %184 = vmatprep.subr.mxu0 0.0
    %185 = vmatpush1.msra.mxu0 0.0
    %186 = vmatprep.subr.mxu0 0.0
    %187 = vmatpush1.msra.mxu0 0.0
    %188 = vmatprep.subr.mxu0 0.0
    %189 = vmatpush1.msra.mxu0 0.0
    %190 = vmatprep.subr.mxu0 0.0
    %191 = vmatpush1.msra.mxu0 0.0
    %192 = vmatprep.subr.mxu0 0.0
    %193 = vmatpush1.msra.mxu0 0.0
    %194 = vmatprep.subr.mxu0 0.0
    %195 = vmatpush1.msra.mxu0 0.0
    %196 = vmatprep.subr.mxu0 0.0
    %197 = vmatpush1.msra.mxu0 0.0
    %198 = vmatprep.subr.mxu0 0.0
    %199 = vmatpush1.msra.mxu0 0.0
    %200 = vmatprep.subr.mxu0 0.0
    %201 = vmatpush1.msra.mxu0 0.0
    %202 = vmatprep.subr.mxu0 0.0
    %203 = vmatpush1.msra.mxu0 0.0
    %204 = vmatprep.subr.mxu0 0.0
    %205 = vmatpush1.msra.mxu0 0.0
    %206 = vmatprep.subr.mxu0 0.0
    %207 = vmatpush1.msra.mxu0 0.0
    %208 = vmatprep.subr.mxu0 0.0
    %209 = vmatpush1.msra.mxu0 0.0
    %210 = vmatprep.subr.mxu0 0.0
    %211 = vmatpush1.msra.mxu0 0.0
    %212 = vmatprep.subr.mxu0 0.0
    %213 = vmatpush1.msra.mxu0 0.0
    %214 = vmatprep.subr.mxu0 0.0
    %215 = vmatpush1.msra.mxu0 0.0
    %216 = vmatprep.subr.mxu0 0.0
    %217 = vmatpush1.msra.mxu0 0.0
    %218 = vmatprep.subr.mxu0 0.0
    %219 = vmatpush1.msra.mxu0 0.0
    %220 = vmatprep.subr.mxu0 0.0
    %221 = vmatpush1.msra.mxu0 0.0
    %222 = vmatprep.subr.mxu0 0.0
    %223 = vmatpush1.msra.mxu0 0.0
    %224 = vmatprep.subr.mxu0 0.0
    %225 = vmatpush1.msra.mxu0 0.0
    %226 = vmatprep.mubr.f32.mxu0 0.0
    %227 = vmatmul.mubr.f32.gmra.mrb[0].mxu0 %v157
    %v228 = vpop.f32.mrb[0].mxu0
    %v229 = vadd.f32 0.0, %v228
    %v230 = vpop.f32.mrb[0].mxu0
    %v231 = vadd.f32 0.0, %v230
    %232 = vmatprep.mubr.f32.mxu0 0.0
    %233 = vmatmul.mubr.f32.gmra.mrb[0].mxu0 %v160
    %v234 = vpop.f32.mrb[0].mxu0
    %v235 = vadd.f32 0.0, %v234
    %v236 = vpop.f32.mrb[0].mxu0
    %v237 = vadd.f32 0.0, %v236
    %238 = vdwg.mxu0
    %239 = vmatprep.subr.mxu0 %v94
    %240 = vmatpush1.msra.mxu0 %v93
    %241 = vmatprep.subr.mxu0 %v102
    %242 = vmatpush1.msra.mxu0 %v101
    %243 = vmatprep.subr.mxu0 %v110
    %244 = vmatpush1.msra.mxu0 %v109
    %245 = vmatprep.subr.mxu0 %v118
    %246 = vmatpush1.msra.mxu0 %v117
    %247 = vmatprep.subr.mxu0 %v126
    %248 = vmatpush1.msra.mxu0 %v125
    %249 = vmatprep.subr.mxu0 %v134
    %250 = vmatpush1.msra.mxu0 %v133
    %251 = vmatprep.subr.mxu0 %v142
    %252 = vmatpush1.msra.mxu0 %v141
    %253 = vmatprep.subr.mxu0 %v150
    %254 = vmatpush1.msra.mxu0 %v149
    %255 = vmatprep.subr.mxu0 0.0
    %256 = vmatpush1.msra.mxu0 0.0
    %257 = vmatprep.subr.mxu0 0.0
    %258 = vmatpush1.msra.mxu0 0.0
    %259 = vmatprep.subr.mxu0 0.0
    %260 = vmatpush1.msra.mxu0 0.0
    %261 = vmatprep.subr.mxu0 0.0
    %262 = vmatpush1.msra.mxu0 0.0
    %263 = vmatprep.subr.mxu0 0.0
    %264 = vmatpush1.msra.mxu0 0.0
    %265 = vmatprep.subr.mxu0 0.0
    %266 = vmatpush1.msra.mxu0 0.0
    %267 = vmatprep.subr.mxu0 0.0
    %268 = vmatpush1.msra.mxu0 0.0
    %269 = vmatprep.subr.mxu0 0.0
    %270 = vmatpush1.msra.mxu0 0.0
    %271 = vmatprep.subr.mxu0 0.0
    %272 = vmatpush1.msra.mxu0 0.0
    %273 = vmatprep.subr.mxu0 0.0
    %274 = vmatpush1.msra.mxu0 0.0
    %275 = vmatprep.subr.mxu0 0.0
    %276 = vmatpush1.msra.mxu0 0.0
    %277 = vmatprep.subr.mxu0 0.0
    %278 = vmatpush1.msra.mxu0 0.0
    %279 = vmatprep.subr.mxu0 0.0
    %280 = vmatpush1.msra.mxu0 0.0
    %281 = vmatprep.subr.mxu0 0.0
    %282 = vmatpush1.msra.mxu0 0.0
    %283 = vmatprep.subr.mxu0 0.0
    %284 = vmatpush1.msra.mxu0 0.0
    %285 = vmatprep.subr.mxu0 0.0
    %286 = vmatpush1.msra.mxu0 0.0
    %287 = vmatprep.subr.mxu0 0.0
    %288 = vmatpush1.msra.mxu0 0.0
    %289 = vmatprep.subr.mxu0 0.0
    %290 = vmatpush1.msra.mxu0 0.0
    %291 = vmatprep.subr.mxu0 0.0
    %292 = vmatpush1.msra.mxu0 0.0
    %293 = vmatprep.subr.mxu0 0.0
    %294 = vmatpush1.msra.mxu0 0.0
    %295 = vmatprep.subr.mxu0 0.0
    %296 = vmatpush1.msra.mxu0 0.0
    %297 = vmatprep.subr.mxu0 0.0
    %298 = vmatpush1.msra.mxu0 0.0
    %299 = vmatprep.subr.mxu0 0.0
    %300 = vmatpush1.msra.mxu0 0.0
    %301 = vmatprep.subr.mxu0 0.0
    %302 = vmatpush1.msra.mxu0 0.0
    %303 = vmatprep.mubr.f32.mxu0 0.0
    %304 = vmatmul.mubr.f32.gmra.mrb[0].mxu0 %v157
    %v305 = vpop.f32.mrb[0].mxu0
    %v306 = vadd.f32 0.0, %v305
    %v307 = vpop.f32.mrb[0].mxu0
    %v308 = vadd.f32 0.0, %v307
    %309 = vmatprep.mubr.f32.mxu0 0.0
    %310 = vmatmul.mubr.f32.gmra.mrb[0].mxu0 %v160
    %v311 = vpop.f32.mrb[0].mxu0
    %v312 = vadd.f32 0.0, %v311
    %v313 = vpop.f32.mrb[0].mxu0
    %v314 = vadd.f32 0.0, %v313
    %315 = vdwg.mxu0
    %316 = vmatprep.subr.mxu0 %v96
    %317 = vmatpush1.msra.mxu0 %v95
    %318 = vmatprep.subr.mxu0 %v104
    %319 = vmatpush1.msra.mxu0 %v103
    %320 = vmatprep.subr.mxu0 %v112
    %321 = vmatpush1.msra.mxu0 %v111
    %322 = vmatprep.subr.mxu0 %v120
    %323 = vmatpush1.msra.mxu0 %v119
    %324 = vmatprep.subr.mxu0 %v128
    %325 = vmatpush1.msra.mxu0 %v127
    %326 = vmatprep.subr.mxu0 %v136
    %327 = vmatpush1.msra.mxu0 %v135
    %328 = vmatprep.subr.mxu0 %v144
    %329 = vmatpush1.msra.mxu0 %v143
    %330 = vmatprep.subr.mxu0 %v152
    %331 = vmatpush1.msra.mxu0 %v151
    %332 = vmatprep.subr.mxu0 0.0
    %333 = vmatpush1.msra.mxu0 0.0
    %334 = vmatprep.subr.mxu0 0.0
    %335 = vmatpush1.msra.mxu0 0.0
    %336 = vmatprep.subr.mxu0 0.0
    %337 = vmatpush1.msra.mxu0 0.0
    %338 = vmatprep.subr.mxu0 0.0
    %339 = vmatpush1.msra.mxu0 0.0
    %340 = vmatprep.subr.mxu0 0.0
    %341 = vmatpush1.msra.mxu0 0.0
    %342 = vmatprep.subr.mxu0 0.0
    %343 = vmatpush1.msra.mxu0 0.0
    %344 = vmatprep.subr.mxu0 0.0
    %345 = vmatpush1.msra.mxu0 0.0
    %346 = vmatprep.subr.mxu0 0.0
    %347 = vmatpush1.msra.mxu0 0.0
    %348 = vmatprep.subr.mxu0 0.0
    %349 = vmatpush1.msra.mxu0 0.0
    %350 = vmatprep.subr.mxu0 0.0
    %351 = vmatpush1.msra.mxu0 0.0
    %352 = vmatprep.subr.mxu0 0.0
    %353 = vmatpush1.msra.mxu0 0.0
    %354 = vmatprep.subr.mxu0 0.0
    %355 = vmatpush1.msra.mxu0 0.0
    %356 = vmatprep.subr.mxu0 0.0
    %357 = vmatpush1.msra.mxu0 0.0
    %358 = vmatprep.subr.mxu0 0.0
    %359 = vmatpush1.msra.mxu0 0.0
    %360 = vmatprep.subr.mxu0 0.0
    %361 = vmatpush1.msra.mxu0 0.0
    %362 = vmatprep.subr.mxu0 0.0
    %363 = vmatpush1.msra.mxu0 0.0
    %364 = vmatprep.subr.mxu0 0.0
    %365 = vmatpush1.msra.mxu0 0.0
    %366 = vmatprep.subr.mxu0 0.0
    %367 = vmatpush1.msra.mxu0 0.0
    %368 = vmatprep.subr.mxu0 0.0
    %369 = vmatpush1.msra.mxu0 0.0
    %370 = vmatprep.subr.mxu0 0.0
    %371 = vmatpush1.msra.mxu0 0.0
    %372 = vmatprep.subr.mxu0 0.0
    %373 = vmatpush1.msra.mxu0 0.0
    %374 = vmatprep.subr.mxu0 0.0
    %375 = vmatpush1.msra.mxu0 0.0
    %376 = vmatprep.subr.mxu0 0.0
    %377 = vmatpush1.msra.mxu0 0.0
    %378 = vmatprep.subr.mxu0 0.0
    %379 = vmatpush1.msra.mxu0 0.0
    %380 = vmatprep.mubr.f32.mxu0 0.0
    %381 = vmatmul.mubr.f32.gmra.mrb[0].mxu0 %v157
    %v382 = vpop.f32.mrb[0].mxu0
    %v383 = vadd.f32 0.0, %v382
    %v384 = vpop.f32.mrb[0].mxu0
    %v385 = vadd.f32 0.0, %v384
    %386 = vmatprep.mubr.f32.mxu0 0.0
    %387 = vmatmul.mubr.f32.gmra.mrb[0].mxu0 %v160
    %v388 = vpop.f32.mrb[0].mxu0
    %v389 = vadd.f32 0.0, %v388
    %v390 = vpop.f32.mrb[0].mxu0
    %v391 = vadd.f32 0.0, %v390
    %392 = vdwg.mxu0
    %393 = vmatprep.subr.mxu0 %v98
    %394 = vmatpush1.msra.mxu0 %v97
    %395 = vmatprep.subr.mxu0 %v106
    %396 = vmatpush1.msra.mxu0 %v105
    %397 = vmatprep.subr.mxu0 %v114
    %398 = vmatpush1.msra.mxu0 %v113
    %399 = vmatprep.subr.mxu0 %v122
    %400 = vmatpush1.msra.mxu0 %v121
    %401 = vmatprep.subr.mxu0 %v130
    %402 = vmatpush1.msra.mxu0 %v129
    %403 = vmatprep.subr.mxu0 %v138
    %404 = vmatpush1.msra.mxu0 %v137
    %405 = vmatprep.subr.mxu0 %v146
    %406 = vmatpush1.msra.mxu0 %v145
    %407 = vmatprep.subr.mxu0 %v154
    %408 = vmatpush1.msra.mxu0 %v153
    %409 = vmatprep.subr.mxu0 0.0
    %410 = vmatpush1.msra.mxu0 0.0
    %411 = vmatprep.subr.mxu0 0.0
    %412 = vmatpush1.msra.mxu0 0.0
    %413 = vmatprep.subr.mxu0 0.0
    %414 = vmatpush1.msra.mxu0 0.0
    %415 = vmatprep.subr.mxu0 0.0
    %416 = vmatpush1.msra.mxu0 0.0
    %417 = vmatprep.subr.mxu0 0.0
    %418 = vmatpush1.msra.mxu0 0.0
    %419 = vmatprep.subr.mxu0 0.0
    %420 = vmatpush1.msra.mxu0 0.0
    %421 = vmatprep.subr.mxu0 0.0
    %422 = vmatpush1.msra.mxu0 0.0
    %423 = vmatprep.subr.mxu0 0.0
    %424 = vmatpush1.msra.mxu0 0.0
    %425 = vmatprep.subr.mxu0 0.0
    %426 = vmatpush1.msra.mxu0 0.0
    %427 = vmatprep.subr.mxu0 0.0
    %428 = vmatpush1.msra.mxu0 0.0
    %429 = vmatprep.subr.mxu0 0.0
    %430 = vmatpush1.msra.mxu0 0.0
    %431 = vmatprep.subr.mxu0 0.0
    %432 = vmatpush1.msra.mxu0 0.0
    %433 = vmatprep.subr.mxu0 0.0
    %434 = vmatpush1.msra.mxu0 0.0
    %435 = vmatprep.subr.mxu0 0.0
    %436 = vmatpush1.msra.mxu0 0.0
    %437 = vmatprep.subr.mxu0 0.0
    %438 = vmatpush1.msra.mxu0 0.0
    %439 = vmatprep.subr.mxu0 0.0
    %440 = vmatpush1.msra.mxu0 0.0
    %441 = vmatprep.subr.mxu0 0.0
    %442 = vmatpush1.msra.mxu0 0.0
    %443 = vmatprep.subr.mxu0 0.0
    %444 = vmatpush1.msra.mxu0 0.0
    %445 = vmatprep.subr.mxu0 0.0
    %446 = vmatpush1.msra.mxu0 0.0
    %447 = vmatprep.subr.mxu0 0.0
    %448 = vmatpush1.msra.mxu0 0.0
    %449 = vmatprep.subr.mxu0 0.0
    %450 = vmatpush1.msra.mxu0 0.0
    %451 = vmatprep.subr.mxu0 0.0
    %452 = vmatpush1.msra.mxu0 0.0
    %453 = vmatprep.subr.mxu0 0.0
    %454 = vmatpush1.msra.mxu0 0.0
    %455 = vmatprep.subr.mxu0 0.0
    %456 = vmatpush1.msra.mxu0 0.0
    %457 = vmatprep.mubr.f32.mxu0 0.0
    %458 = vmatmul.mubr.f32.gmra.mrb[0].mxu0 %v157
    %v459 = vpop.f32.mrb[0].mxu0
    %v460 = vadd.f32 0.0, %v459
    %v461 = vpop.f32.mrb[0].mxu0
    %v462 = vadd.f32 0.0, %v461
    %463 = vmatprep.mubr.f32.mxu0 0.0
    %464 = vmatmul.mubr.f32.gmra.mrb[0].mxu0 %v160
    %v465 = vpop.f32.mrb[0].mxu0
    %v466 = vadd.f32 0.0, %v465
    %v467 = vpop.f32.mrb[0].mxu0
    %v468 = vadd.f32 0.0, %v467
    %469 = vdwg.mxu0
    %v470 = vmax.f32 %v229, %v383
    %v471 = vmax.f32 %v231, %v385
    %v472 = vmax.f32 %v306, %v460
    %v473 = vmax.f32 %v308, %v462
    %v474 = vmax.f32 %v235, %v389
    %v475 = vmax.f32 %v237, %v391
    %v476 = vmax.f32 %v312, %v466
    %v477 = vmax.f32 %v314, %v468
    %v479 = vlaneseq
    %v480 = vshrl.u32 %v479, 7
    %v481 = vsub.s32 0, %v480
    %v482 = vrot.slane %v89, %v481
    %v483 = vlaneseq
    %v484 = vshrl.u32 %v483, 7
    %v485 = vsub.s32 2, %v484
    %v486 = vrot.slane %v89, %v485
    %v487 = vlaneseq
    %v488 = vshrl.u32 %v487, 7
    %v489 = vsub.s32 4, %v488
    %v490 = vrot.slane %v89, %v489
    %v491 = vlaneseq
    %v492 = vshrl.u32 %v491, 7
    %v493 = vsub.s32 6, %v492
    %v494 = vrot.slane %v89, %v493
    %v499 = vlaneseq
    %v500 = vshrl.u32 %v499, 7
    %v501 = vsub.s32 0, %v500
    %v502 = vrot.slane %v482, %v501
    %v503 = vlaneseq
    %v504 = vshrl.u32 %v503, 7
    %v505 = vsub.s32 0, %v504
    %v506 = vrot.slane %v486, %v505
    %v507 = vlaneseq
    %v508 = vshrl.u32 %v507, 7
    %v509 = vsub.s32 0, %v508
    %v510 = vrot.slane %v490, %v509
    %v511 = vlaneseq
    %v512 = vshrl.u32 %v511, 7
    %v513 = vsub.s32 0, %v512
    %v514 = vrot.slane %v494, %v513
    %v515 = vadd.f32 %v470, %v502
    %v516 = vadd.f32 %v471, %v506
    %v517 = vadd.f32 %v472, %v510
    %v518 = vadd.f32 %v473, %v514
    %v519 = vadd.f32 %v474, %v502
    %v520 = vadd.f32 %v475, %v506
    %v521 = vadd.f32 %v476, %v510
    %v522 = vadd.f32 %v477, %v514
    %v523 = vmax.f32 %v515, 0.0
    %v524 = vmax.f32 %v516, 0.0
    %v525 = vmax.f32 %v517, 0.0
    %v526 = vmax.f32 %v518, 0.0
    %v527 = vmax.f32 %v519, 0.0
    %v528 = vmax.f32 %v520, 0.0
    %v529 = vmax.f32 %v521, 0.0
    %v530 = vmax.f32 %v522, 0.0
    %v531 = vld [vmem:[#allocation6] sm:$0xff]
    %v532 = vld [vmem:[#allocation6 + $0x8] sm:$0xff]
    %v533 = vld [vmem:[#allocation6 + $0x10] sm:$0xff]
    %v534 = vld [vmem:[#allocation6 + $0x18] sm:$0xff]
    %v535 = vld [vmem:[#allocation6 + $0x20] sm:$0xff]
    %v536 = vld [vmem:[#allocation6 + $0x28] sm:$0xff]
    %v537 = vld [vmem:[#allocation6 + $0x30] sm:$0xff]
    %v538 = vld [vmem:[#allocation6 + $0x38] sm:$0xff]
    %v539 = vld [vmem:[#allocation6 + $0x40] sm:$0xff]
    %v540 = vld [vmem:[#allocation6 + $0x48] sm:$0xff]
    %v541 = vld [vmem:[#allocation6 + $0x50] sm:$0xff]
    %v542 = vld [vmem:[#allocation6 + $0x58] sm:$0xff]
    %v543 = vld [vmem:[#allocation6 + $0x60] sm:$0xff]
    %v544 = vld [vmem:[#allocation6 + $0x68] sm:$0xff]
    %v545 = vld [vmem:[#allocation6 + $0x70] sm:$0xff]
    %v546 = vld [vmem:[#allocation6 + $0x78] sm:$0xff]
    %v547 = vld [vmem:[#allocation6 + $0x80] sm:$0xff]
    %v548 = vld [vmem:[#allocation6 + $0x88] sm:$0xff]
    %v549 = vld [vmem:[#allocation6 + $0x90] sm:$0xff]
    %v550 = vld [vmem:[#allocation6 + $0x98] sm:$0xff]
    %v551 = vld [vmem:[#allocation6 + $0xa0] sm:$0xff]
    %v552 = vld [vmem:[#allocation6 + $0xa8] sm:$0xff]
    %v553 = vld [vmem:[#allocation6 + $0xb0] sm:$0xff]
    %v554 = vld [vmem:[#allocation6 + $0xb8] sm:$0xff]
    %v555 = vld [vmem:[#allocation6 + $0xc0] sm:$0xff]
    %v556 = vld [vmem:[#allocation6 + $0xc8] sm:$0xff]
    %v557 = vld [vmem:[#allocation6 + $0xd0] sm:$0xff]
    %v558 = vld [vmem:[#allocation6 + $0xd8] sm:$0xff]
    %v559 = vld [vmem:[#allocation6 + $0xe0] sm:$0xff]
    %v560 = vld [vmem:[#allocation6 + $0xe8] sm:$0xff]
    %v561 = vld [vmem:[#allocation6 + $0xf0] sm:$0xff]
    %v562 = vld [vmem:[#allocation6 + $0xf8] sm:$0xff]
    %v563 = vld [vmem:[#allocation6 + $0x100] sm:$0xff]
    %v564 = vld [vmem:[#allocation6 + $0x108] sm:$0xff]
    %v565 = vld [vmem:[#allocation6 + $0x110] sm:$0xff]
    %v566 = vld [vmem:[#allocation6 + $0x118] sm:$0xff]
    %v567 = vld [vmem:[#allocation6 + $0x120] sm:$0xff]
    %v568 = vld [vmem:[#allocation6 + $0x128] sm:$0xff]
    %v569 = vld [vmem:[#allocation6 + $0x130] sm:$0xff]
    %v570 = vld [vmem:[#allocation6 + $0x138] sm:$0xff]
    %v571 = vld [vmem:[#allocation6 + $0x140] sm:$0xff]
    %v572 = vld [vmem:[#allocation6 + $0x148] sm:$0xff]
    %v573 = vld [vmem:[#allocation6 + $0x150] sm:$0xff]
    %v574 = vld [vmem:[#allocation6 + $0x158] sm:$0xff]
    %v575 = vld [vmem:[#allocation6 + $0x160] sm:$0xff]
    %v576 = vld [vmem:[#allocation6 + $0x168] sm:$0xff]
    %v577 = vld [vmem:[#allocation6 + $0x170] sm:$0xff]
    %v578 = vld [vmem:[#allocation6 + $0x178] sm:$0xff]
    %v579 = vld [vmem:[#allocation6 + $0x180] sm:$0xff]
    %v580 = vld [vmem:[#allocation6 + $0x188] sm:$0xff]
    %v581 = vld [vmem:[#allocation6 + $0x190] sm:$0xff]
    %v582 = vld [vmem:[#allocation6 + $0x198] sm:$0xff]
    %v583 = vld [vmem:[#allocation6 + $0x1a0] sm:$0xff]
    %v584 = vld [vmem:[#allocation6 + $0x1a8] sm:$0xff]
    %v585 = vld [vmem:[#allocation6 + $0x1b0] sm:$0xff]
    %v586 = vld [vmem:[#allocation6 + $0x1b8] sm:$0xff]
    %v587 = vld [vmem:[#allocation6 + $0x1c0] sm:$0xff]
    %v588 = vld [vmem:[#allocation6 + $0x1c8] sm:$0xff]
    %v589 = vld [vmem:[#allocation6 + $0x1d0] sm:$0xff]
    %v590 = vld [vmem:[#allocation6 + $0x1d8] sm:$0xff]
    %v591 = vld [vmem:[#allocation6 + $0x1e0] sm:$0xff]
    %v592 = vld [vmem:[#allocation6 + $0x1e8] sm:$0xff]
    %v593 = vld [vmem:[#allocation6 + $0x1f0] sm:$0xff]
    %v594 = vld [vmem:[#allocation6 + $0x1f8] sm:$0xff]
    %v595 = vld [vmem:[#allocation6 + $0x200] sm:$0xff]
    %v596 = vld [vmem:[#allocation6 + $0x208] sm:$0xff]
    %v597 = vld [vmem:[#allocation6 + $0x210] sm:$0xff]
    %v598 = vld [vmem:[#allocation6 + $0x218] sm:$0xff]
    %v599 = vld [vmem:[#allocation6 + $0x220] sm:$0xff]
    %v600 = vld [vmem:[#allocation6 + $0x228] sm:$0xff]
    %v601 = vld [vmem:[#allocation6 + $0x230] sm:$0xff]
    %v602 = vld [vmem:[#allocation6 + $0x238] sm:$0xff]
    %v603 = vld [vmem:[#allocation6 + $0x240] sm:$0xff]
    %v604 = vld [vmem:[#allocation6 + $0x248] sm:$0xff]
    %v605 = vld [vmem:[#allocation6 + $0x250] sm:$0xff]
    %v606 = vld [vmem:[#allocation6 + $0x258] sm:$0xff]
    %v607 = vld [vmem:[#allocation6 + $0x260] sm:$0xff]
    %v608 = vld [vmem:[#allocation6 + $0x268] sm:$0xff]
    %v609 = vld [vmem:[#allocation6 + $0x270] sm:$0xff]
    %v610 = vld [vmem:[#allocation6 + $0x278] sm:$0xff]
    %v611 = vld [vmem:[#allocation6 + $0x280] sm:$0xff]
    %v612 = vld [vmem:[#allocation6 + $0x288] sm:$0xff]
    %v613 = vld [vmem:[#allocation6 + $0x290] sm:$0xff]
    %v614 = vld [vmem:[#allocation6 + $0x298] sm:$0xff]
    %v615 = vld [vmem:[#allocation6 + $0x2a0] sm:$0xff]
    %v616 = vld [vmem:[#allocation6 + $0x2a8] sm:$0xff]
    %v617 = vld [vmem:[#allocation6 + $0x2b0] sm:$0xff]
    %v618 = vld [vmem:[#allocation6 + $0x2b8] sm:$0xff]
    %v619 = vld [vmem:[#allocation6 + $0x2c0] sm:$0xff]
    %v620 = vld [vmem:[#allocation6 + $0x2c8] sm:$0xff]
    %v621 = vld [vmem:[#allocation6 + $0x2d0] sm:$0xff]
    %v622 = vld [vmem:[#allocation6 + $0x2d8] sm:$0xff]
    %v623 = vld [vmem:[#allocation6 + $0x2e0] sm:$0xff]
    %v624 = vld [vmem:[#allocation6 + $0x2e8] sm:$0xff]
    %v625 = vld [vmem:[#allocation6 + $0x2f0] sm:$0xff]
    %v626 = vld [vmem:[#allocation6 + $0x2f8] sm:$0xff]
    %v627 = vld [vmem:[#allocation6 + $0x300] sm:$0xff]
    %v628 = vld [vmem:[#allocation6 + $0x308] sm:$0xff]
    %v629 = vld [vmem:[#allocation6 + $0x310] sm:$0xff]
    %v630 = vld [vmem:[#allocation6 + $0x318] sm:$0xff]
    %v631 = vld [vmem:[#allocation6 + $0x320] sm:$0xff]
    %v632 = vld [vmem:[#allocation6 + $0x328] sm:$0xff]
    %v633 = vld [vmem:[#allocation6 + $0x330] sm:$0xff]
    %v634 = vld [vmem:[#allocation6 + $0x338] sm:$0xff]
    %v635 = vld [vmem:[#allocation6 + $0x340] sm:$0xff]
    %v636 = vld [vmem:[#allocation6 + $0x348] sm:$0xff]
    %v637 = vld [vmem:[#allocation6 + $0x350] sm:$0xff]
    %v638 = vld [vmem:[#allocation6 + $0x358] sm:$0xff]
    %v639 = vld [vmem:[#allocation6 + $0x360] sm:$0xff]
    %v640 = vld [vmem:[#allocation6 + $0x368] sm:$0xff]
    %v641 = vld [vmem:[#allocation6 + $0x370] sm:$0xff]
    %v642 = vld [vmem:[#allocation6 + $0x378] sm:$0xff]
    %v643 = vld [vmem:[#allocation6 + $0x380] sm:$0xff]
    %v644 = vld [vmem:[#allocation6 + $0x388] sm:$0xff]
    %v645 = vld [vmem:[#allocation6 + $0x390] sm:$0xff]
    %v646 = vld [vmem:[#allocation6 + $0x398] sm:$0xff]
    %v647 = vld [vmem:[#allocation6 + $0x3a0] sm:$0xff]
    %v648 = vld [vmem:[#allocation6 + $0x3a8] sm:$0xff]
    %v649 = vld [vmem:[#allocation6 + $0x3b0] sm:$0xff]
    %v650 = vld [vmem:[#allocation6 + $0x3b8] sm:$0xff]
    %v651 = vld [vmem:[#allocation6 + $0x3c0] sm:$0xff]
    %v652 = vld [vmem:[#allocation6 + $0x3c8] sm:$0xff]
    %v653 = vld [vmem:[#allocation6 + $0x3d0] sm:$0xff]
    %v654 = vld [vmem:[#allocation6 + $0x3d8] sm:$0xff]
    %v655 = vld [vmem:[#allocation6 + $0x3e0] sm:$0xff]
    %v656 = vld [vmem:[#allocation6 + $0x3e8] sm:$0xff]
    %v657 = vld [vmem:[#allocation6 + $0x3f0] sm:$0xff]
    %v658 = vld [vmem:[#allocation6 + $0x3f8] sm:$0xff]
    %v659 = vld [vmem:[#allocation6 + $0x400] sm:$0xff]
    %v660 = vld [vmem:[#allocation6 + $0x408] sm:$0xff]
    %v661 = vld [vmem:[#allocation6 + $0x410] sm:$0xff]
    %v662 = vld [vmem:[#allocation6 + $0x418] sm:$0xff]
    %v663 = vld [vmem:[#allocation6 + $0x420] sm:$0xff]
    %v664 = vld [vmem:[#allocation6 + $0x428] sm:$0xff]
    %v665 = vld [vmem:[#allocation6 + $0x430] sm:$0xff]
    %v666 = vld [vmem:[#allocation6 + $0x438] sm:$0xff]
    %v667 = vld [vmem:[#allocation6 + $0x440] sm:$0xff]
    %v668 = vld [vmem:[#allocation6 + $0x448] sm:$0xff]
    %v669 = vld [vmem:[#allocation6 + $0x450] sm:$0xff]
    %v670 = vld [vmem:[#allocation6 + $0x458] sm:$0xff]
    %v671 = vld [vmem:[#allocation6 + $0x460] sm:$0xff]
    %v672 = vld [vmem:[#allocation6 + $0x468] sm:$0xff]
    %v673 = vld [vmem:[#allocation6 + $0x470] sm:$0xff]
    %v674 = vld [vmem:[#allocation6 + $0x478] sm:$0xff]
    %v675 = vld [vmem:[#allocation6 + $0x480] sm:$0xff]
    %v676 = vld [vmem:[#allocation6 + $0x488] sm:$0xff]
    %v677 = vld [vmem:[#allocation6 + $0x490] sm:$0xff]
    %v678 = vld [vmem:[#allocation6 + $0x498] sm:$0xff]
    %v679 = vld [vmem:[#allocation6 + $0x4a0] sm:$0xff]
    %v680 = vld [vmem:[#allocation6 + $0x4a8] sm:$0xff]
    %v681 = vld [vmem:[#allocation6 + $0x4b0] sm:$0xff]
    %v682 = vld [vmem:[#allocation6 + $0x4b8] sm:$0xff]
    %v683 = vld [vmem:[#allocation6 + $0x4c0] sm:$0xff]
    %v684 = vld [vmem:[#allocation6 + $0x4c8] sm:$0xff]
    %v685 = vld [vmem:[#allocation6 + $0x4d0] sm:$0xff]
    %v686 = vld [vmem:[#allocation6 + $0x4d8] sm:$0xff]
    %v687 = vld [vmem:[#allocation6 + $0x4e0] sm:$0xff]
    %v688 = vld [vmem:[#allocation6 + $0x4e8] sm:$0xff]
    %v689 = vld [vmem:[#allocation6 + $0x4f0] sm:$0xff]
    %v690 = vld [vmem:[#allocation6 + $0x4f8] sm:$0xff]
    %v691 = vld [vmem:[#allocation6 + $0x500] sm:$0xff]
    %v692 = vld [vmem:[#allocation6 + $0x508] sm:$0xff]
    %v693 = vld [vmem:[#allocation6 + $0x510] sm:$0xff]
    %v694 = vld [vmem:[#allocation6 + $0x518] sm:$0xff]
    %v695 = vld [vmem:[#allocation6 + $0x520] sm:$0xff]
    %v696 = vld [vmem:[#allocation6 + $0x528] sm:$0xff]
    %v697 = vld [vmem:[#allocation6 + $0x530] sm:$0xff]
    %v698 = vld [vmem:[#allocation6 + $0x538] sm:$0xff]
    %v699 = vld [vmem:[#allocation6 + $0x540] sm:$0xff]
    %v700 = vld [vmem:[#allocation6 + $0x548] sm:$0xff]
    %v701 = vld [vmem:[#allocation6 + $0x550] sm:$0xff]
    %v702 = vld [vmem:[#allocation6 + $0x558] sm:$0xff]
    %v703 = vld [vmem:[#allocation6 + $0x560] sm:$0xff]
    %v704 = vld [vmem:[#allocation6 + $0x568] sm:$0xff]
    %v705 = vld [vmem:[#allocation6 + $0x570] sm:$0xff]
    %v706 = vld [vmem:[#allocation6 + $0x578] sm:$0xff]
    %v707 = vld [vmem:[#allocation6 + $0x580] sm:$0xff]
    %v708 = vld [vmem:[#allocation6 + $0x588] sm:$0xff]
    %v709 = vld [vmem:[#allocation6 + $0x590] sm:$0xff]
    %v710 = vld [vmem:[#allocation6 + $0x598] sm:$0xff]
    %v711 = vld [vmem:[#allocation6 + $0x5a0] sm:$0xff]
    %v712 = vld [vmem:[#allocation6 + $0x5a8] sm:$0xff]
    %v713 = vld [vmem:[#allocation6 + $0x5b0] sm:$0xff]
    %v714 = vld [vmem:[#allocation6 + $0x5b8] sm:$0xff]
    %v715 = vld [vmem:[#allocation6 + $0x5c0] sm:$0xff]
    %v716 = vld [vmem:[#allocation6 + $0x5c8] sm:$0xff]
    %v717 = vld [vmem:[#allocation6 + $0x5d0] sm:$0xff]
    %v718 = vld [vmem:[#allocation6 + $0x5d8] sm:$0xff]
    %v719 = vld [vmem:[#allocation6 + $0x5e0] sm:$0xff]
    %v720 = vld [vmem:[#allocation6 + $0x5e8] sm:$0xff]
    %v721 = vld [vmem:[#allocation6 + $0x5f0] sm:$0xff]
    %v722 = vld [vmem:[#allocation6 + $0x5f8] sm:$0xff]
    %v723 = vld [vmem:[#allocation6 + $0x600] sm:$0xff]
    %v724 = vld [vmem:[#allocation6 + $0x608] sm:$0xff]
    %v725 = vld [vmem:[#allocation6 + $0x610] sm:$0xff]
    %v726 = vld [vmem:[#allocation6 + $0x618] sm:$0xff]
    %v727 = vld [vmem:[#allocation6 + $0x620] sm:$0xff]
    %v728 = vld [vmem:[#allocation6 + $0x628] sm:$0xff]
    %v729 = vld [vmem:[#allocation6 + $0x630] sm:$0xff]
    %v730 = vld [vmem:[#allocation6 + $0x638] sm:$0xff]
    %v731 = vld [vmem:[#allocation6 + $0x640] sm:$0xff]
    %v732 = vld [vmem:[#allocation6 + $0x648] sm:$0xff]
    %v733 = vld [vmem:[#allocation6 + $0x650] sm:$0xff]
    %v734 = vld [vmem:[#allocation6 + $0x658] sm:$0xff]
    %v735 = vld [vmem:[#allocation6 + $0x660] sm:$0xff]
    %v736 = vld [vmem:[#allocation6 + $0x668] sm:$0xff]
    %v737 = vld [vmem:[#allocation6 + $0x670] sm:$0xff]
    %v738 = vld [vmem:[#allocation6 + $0x678] sm:$0xff]
    %v739 = vld [vmem:[#allocation6 + $0x680] sm:$0xff]
    %v740 = vld [vmem:[#allocation6 + $0x688] sm:$0xff]
    %v741 = vld [vmem:[#allocation6 + $0x690] sm:$0xff]
    %v742 = vld [vmem:[#allocation6 + $0x698] sm:$0xff]
    %v743 = vld [vmem:[#allocation6 + $0x6a0] sm:$0xff]
    %v744 = vld [vmem:[#allocation6 + $0x6a8] sm:$0xff]
    %v745 = vld [vmem:[#allocation6 + $0x6b0] sm:$0xff]
    %v746 = vld [vmem:[#allocation6 + $0x6b8] sm:$0xff]
    %v747 = vld [vmem:[#allocation6 + $0x6c0] sm:$0xff]
    %v748 = vld [vmem:[#allocation6 + $0x6c8] sm:$0xff]
    %v749 = vld [vmem:[#allocation6 + $0x6d0] sm:$0xff]
    %v750 = vld [vmem:[#allocation6 + $0x6d8] sm:$0xff]
    %v751 = vld [vmem:[#allocation6 + $0x6e0] sm:$0xff]
    %v752 = vld [vmem:[#allocation6 + $0x6e8] sm:$0xff]
    %v753 = vld [vmem:[#allocation6 + $0x6f0] sm:$0xff]
    %v754 = vld [vmem:[#allocation6 + $0x6f8] sm:$0xff]
    %v755 = vld [vmem:[#allocation6 + $0x700] sm:$0xff]
    %v756 = vld [vmem:[#allocation6 + $0x708] sm:$0xff]
    %v757 = vld [vmem:[#allocation6 + $0x710] sm:$0xff]
    %v758 = vld [vmem:[#allocation6 + $0x718] sm:$0xff]
    %v759 = vld [vmem:[#allocation6 + $0x720] sm:$0xff]
    %v760 = vld [vmem:[#allocation6 + $0x728] sm:$0xff]
    %v761 = vld [vmem:[#allocation6 + $0x730] sm:$0xff]
    %v762 = vld [vmem:[#allocation6 + $0x738] sm:$0xff]
    %v763 = vld [vmem:[#allocation6 + $0x740] sm:$0xff]
    %v764 = vld [vmem:[#allocation6 + $0x748] sm:$0xff]
    %v765 = vld [vmem:[#allocation6 + $0x750] sm:$0xff]
    %v766 = vld [vmem:[#allocation6 + $0x758] sm:$0xff]
    %v767 = vld [vmem:[#allocation6 + $0x760] sm:$0xff]
    %v768 = vld [vmem:[#allocation6 + $0x768] sm:$0xff]
    %v769 = vld [vmem:[#allocation6 + $0x770] sm:$0xff]
    %v770 = vld [vmem:[#allocation6 + $0x778] sm:$0xff]
    %v771 = vld [vmem:[#allocation6 + $0x780] sm:$0xff]
    %v772 = vld [vmem:[#allocation6 + $0x788] sm:$0xff]
    %v773 = vld [vmem:[#allocation6 + $0x790] sm:$0xff]
    %v774 = vld [vmem:[#allocation6 + $0x798] sm:$0xff]
    %v775 = vld [vmem:[#allocation6 + $0x7a0] sm:$0xff]
    %v776 = vld [vmem:[#allocation6 + $0x7a8] sm:$0xff]
    %v777 = vld [vmem:[#allocation6 + $0x7b0] sm:$0xff]
    %v778 = vld [vmem:[#allocation6 + $0x7b8] sm:$0xff]
    %v779 = vld [vmem:[#allocation6 + $0x7c0] sm:$0xff]
    %v780 = vld [vmem:[#allocation6 + $0x7c8] sm:$0xff]
    %v781 = vld [vmem:[#allocation6 + $0x7d0] sm:$0xff]
    %v782 = vld [vmem:[#allocation6 + $0x7d8] sm:$0xff]
    %v783 = vld [vmem:[#allocation6 + $0x7e0] sm:$0xff]
    %v784 = vld [vmem:[#allocation6 + $0x7e8] sm:$0xff]
    %v785 = vld [vmem:[#allocation6 + $0x7f0] sm:$0xff]
    %v786 = vld [vmem:[#allocation6 + $0x7f8] sm:$0xff]
    %v787 = vld [vmem:[#allocation6 + $0x800] sm:$0xff]
    %v788 = vld [vmem:[#allocation6 + $0x808] sm:$0xff]
    %v789 = vld [vmem:[#allocation6 + $0x810] sm:$0xff]
    %v790 = vld [vmem:[#allocation6 + $0x818] sm:$0xff]
    %v791 = vld [vmem:[#allocation6 + $0x820] sm:$0xff]
    %v792 = vld [vmem:[#allocation6 + $0x828] sm:$0xff]
    %v793 = vld [vmem:[#allocation6 + $0x830] sm:$0xff]
    %v794 = vld [vmem:[#allocation6 + $0x838] sm:$0xff]
    %v795 = vld [vmem:[#allocation6 + $0x840] sm:$0xff]
    %v796 = vld [vmem:[#allocation6 + $0x848] sm:$0xff]
    %v797 = vld [vmem:[#allocation6 + $0x850] sm:$0xff]
    %v798 = vld [vmem:[#allocation6 + $0x858] sm:$0xff]
    %v799 = vld [vmem:[#allocation6 + $0x860] sm:$0xff]
    %v800 = vld [vmem:[#allocation6 + $0x868] sm:$0xff]
    %v801 = vld [vmem:[#allocation6 + $0x870] sm:$0xff]
    %v802 = vld [vmem:[#allocation6 + $0x878] sm:$0xff]
    %v803 = vld [vmem:[#allocation6 + $0x880] sm:$0xff]
    %v804 = vld [vmem:[#allocation6 + $0x888] sm:$0xff]
    %v805 = vld [vmem:[#allocation6 + $0x890] sm:$0xff]
    %v806 = vld [vmem:[#allocation6 + $0x898] sm:$0xff]
    %v807 = vld [vmem:[#allocation6 + $0x8a0] sm:$0xff]
    %v808 = vld [vmem:[#allocation6 + $0x8a8] sm:$0xff]
    %v809 = vld [vmem:[#allocation6 + $0x8b0] sm:$0xff]
    %v810 = vld [vmem:[#allocation6 + $0x8b8] sm:$0xff]
    %v811 = vld [vmem:[#allocation6 + $0x8c0] sm:$0xff]
    %v812 = vld [vmem:[#allocation6 + $0x8c8] sm:$0xff]
    %v813 = vld [vmem:[#allocation6 + $0x8d0] sm:$0xff]
    %v814 = vld [vmem:[#allocation6 + $0x8d8] sm:$0xff]
    %v815 = vld [vmem:[#allocation6 + $0x8e0] sm:$0xff]
    %v816 = vld [vmem:[#allocation6 + $0x8e8] sm:$0xff]
    %v817 = vld [vmem:[#allocation6 + $0x8f0] sm:$0xff]
    %v818 = vld [vmem:[#allocation6 + $0x8f8] sm:$0xff]
    %v819 = vld [vmem:[#allocation6 + $0x900] sm:$0xff]
    %v820 = vld [vmem:[#allocation6 + $0x908] sm:$0xff]
    %v821 = vld [vmem:[#allocation6 + $0x910] sm:$0xff]
    %v822 = vld [vmem:[#allocation6 + $0x918] sm:$0xff]
    %v823 = vld [vmem:[#allocation6 + $0x920] sm:$0xff]
    %v824 = vld [vmem:[#allocation6 + $0x928] sm:$0xff]
    %v825 = vld [vmem:[#allocation6 + $0x930] sm:$0xff]
    %v826 = vld [vmem:[#allocation6 + $0x938] sm:$0xff]
    %v827 = vld [vmem:[#allocation6 + $0x940] sm:$0xff]
    %v828 = vld [vmem:[#allocation6 + $0x948] sm:$0xff]
    %v829 = vld [vmem:[#allocation6 + $0x950] sm:$0xff]
    %v830 = vld [vmem:[#allocation6 + $0x958] sm:$0xff]
    %v831 = vld [vmem:[#allocation6 + $0x960] sm:$0xff]
    %v832 = vld [vmem:[#allocation6 + $0x968] sm:$0xff]
    %v833 = vld [vmem:[#allocation6 + $0x970] sm:$0xff]
    %v834 = vld [vmem:[#allocation6 + $0x978] sm:$0xff]
    %v835 = vld [vmem:[#allocation6 + $0x980] sm:$0xff]
    %v836 = vld [vmem:[#allocation6 + $0x988] sm:$0xff]
    %v837 = vld [vmem:[#allocation6 + $0x990] sm:$0xff]
    %v838 = vld [vmem:[#allocation6 + $0x998] sm:$0xff]
    %v839 = vld [vmem:[#allocation6 + $0x9a0] sm:$0xff]
    %v840 = vld [vmem:[#allocation6 + $0x9a8] sm:$0xff]
    %v841 = vld [vmem:[#allocation6 + $0x9b0] sm:$0xff]
    %v842 = vld [vmem:[#allocation6 + $0x9b8] sm:$0xff]
    %v843 = vld [vmem:[#allocation6 + $0x9c0] sm:$0xff]
    %v844 = vld [vmem:[#allocation6 + $0x9c8] sm:$0xff]
    %v845 = vld [vmem:[#allocation6 + $0x9d0] sm:$0xff]
    %v846 = vld [vmem:[#allocation6 + $0x9d8] sm:$0xff]
    %v847 = vld [vmem:[#allocation6 + $0x9e0] sm:$0xff]
    %v848 = vld [vmem:[#allocation6 + $0x9e8] sm:$0xff]
    %v849 = vld [vmem:[#allocation6 + $0x9f0] sm:$0xff]
    %v850 = vld [vmem:[#allocation6 + $0x9f8] sm:$0xff]
    %v851 = vld [vmem:[#allocation6 + $0xa00] sm:$0xff]
    %v852 = vld [vmem:[#allocation6 + $0xa08] sm:$0xff]
    %v853 = vld [vmem:[#allocation6 + $0xa10] sm:$0xff]
    %v854 = vld [vmem:[#allocation6 + $0xa18] sm:$0xff]
    %v855 = vld [vmem:[#allocation6 + $0xa20] sm:$0xff]
    %v856 = vld [vmem:[#allocation6 + $0xa28] sm:$0xff]
    %v857 = vld [vmem:[#allocation6 + $0xa30] sm:$0xff]
    %v858 = vld [vmem:[#allocation6 + $0xa38] sm:$0xff]
    %v859 = vld [vmem:[#allocation6 + $0xa40] sm:$0xff]
    %v860 = vld [vmem:[#allocation6 + $0xa48] sm:$0xff]
    %v861 = vld [vmem:[#allocation6 + $0xa50] sm:$0xff]
    %v862 = vld [vmem:[#allocation6 + $0xa58] sm:$0xff]
    %v863 = vld [vmem:[#allocation6 + $0xa60] sm:$0xff]
    %v864 = vld [vmem:[#allocation6 + $0xa68] sm:$0xff]
    %v865 = vld [vmem:[#allocation6 + $0xa70] sm:$0xff]
    %v866 = vld [vmem:[#allocation6 + $0xa78] sm:$0xff]
    %v867 = vld [vmem:[#allocation6 + $0xa80] sm:$0xff]
    %v868 = vld [vmem:[#allocation6 + $0xa88] sm:$0xff]
    %v869 = vld [vmem:[#allocation6 + $0xa90] sm:$0xff]
    %v870 = vld [vmem:[#allocation6 + $0xa98] sm:$0xff]
    %v871 = vld [vmem:[#allocation6 + $0xaa0] sm:$0xff]
    %v872 = vld [vmem:[#allocation6 + $0xaa8] sm:$0xff]
    %v873 = vld [vmem:[#allocation6 + $0xab0] sm:$0xff]
    %v874 = vld [vmem:[#allocation6 + $0xab8] sm:$0xff]
    %v875 = vld [vmem:[#allocation6 + $0xac0] sm:$0xff]
    %v876 = vld [vmem:[#allocation6 + $0xac8] sm:$0xff]
    %v877 = vld [vmem:[#allocation6 + $0xad0] sm:$0xff]
    %v878 = vld [vmem:[#allocation6 + $0xad8] sm:$0xff]
    %v879 = vld [vmem:[#allocation6 + $0xae0] sm:$0xff]
    %v880 = vld [vmem:[#allocation6 + $0xae8] sm:$0xff]
    %v881 = vld [vmem:[#allocation6 + $0xaf0] sm:$0xff]
    %v882 = vld [vmem:[#allocation6 + $0xaf8] sm:$0xff]
    %v883 = vld [vmem:[#allocation6 + $0xb00] sm:$0xff]
    %v884 = vld [vmem:[#allocation6 + $0xb08] sm:$0xff]
    %v885 = vld [vmem:[#allocation6 + $0xb10] sm:$0xff]
    %v886 = vld [vmem:[#allocation6 + $0xb18] sm:$0xff]
    %v887 = vld [vmem:[#allocation6 + $0xb20] sm:$0xff]
    %v888 = vld [vmem:[#allocation6 + $0xb28] sm:$0xff]
    %v889 = vld [vmem:[#allocation6 + $0xb30] sm:$0xff]
    %v890 = vld [vmem:[#allocation6 + $0xb38] sm:$0xff]
    %v891 = vld [vmem:[#allocation6 + $0xb40] sm:$0xff]
    %v892 = vld [vmem:[#allocation6 + $0xb48] sm:$0xff]
    %v893 = vld [vmem:[#allocation6 + $0xb50] sm:$0xff]
    %v894 = vld [vmem:[#allocation6 + $0xb58] sm:$0xff]
    %v895 = vld [vmem:[#allocation6 + $0xb60] sm:$0xff]
    %v896 = vld [vmem:[#allocation6 + $0xb68] sm:$0xff]
    %v897 = vld [vmem:[#allocation6 + $0xb70] sm:$0xff]
    %v898 = vld [vmem:[#allocation6 + $0xb78] sm:$0xff]
    %v899 = vld [vmem:[#allocation6 + $0xb80] sm:$0xff]
    %v900 = vld [vmem:[#allocation6 + $0xb88] sm:$0xff]
    %v901 = vld [vmem:[#allocation6 + $0xb90] sm:$0xff]
    %v902 = vld [vmem:[#allocation6 + $0xb98] sm:$0xff]
    %v903 = vld [vmem:[#allocation6 + $0xba0] sm:$0xff]
    %v904 = vld [vmem:[#allocation6 + $0xba8] sm:$0xff]
    %v905 = vld [vmem:[#allocation6 + $0xbb0] sm:$0xff]
    %v906 = vld [vmem:[#allocation6 + $0xbb8] sm:$0xff]
    %v907 = vld [vmem:[#allocation6 + $0xbc0] sm:$0xff]
    %v908 = vld [vmem:[#allocation6 + $0xbc8] sm:$0xff]
    %v909 = vld [vmem:[#allocation6 + $0xbd0] sm:$0xff]
    %v910 = vld [vmem:[#allocation6 + $0xbd8] sm:$0xff]
    %v911 = vld [vmem:[#allocation6 + $0xbe0] sm:$0xff]
    %v912 = vld [vmem:[#allocation6 + $0xbe8] sm:$0xff]
    %v913 = vld [vmem:[#allocation6 + $0xbf0] sm:$0xff]
    %v914 = vld [vmem:[#allocation6 + $0xbf8] sm:$0xff]
    %v915 = vld [vmem:[#allocation6 + $0xc00] sm:$0xff]
    %v916 = vld [vmem:[#allocation6 + $0xc08] sm:$0xff]
    %v917 = vld [vmem:[#allocation6 + $0xc10] sm:$0xff]
    %v918 = vld [vmem:[#allocation6 + $0xc18] sm:$0xff]
    %v919 = vld [vmem:[#allocation6 + $0xc20] sm:$0xff]
    %v920 = vld [vmem:[#allocation6 + $0xc28] sm:$0xff]
    %v921 = vld [vmem:[#allocation6 + $0xc30] sm:$0xff]
    %v922 = vld [vmem:[#allocation6 + $0xc38] sm:$0xff]
    %v923 = vld [vmem:[#allocation6 + $0xc40] sm:$0xff]
    %v924 = vld [vmem:[#allocation6 + $0xc48] sm:$0xff]
    %v925 = vld [vmem:[#allocation6 + $0xc50] sm:$0xff]
    %v926 = vld [vmem:[#allocation6 + $0xc58] sm:$0xff]
    %v927 = vld [vmem:[#allocation6 + $0xc60] sm:$0xff]
    %v928 = vld [vmem:[#allocation6 + $0xc68] sm:$0xff]
    %v929 = vld [vmem:[#allocation6 + $0xc70] sm:$0xff]
    %v930 = vld [vmem:[#allocation6 + $0xc78] sm:$0xff]
    %v931 = vld [vmem:[#allocation6 + $0xc80] sm:$0xff]
    %v932 = vld [vmem:[#allocation6 + $0xc88] sm:$0xff]
    %v933 = vld [vmem:[#allocation6 + $0xc90] sm:$0xff]
    %v934 = vld [vmem:[#allocation6 + $0xc98] sm:$0xff]
    %v935 = vld [vmem:[#allocation6 + $0xca0] sm:$0xff]
    %v936 = vld [vmem:[#allocation6 + $0xca8] sm:$0xff]
    %v937 = vld [vmem:[#allocation6 + $0xcb0] sm:$0xff]
    %v938 = vld [vmem:[#allocation6 + $0xcb8] sm:$0xff]
    %v939 = vld [vmem:[#allocation6 + $0xcc0] sm:$0xff]
    %v940 = vld [vmem:[#allocation6 + $0xcc8] sm:$0xff]
    %v941 = vld [vmem:[#allocation6 + $0xcd0] sm:$0xff]
    %v942 = vld [vmem:[#allocation6 + $0xcd8] sm:$0xff]
    %v943 = vld [vmem:[#allocation6 + $0xce0] sm:$0xff]
    %v944 = vld [vmem:[#allocation6 + $0xce8] sm:$0xff]
    %v945 = vld [vmem:[#allocation6 + $0xcf0] sm:$0xff]
    %v946 = vld [vmem:[#allocation6 + $0xcf8] sm:$0xff]
    %v947 = vld [vmem:[#allocation6 + $0xd00] sm:$0xff]
    %v948 = vld [vmem:[#allocation6 + $0xd08] sm:$0xff]
    %v949 = vld [vmem:[#allocation6 + $0xd10] sm:$0xff]
    %v950 = vld [vmem:[#allocation6 + $0xd18] sm:$0xff]
    %v951 = vld [vmem:[#allocation6 + $0xd20] sm:$0xff]
    %v952 = vld [vmem:[#allocation6 + $0xd28] sm:$0xff]
    %v953 = vld [vmem:[#allocation6 + $0xd30] sm:$0xff]
    %v954 = vld [vmem:[#allocation6 + $0xd38] sm:$0xff]
    %v955 = vld [vmem:[#allocation6 + $0xd40] sm:$0xff]
    %v956 = vld [vmem:[#allocation6 + $0xd48] sm:$0xff]
    %v957 = vld [vmem:[#allocation6 + $0xd50] sm:$0xff]
    %v958 = vld [vmem:[#allocation6 + $0xd58] sm:$0xff]
    %v959 = vld [vmem:[#allocation6 + $0xd60] sm:$0xff]
    %v960 = vld [vmem:[#allocation6 + $0xd68] sm:$0xff]
    %v961 = vld [vmem:[#allocation6 + $0xd70] sm:$0xff]
    %v962 = vld [vmem:[#allocation6 + $0xd78] sm:$0xff]
    %v963 = vld [vmem:[#allocation6 + $0xd80] sm:$0xff]
    %v964 = vld [vmem:[#allocation6 + $0xd88] sm:$0xff]
    %v965 = vld [vmem:[#allocation6 + $0xd90] sm:$0xff]
    %v966 = vld [vmem:[#allocation6 + $0xd98] sm:$0xff]
    %v967 = vld [vmem:[#allocation6 + $0xda0] sm:$0xff]
    %v968 = vld [vmem:[#allocation6 + $0xda8] sm:$0xff]
    %v969 = vld [vmem:[#allocation6 + $0xdb0] sm:$0xff]
    %v970 = vld [vmem:[#allocation6 + $0xdb8] sm:$0xff]
    %v971 = vld [vmem:[#allocation6 + $0xdc0] sm:$0xff]
    %v972 = vld [vmem:[#allocation6 + $0xdc8] sm:$0xff]
    %v973 = vld [vmem:[#allocation6 + $0xdd0] sm:$0xff]
    %v974 = vld [vmem:[#allocation6 + $0xdd8] sm:$0xff]
    %v975 = vld [vmem:[#allocation6 + $0xde0] sm:$0xff]
    %v976 = vld [vmem:[#allocation6 + $0xde8] sm:$0xff]
    %v977 = vld [vmem:[#allocation6 + $0xdf0] sm:$0xff]
    %v978 = vld [vmem:[#allocation6 + $0xdf8] sm:$0xff]
    %v979 = vld [vmem:[#allocation6 + $0xe00] sm:$0xff]
    %v980 = vld [vmem:[#allocation6 + $0xe08] sm:$0xff]
    %v981 = vld [vmem:[#allocation6 + $0xe10] sm:$0xff]
    %v982 = vld [vmem:[#allocation6 + $0xe18] sm:$0xff]
    %v983 = vld [vmem:[#allocation6 + $0xe20] sm:$0xff]
    %v984 = vld [vmem:[#allocation6 + $0xe28] sm:$0xff]
    %v985 = vld [vmem:[#allocation6 + $0xe30] sm:$0xff]
    %v986 = vld [vmem:[#allocation6 + $0xe38] sm:$0xff]
    %v987 = vld [vmem:[#allocation6 + $0xe40] sm:$0xff]
    %v988 = vld [vmem:[#allocation6 + $0xe48] sm:$0xff]
    %v989 = vld [vmem:[#allocation6 + $0xe50] sm:$0xff]
    %v990 = vld [vmem:[#allocation6 + $0xe58] sm:$0xff]
    %v991 = vld [vmem:[#allocation6 + $0xe60] sm:$0xff]
    %v992 = vld [vmem:[#allocation6 + $0xe68] sm:$0xff]
    %v993 = vld [vmem:[#allocation6 + $0xe70] sm:$0xff]
    %v994 = vld [vmem:[#allocation6 + $0xe78] sm:$0xff]
    %v995 = vld [vmem:[#allocation6 + $0xe80] sm:$0xff]
    %v996 = vld [vmem:[#allocation6 + $0xe88] sm:$0xff]
    %v997 = vld [vmem:[#allocation6 + $0xe90] sm:$0xff]
    %v998 = vld [vmem:[#allocation6 + $0xe98] sm:$0xff]
    %v999 = vld [vmem:[#allocation6 + $0xea0] sm:$0xff]
    %v1000 = vld [vmem:[#allocation6 + $0xea8] sm:$0xff]
    %v1001 = vld [vmem:[#allocation6 + $0xeb0] sm:$0xff]
    %v1002 = vld [vmem:[#allocation6 + $0xeb8] sm:$0xff]
    %v1003 = vld [vmem:[#allocation6 + $0xec0] sm:$0xff]
    %v1004 = vld [vmem:[#allocation6 + $0xec8] sm:$0xff]
    %v1005 = vld [vmem:[#allocation6 + $0xed0] sm:$0xff]
    %v1006 = vld [vmem:[#allocation6 + $0xed8] sm:$0xff]
    %v1007 = vld [vmem:[#allocation6 + $0xee0] sm:$0xff]
    %v1008 = vld [vmem:[#allocation6 + $0xee8] sm:$0xff]
    %v1009 = vld [vmem:[#allocation6 + $0xef0] sm:$0xff]
    %v1010 = vld [vmem:[#allocation6 + $0xef8] sm:$0xff]
    %v1011 = vld [vmem:[#allocation6 + $0xf00] sm:$0xff]
    %v1012 = vld [vmem:[#allocation6 + $0xf08] sm:$0xff]
    %v1013 = vld [vmem:[#allocation6 + $0xf10] sm:$0xff]
    %v1014 = vld [vmem:[#allocation6 + $0xf18] sm:$0xff]
    %v1015 = vld [vmem:[#allocation6 + $0xf20] sm:$0xff]
    %v1016 = vld [vmem:[#allocation6 + $0xf28] sm:$0xff]
    %v1017 = vld [vmem:[#allocation6 + $0xf30] sm:$0xff]
    %v1018 = vld [vmem:[#allocation6 + $0xf38] sm:$0xff]
    %v1019 = vld [vmem:[#allocation6 + $0xf40] sm:$0xff]
    %v1020 = vld [vmem:[#allocation6 + $0xf48] sm:$0xff]
    %v1021 = vld [vmem:[#allocation6 + $0xf50] sm:$0xff]
    %v1022 = vld [vmem:[#allocation6 + $0xf58] sm:$0xff]
    %v1023 = vld [vmem:[#allocation6 + $0xf60] sm:$0xff]
    %v1024 = vld [vmem:[#allocation6 + $0xf68] sm:$0xff]
    %v1025 = vld [vmem:[#allocation6 + $0xf70] sm:$0xff]
    %v1026 = vld [vmem:[#allocation6 + $0xf78] sm:$0xff]
    %v1027 = vld [vmem:[#allocation6 + $0xf80] sm:$0xff]
    %v1028 = vld [vmem:[#allocation6 + $0xf88] sm:$0xff]
    %v1029 = vld [vmem:[#allocation6 + $0xf90] sm:$0xff]
    %v1030 = vld [vmem:[#allocation6 + $0xf98] sm:$0xff]
    %v1031 = vld [vmem:[#allocation6 + $0xfa0] sm:$0xff]
    %v1032 = vld [vmem:[#allocation6 + $0xfa8] sm:$0xff]
    %v1033 = vld [vmem:[#allocation6 + $0xfb0] sm:$0xff]
    %v1034 = vld [vmem:[#allocation6 + $0xfb8] sm:$0xff]
    %v1035 = vld [vmem:[#allocation6 + $0xfc0] sm:$0xff]
    %v1036 = vld [vmem:[#allocation6 + $0xfc8] sm:$0xff]
    %v1037 = vld [vmem:[#allocation6 + $0xfd0] sm:$0xff]
    %v1038 = vld [vmem:[#allocation6 + $0xfd8] sm:$0xff]
    %v1039 = vld [vmem:[#allocation6 + $0xfe0] sm:$0xff]
    %v1040 = vld [vmem:[#allocation6 + $0xfe8] sm:$0xff]
    %v1041 = vld [vmem:[#allocation6 + $0xff0] sm:$0xff]
    %v1042 = vld [vmem:[#allocation6 + $0xff8] sm:$0xff]
    %1043 = vmatprep.subr.mxu0 %v532
    %1044 = vmatpush1.msra.mxu0 %v531
    %1045 = vmatprep.subr.mxu0 %v540
    %1046 = vmatpush1.msra.mxu0 %v539
    %1047 = vmatprep.subr.mxu0 %v548
    %1048 = vmatpush1.msra.mxu0 %v547
    %1049 = vmatprep.subr.mxu0 %v556
    %1050 = vmatpush1.msra.mxu0 %v555
    %1051 = vmatprep.subr.mxu0 %v564
    %1052 = vmatpush1.msra.mxu0 %v563
    %1053 = vmatprep.subr.mxu0 %v572
    %1054 = vmatpush1.msra.mxu0 %v571
    %1055 = vmatprep.subr.mxu0 %v580
    %1056 = vmatpush1.msra.mxu0 %v579
    %1057 = vmatprep.subr.mxu0 %v588
    %1058 = vmatpush1.msra.mxu0 %v587
    %1059 = vmatprep.subr.mxu0 %v596
    %1060 = vmatpush1.msra.mxu0 %v595
    %1061 = vmatprep.subr.mxu0 %v604
    %1062 = vmatpush1.msra.mxu0 %v603
    %1063 = vmatprep.subr.mxu0 %v612
    %1064 = vmatpush1.msra.mxu0 %v611
    %1065 = vmatprep.subr.mxu0 %v620
    %1066 = vmatpush1.msra.mxu0 %v619
    %1067 = vmatprep.subr.mxu0 %v628
    %1068 = vmatpush1.msra.mxu0 %v627
    %1069 = vmatprep.subr.mxu0 %v636
    %1070 = vmatpush1.msra.mxu0 %v635
    %1071 = vmatprep.subr.mxu0 %v644
    %1072 = vmatpush1.msra.mxu0 %v643
    %1073 = vmatprep.subr.mxu0 %v652
    %1074 = vmatpush1.msra.mxu0 %v651
    %1075 = vmatprep.subr.mxu0 %v660
    %1076 = vmatpush1.msra.mxu0 %v659
    %1077 = vmatprep.subr.mxu0 %v668
    %1078 = vmatpush1.msra.mxu0 %v667
    %1079 = vmatprep.subr.mxu0 %v676
    %1080 = vmatpush1.msra.mxu0 %v675
    %1081 = vmatprep.subr.mxu0 %v684
    %1082 = vmatpush1.msra.mxu0 %v683
    %1083 = vmatprep.subr.mxu0 %v692
    %1084 = vmatpush1.msra.mxu0 %v691
    %1085 = vmatprep.subr.mxu0 %v700
    %1086 = vmatpush1.msra.mxu0 %v699
    %1087 = vmatprep.subr.mxu0 %v708
    %1088 = vmatpush1.msra.mxu0 %v707
    %1089 = vmatprep.subr.mxu0 %v716
    %1090 = vmatpush1.msra.mxu0 %v715
    %1091 = vmatprep.subr.mxu0 %v724
    %1092 = vmatpush1.msra.mxu0 %v723
    %1093 = vmatprep.subr.mxu0 %v732
    %1094 = vmatpush1.msra.mxu0 %v731
    %1095 = vmatprep.subr.mxu0 %v740
    %1096 = vmatpush1.msra.mxu0 %v739
    %1097 = vmatprep.subr.mxu0 %v748
    %1098 = vmatpush1.msra.mxu0 %v747
    %1099 = vmatprep.subr.mxu0 %v756
    %1100 = vmatpush1.msra.mxu0 %v755
    %1101 = vmatprep.subr.mxu0 %v764
    %1102 = vmatpush1.msra.mxu0 %v763
    %1103 = vmatprep.subr.mxu0 %v772
    %1104 = vmatpush1.msra.mxu0 %v771
    %1105 = vmatprep.subr.mxu0 %v780
    %1106 = vmatpush1.msra.mxu0 %v779
    %1107 = vmatprep.mubr.f32.mxu0 %v524
    %1108 = vmatmul.mubr.f32.gmra.mrb[0].mxu0 %v523
    %v1109 = vpop.f32.mrb[0].mxu0
    %v1110 = vadd.f32 0.0, %v1109
    %v1111 = vpop.f32.mrb[0].mxu0
    %v1112 = vadd.f32 0.0, %v1111
    %1113 = vmatprep.mubr.f32.mxu0 %v528
    %1114 = vmatmul.mubr.f32.gmra.mrb[0].mxu0 %v527
    %v1115 = vpop.f32.mrb[0].mxu0
    %v1116 = vadd.f32 0.0, %v1115
    %v1117 = vpop.f32.mrb[0].mxu0
    %v1118 = vadd.f32 0.0, %v1117
    %1119 = vdwg.mxu0
    %1120 = vmatprep.subr.mxu0 %v788
    %1121 = vmatpush1.msra.mxu0 %v787
    %1122 = vmatprep.subr.mxu0 %v796
    %1123 = vmatpush1.msra.mxu0 %v795
    %1124 = vmatprep.subr.mxu0 %v804
    %1125 = vmatpush1.msra.mxu0 %v803
    %1126 = vmatprep.subr.mxu0 %v812
    %1127 = vmatpush1.msra.mxu0 %v811
    %1128 = vmatprep.subr.mxu0 %v820
    %1129 = vmatpush1.msra.mxu0 %v819
    %1130 = vmatprep.subr.mxu0 %v828
    %1131 = vmatpush1.msra.mxu0 %v827
    %1132 = vmatprep.subr.mxu0 %v836
    %1133 = vmatpush1.msra.mxu0 %v835
    %1134 = vmatprep.subr.mxu0 %v844
    %1135 = vmatpush1.msra.mxu0 %v843
    %1136 = vmatprep.subr.mxu0 %v852
    %1137 = vmatpush1.msra.mxu0 %v851
    %1138 = vmatprep.subr.mxu0 %v860
    %1139 = vmatpush1.msra.mxu0 %v859
    %1140 = vmatprep.subr.mxu0 %v868
    %1141 = vmatpush1.msra.mxu0 %v867
    %1142 = vmatprep.subr.mxu0 %v876
    %1143 = vmatpush1.msra.mxu0 %v875
    %1144 = vmatprep.subr.mxu0 %v884
    %1145 = vmatpush1.msra.mxu0 %v883
    %1146 = vmatprep.subr.mxu0 %v892
    %1147 = vmatpush1.msra.mxu0 %v891
    %1148 = vmatprep.subr.mxu0 %v900
    %1149 = vmatpush1.msra.mxu0 %v899
    %1150 = vmatprep.subr.mxu0 %v908
    %1151 = vmatpush1.msra.mxu0 %v907
    %1152 = vmatprep.subr.mxu0 %v916
    %1153 = vmatpush1.msra.mxu0 %v915
    %1154 = vmatprep.subr.mxu0 %v924
    %1155 = vmatpush1.msra.mxu0 %v923
    %1156 = vmatprep.subr.mxu0 %v932
    %1157 = vmatpush1.msra.mxu0 %v931
    %1158 = vmatprep.subr.mxu0 %v940
    %1159 = vmatpush1.msra.mxu0 %v939
    %1160 = vmatprep.subr.mxu0 %v948
    %1161 = vmatpush1.msra.mxu0 %v947
    %1162 = vmatprep.subr.mxu0 %v956
    %1163 = vmatpush1.msra.mxu0 %v955
    %1164 = vmatprep.subr.mxu0 %v964
    %1165 = vmatpush1.msra.mxu0 %v963
    %1166 = vmatprep.subr.mxu0 %v972
    %1167 = vmatpush1.msra.mxu0 %v971
    %1168 = vmatprep.subr.mxu0 %v980
    %1169 = vmatpush1.msra.mxu0 %v979
    %1170 = vmatprep.subr.mxu0 %v988
    %1171 = vmatpush1.msra.mxu0 %v987
    %1172 = vmatprep.subr.mxu0 %v996
    %1173 = vmatpush1.msra.mxu0 %v995
    %1174 = vmatprep.subr.mxu0 %v1004
    %1175 = vmatpush1.msra.mxu0 %v1003
    %1176 = vmatprep.subr.mxu0 %v1012
    %1177 = vmatpush1.msra.mxu0 %v1011
    %1178 = vmatprep.subr.mxu0 %v1020
    %1179 = vmatpush1.msra.mxu0 %v1019
    %1180 = vmatprep.subr.mxu0 %v1028
    %1181 = vmatpush1.msra.mxu0 %v1027
    %1182 = vmatprep.subr.mxu0 %v1036
    %1183 = vmatpush1.msra.mxu0 %v1035
    %1184 = vmatprep.mubr.f32.mxu0 %v526
    %1185 = vmatmul.mubr.f32.gmra.mrb[0].mxu0 %v525
    %v1186 = vpop.f32.mrb[0].mxu0
    %v1187 = vadd.f32 %v1110, %v1186
    %v1188 = vpop.f32.mrb[0].mxu0
    %v1189 = vadd.f32 %v1112, %v1188
    %1190 = vmatprep.mubr.f32.mxu0 %v530
    %1191 = vmatmul.mubr.f32.gmra.mrb[0].mxu0 %v529
    %v1192 = vpop.f32.mrb[0].mxu0
    %v1193 = vadd.f32 %v1116, %v1192
    %v1194 = vpop.f32.mrb[0].mxu0
    %v1195 = vadd.f32 %v1118, %v1194
    %1196 = vdwg.mxu0
    %1197 = vmatprep.subr.mxu0 %v534
    %1198 = vmatpush1.msra.mxu0 %v533
    %1199 = vmatprep.subr.mxu0 %v542
    %1200 = vmatpush1.msra.mxu0 %v541
    %1201 = vmatprep.subr.mxu0 %v550
    %1202 = vmatpush1.msra.mxu0 %v549
    %1203 = vmatprep.subr.mxu0 %v558
    %1204 = vmatpush1.msra.mxu0 %v557
    %1205 = vmatprep.subr.mxu0 %v566
    %1206 = vmatpush1.msra.mxu0 %v565
    %1207 = vmatprep.subr.mxu0 %v574
    %1208 = vmatpush1.msra.mxu0 %v573
    %1209 = vmatprep.subr.mxu0 %v582
    %1210 = vmatpush1.msra.mxu0 %v581
    %1211 = vmatprep.subr.mxu0 %v590
    %1212 = vmatpush1.msra.mxu0 %v589
    %1213 = vmatprep.subr.mxu0 %v598
    %1214 = vmatpush1.msra.mxu0 %v597
    %1215 = vmatprep.subr.mxu0 %v606
    %1216 = vmatpush1.msra.mxu0 %v605
    %1217 = vmatprep.subr.mxu0 %v614
    %1218 = vmatpush1.msra.mxu0 %v613
    %1219 = vmatprep.subr.mxu0 %v622
    %1220 = vmatpush1.msra.mxu0 %v621
    %1221 = vmatprep.subr.mxu0 %v630
    %1222 = vmatpush1.msra.mxu0 %v629
    %1223 = vmatprep.subr.mxu0 %v638
    %1224 = vmatpush1.msra.mxu0 %v637
    %1225 = vmatprep.subr.mxu0 %v646
    %1226 = vmatpush1.msra.mxu0 %v645
    %1227 = vmatprep.subr.mxu0 %v654
    %1228 = vmatpush1.msra.mxu0 %v653
    %1229 = vmatprep.subr.mxu0 %v662
    %1230 = vmatpush1.msra.mxu0 %v661
    %1231 = vmatprep.subr.mxu0 %v670
    %1232 = vmatpush1.msra.mxu0 %v669
    %1233 = vmatprep.subr.mxu0 %v678
    %1234 = vmatpush1.msra.mxu0 %v677
    %1235 = vmatprep.subr.mxu0 %v686
    %1236 = vmatpush1.msra.mxu0 %v685
    %1237 = vmatprep.subr.mxu0 %v694
    %1238 = vmatpush1.msra.mxu0 %v693
    %1239 = vmatprep.subr.mxu0 %v702
    %1240 = vmatpush1.msra.mxu0 %v701
    %1241 = vmatprep.subr.mxu0 %v710
    %1242 = vmatpush1.msra.mxu0 %v709
    %1243 = vmatprep.subr.mxu0 %v718
    %1244 = vmatpush1.msra.mxu0 %v717
    %1245 = vmatprep.subr.mxu0 %v726
    %1246 = vmatpush1.msra.mxu0 %v725
    %1247 = vmatprep.subr.mxu0 %v734
    %1248 = vmatpush1.msra.mxu0 %v733
    %1249 = vmatprep.subr.mxu0 %v742
    %1250 = vmatpush1.msra.mxu0 %v741
    %1251 = vmatprep.subr.mxu0 %v750
    %1252 = vmatpush1.msra.mxu0 %v749
    %1253 = vmatprep.subr.mxu0 %v758
    %1254 = vmatpush1.msra.mxu0 %v757
    %1255 = vmatprep.subr.mxu0 %v766
    %1256 = vmatpush1.msra.mxu0 %v765
    %1257 = vmatprep.subr.mxu0 %v774
    %1258 = vmatpush1.msra.mxu0 %v773
    %1259 = vmatprep.subr.mxu0 %v782
    %1260 = vmatpush1.msra.mxu0 %v781
    %1261 = vmatprep.mubr.f32.mxu0 %v524
    %1262 = vmatmul.mubr.f32.gmra.mrb[0].mxu0 %v523
    %v1263 = vpop.f32.mrb[0].mxu0
    %v1264 = vadd.f32 0.0, %v1263
    %v1265 = vpop.f32.mrb[0].mxu0
    %v1266 = vadd.f32 0.0, %v1265
    %1267 = vmatprep.mubr.f32.mxu0 %v528
    %1268 = vmatmul.mubr.f32.gmra.mrb[0].mxu0 %v527
    %v1269 = vpop.f32.mrb[0].mxu0
    %v1270 = vadd.f32 0.0, %v1269
    %v1271 = vpop.f32.mrb[0].mxu0
    %v1272 = vadd.f32 0.0, %v1271
    %1273 = vdwg.mxu0
    %1274 = vmatprep.subr.mxu0 %v790
    %1275 = vmatpush1.msra.mxu0 %v789
    %1276 = vmatprep.subr.mxu0 %v798
    %1277 = vmatpush1.msra.mxu0 %v797
    %1278 = vmatprep.subr.mxu0 %v806
    %1279 = vmatpush1.msra.mxu0 %v805
    %1280 = vmatprep.subr.mxu0 %v814
    %1281 = vmatpush1.msra.mxu0 %v813
    %1282 = vmatprep.subr.mxu0 %v822
    %1283 = vmatpush1.msra.mxu0 %v821
    %1284 = vmatprep.subr.mxu0 %v830
    %1285 = vmatpush1.msra.mxu0 %v829
    %1286 = vmatprep.subr.mxu0 %v838
    %1287 = vmatpush1.msra.mxu0 %v837
    %1288 = vmatprep.subr.mxu0 %v846
    %1289 = vmatpush1.msra.mxu0 %v845
    %1290 = vmatprep.subr.mxu0 %v854
    %1291 = vmatpush1.msra.mxu0 %v853
    %1292 = vmatprep.subr.mxu0 %v862
    %1293 = vmatpush1.msra.mxu0 %v861
    %1294 = vmatprep.subr.mxu0 %v870
    %1295 = vmatpush1.msra.mxu0 %v869
    %1296 = vmatprep.subr.mxu0 %v878
    %1297 = vmatpush1.msra.mxu0 %v877
    %1298 = vmatprep.subr.mxu0 %v886
    %1299 = vmatpush1.msra.mxu0 %v885
    %1300 = vmatprep.subr.mxu0 %v894
    %1301 = vmatpush1.msra.mxu0 %v893
    %1302 = vmatprep.subr.mxu0 %v902
    %1303 = vmatpush1.msra.mxu0 %v901
    %1304 = vmatprep.subr.mxu0 %v910
    %1305 = vmatpush1.msra.mxu0 %v909
    %1306 = vmatprep.subr.mxu0 %v918
    %1307 = vmatpush1.msra.mxu0 %v917
    %1308 = vmatprep.subr.mxu0 %v926
    %1309 = vmatpush1.msra.mxu0 %v925
    %1310 = vmatprep.subr.mxu0 %v934
    %1311 = vmatpush1.msra.mxu0 %v933
    %1312 = vmatprep.subr.mxu0 %v942
    %1313 = vmatpush1.msra.mxu0 %v941
    %1314 = vmatprep.subr.mxu0 %v950
    %1315 = vmatpush1.msra.mxu0 %v949
    %1316 = vmatprep.subr.mxu0 %v958
    %1317 = vmatpush1.msra.mxu0 %v957
    %1318 = vmatprep.subr.mxu0 %v966
    %1319 = vmatpush1.msra.mxu0 %v965
    %1320 = vmatprep.subr.mxu0 %v974
    %1321 = vmatpush1.msra.mxu0 %v973
    %1322 = vmatprep.subr.mxu0 %v982
    %1323 = vmatpush1.msra.mxu0 %v981
    %1324 = vmatprep.subr.mxu0 %v990
    %1325 = vmatpush1.msra.mxu0 %v989
    %1326 = vmatprep.subr.mxu0 %v998
    %1327 = vmatpush1.msra.mxu0 %v997
    %1328 = vmatprep.subr.mxu0 %v1006
    %1329 = vmatpush1.msra.mxu0 %v1005
    %1330 = vmatprep.subr.mxu0 %v1014
    %1331 = vmatpush1.msra.mxu0 %v1013
    %1332 = vmatprep.subr.mxu0 %v1022
    %1333 = vmatpush1.msra.mxu0 %v1021
    %1334 = vmatprep.subr.mxu0 %v1030
    %1335 = vmatpush1.msra.mxu0 %v1029
    %1336 = vmatprep.subr.mxu0 %v1038
    %1337 = vmatpush1.msra.mxu0 %v1037
    %1338 = vmatprep.mubr.f32.mxu0 %v526
    %1339 = vmatmul.mubr.f32.gmra.mrb[0].mxu0 %v525
    %v1340 = vpop.f32.mrb[0].mxu0
    %v1341 = vadd.f32 %v1264, %v1340
    %v1342 = vpop.f32.mrb[0].mxu0
    %v1343 = vadd.f32 %v1266, %v1342
    %1344 = vmatprep.mubr.f32.mxu0 %v530
    %1345 = vmatmul.mubr.f32.gmra.mrb[0].mxu0 %v529
    %v1346 = vpop.f32.mrb[0].mxu0
    %v1347 = vadd.f32 %v1270, %v1346
    %v1348 = vpop.f32.mrb[0].mxu0
    %v1349 = vadd.f32 %v1272, %v1348
    %1350 = vdwg.mxu0
    %1351 = vmatprep.subr.mxu0 %v536
    %1352 = vmatpush1.msra.mxu0 %v535
    %1353 = vmatprep.subr.mxu0 %v544
    %1354 = vmatpush1.msra.mxu0 %v543
    %1355 = vmatprep.subr.mxu0 %v552
    %1356 = vmatpush1.msra.mxu0 %v551
    %1357 = vmatprep.subr.mxu0 %v560
    %1358 = vmatpush1.msra.mxu0 %v559
    %1359 = vmatprep.subr.mxu0 %v568
    %1360 = vmatpush1.msra.mxu0 %v567
    %1361 = vmatprep.subr.mxu0 %v576
    %1362 = vmatpush1.msra.mxu0 %v575
    %1363 = vmatprep.subr.mxu0 %v584
    %1364 = vmatpush1.msra.mxu0 %v583
    %1365 = vmatprep.subr.mxu0 %v592
    %1366 = vmatpush1.msra.mxu0 %v591
    %1367 = vmatprep.subr.mxu0 %v600
    %1368 = vmatpush1.msra.mxu0 %v599
    %1369 = vmatprep.subr.mxu0 %v608
    %1370 = vmatpush1.msra.mxu0 %v607
    %1371 = vmatprep.subr.mxu0 %v616
    %1372 = vmatpush1.msra.mxu0 %v615
    %1373 = vmatprep.subr.mxu0 %v624
    %1374 = vmatpush1.msra.mxu0 %v623
    %1375 = vmatprep.subr.mxu0 %v632
    %1376 = vmatpush1.msra.mxu0 %v631
    %1377 = vmatprep.subr.mxu0 %v640
    %1378 = vmatpush1.msra.mxu0 %v639
    %1379 = vmatprep.subr.mxu0 %v648
    %1380 = vmatpush1.msra.mxu0 %v647
    %1381 = vmatprep.subr.mxu0 %v656
    %1382 = vmatpush1.msra.mxu0 %v655
    %1383 = vmatprep.subr.mxu0 %v664
    %1384 = vmatpush1.msra.mxu0 %v663
    %1385 = vmatprep.subr.mxu0 %v672
    %1386 = vmatpush1.msra.mxu0 %v671
    %1387 = vmatprep.subr.mxu0 %v680
    %1388 = vmatpush1.msra.mxu0 %v679
    %1389 = vmatprep.subr.mxu0 %v688
    %1390 = vmatpush1.msra.mxu0 %v687
    %1391 = vmatprep.subr.mxu0 %v696
    %1392 = vmatpush1.msra.mxu0 %v695
    %1393 = vmatprep.subr.mxu0 %v704
    %1394 = vmatpush1.msra.mxu0 %v703
    %1395 = vmatprep.subr.mxu0 %v712
    %1396 = vmatpush1.msra.mxu0 %v711
    %1397 = vmatprep.subr.mxu0 %v720
    %1398 = vmatpush1.msra.mxu0 %v719
    %1399 = vmatprep.subr.mxu0 %v728
    %1400 = vmatpush1.msra.mxu0 %v727
    %1401 = vmatprep.subr.mxu0 %v736
    %1402 = vmatpush1.msra.mxu0 %v735
    %1403 = vmatprep.subr.mxu0 %v744
    %1404 = vmatpush1.msra.mxu0 %v743
    %1405 = vmatprep.subr.mxu0 %v752
    %1406 = vmatpush1.msra.mxu0 %v751
    %1407 = vmatprep.subr.mxu0 %v760
    %1408 = vmatpush1.msra.mxu0 %v759
    %1409 = vmatprep.subr.mxu0 %v768
    %1410 = vmatpush1.msra.mxu0 %v767
    %1411 = vmatprep.subr.mxu0 %v776
    %1412 = vmatpush1.msra.mxu0 %v775
    %1413 = vmatprep.subr.mxu0 %v784
    %1414 = vmatpush1.msra.mxu0 %v783
    %1415 = vmatprep.mubr.f32.mxu0 %v524
    %1416 = vmatmul.mubr.f32.gmra.mrb[0].mxu0 %v523
    %v1417 = vpop.f32.mrb[0].mxu0
    %v1418 = vadd.f32 0.0, %v1417
    %v1419 = vpop.f32.mrb[0].mxu0
    %v1420 = vadd.f32 0.0, %v1419
    %1421 = vmatprep.mubr.f32.mxu0 %v528
    %1422 = vmatmul.mubr.f32.gmra.mrb[0].mxu0 %v527
    %v1423 = vpop.f32.mrb[0].mxu0
    %v1424 = vadd.f32 0.0, %v1423
    %v1425 = vpop.f32.mrb[0].mxu0
    %v1426 = vadd.f32 0.0, %v1425
    %1427 = vdwg.mxu0
    %1428 = vmatprep.subr.mxu0 %v792
    %1429 = vmatpush1.msra.mxu0 %v791
    %1430 = vmatprep.subr.mxu0 %v800
    %1431 = vmatpush1.msra.mxu0 %v799
    %1432 = vmatprep.subr.mxu0 %v808
    %1433 = vmatpush1.msra.mxu0 %v807
    %1434 = vmatprep.subr.mxu0 %v816
    %1435 = vmatpush1.msra.mxu0 %v815
    %1436 = vmatprep.subr.mxu0 %v824
    %1437 = vmatpush1.msra.mxu0 %v823
    %1438 = vmatprep.subr.mxu0 %v832
    %1439 = vmatpush1.msra.mxu0 %v831
    %1440 = vmatprep.subr.mxu0 %v840
    %1441 = vmatpush1.msra.mxu0 %v839
    %1442 = vmatprep.subr.mxu0 %v848
    %1443 = vmatpush1.msra.mxu0 %v847
    %1444 = vmatprep.subr.mxu0 %v856
    %1445 = vmatpush1.msra.mxu0 %v855
    %1446 = vmatprep.subr.mxu0 %v864
    %1447 = vmatpush1.msra.mxu0 %v863
    %1448 = vmatprep.subr.mxu0 %v872
    %1449 = vmatpush1.msra.mxu0 %v871
    %1450 = vmatprep.subr.mxu0 %v880
    %1451 = vmatpush1.msra.mxu0 %v879
    %1452 = vmatprep.subr.mxu0 %v888
    %1453 = vmatpush1.msra.mxu0 %v887
    %1454 = vmatprep.subr.mxu0 %v896
    %1455 = vmatpush1.msra.mxu0 %v895
    %1456 = vmatprep.subr.mxu0 %v904
    %1457 = vmatpush1.msra.mxu0 %v903
    %1458 = vmatprep.subr.mxu0 %v912
    %1459 = vmatpush1.msra.mxu0 %v911
    %1460 = vmatprep.subr.mxu0 %v920
    %1461 = vmatpush1.msra.mxu0 %v919
    %1462 = vmatprep.subr.mxu0 %v928
    %1463 = vmatpush1.msra.mxu0 %v927
    %1464 = vmatprep.subr.mxu0 %v936
    %1465 = vmatpush1.msra.mxu0 %v935
    %1466 = vmatprep.subr.mxu0 %v944
    %1467 = vmatpush1.msra.mxu0 %v943
    %1468 = vmatprep.subr.mxu0 %v952
    %1469 = vmatpush1.msra.mxu0 %v951
    %1470 = vmatprep.subr.mxu0 %v960
    %1471 = vmatpush1.msra.mxu0 %v959
    %1472 = vmatprep.subr.mxu0 %v968
    %1473 = vmatpush1.msra.mxu0 %v967
    %1474 = vmatprep.subr.mxu0 %v976
    %1475 = vmatpush1.msra.mxu0 %v975
    %1476 = vmatprep.subr.mxu0 %v984
    %1477 = vmatpush1.msra.mxu0 %v983
    %1478 = vmatprep.subr.mxu0 %v992
    %1479 = vmatpush1.msra.mxu0 %v991
    %1480 = vmatprep.subr.mxu0 %v1000
    %1481 = vmatpush1.msra.mxu0 %v999
    %1482 = vmatprep.subr.mxu0 %v1008
    %1483 = vmatpush1.msra.mxu0 %v1007
    %1484 = vmatprep.subr.mxu0 %v1016
    %1485 = vmatpush1.msra.mxu0 %v1015
    %1486 = vmatprep.subr.mxu0 %v1024
    %1487 = vmatpush1.msra.mxu0 %v1023
    %1488 = vmatprep.subr.mxu0 %v1032
    %1489 = vmatpush1.msra.mxu0 %v1031
    %1490 = vmatprep.subr.mxu0 %v1040
    %1491 = vmatpush1.msra.mxu0 %v1039
    %1492 = vmatprep.mubr.f32.mxu0 %v526
    %1493 = vmatmul.mubr.f32.gmra.mrb[0].mxu0 %v525
    %v1494 = vpop.f32.mrb[0].mxu0
    %v1495 = vadd.f32 %v1418, %v1494
    %v1496 = vpop.f32.mrb[0].mxu0
    %v1497 = vadd.f32 %v1420, %v1496
    %1498 = vmatprep.mubr.f32.mxu0 %v530
    %1499 = vmatmul.mubr.f32.gmra.mrb[0].mxu0 %v529
    %v1500 = vpop.f32.mrb[0].mxu0
    %v1501 = vadd.f32 %v1424, %v1500
    %v1502 = vpop.f32.mrb[0].mxu0
    %v1503 = vadd.f32 %v1426, %v1502
    %1504 = vdwg.mxu0
    %1505 = vmatprep.subr.mxu0 %v538
    %1506 = vmatpush1.msra.mxu0 %v537
    %1507 = vmatprep.subr.mxu0 %v546
    %1508 = vmatpush1.msra.mxu0 %v545
    %1509 = vmatprep.subr.mxu0 %v554
    %1510 = vmatpush1.msra.mxu0 %v553
    %1511 = vmatprep.subr.mxu0 %v562
    %1512 = vmatpush1.msra.mxu0 %v561
    %1513 = vmatprep.subr.mxu0 %v570
    %1514 = vmatpush1.msra.mxu0 %v569
    %1515 = vmatprep.subr.mxu0 %v578
    %1516 = vmatpush1.msra.mxu0 %v577
    %1517 = vmatprep.subr.mxu0 %v586
    %1518 = vmatpush1.msra.mxu0 %v585
    %1519 = vmatprep.subr.mxu0 %v594
    %1520 = vmatpush1.msra.mxu0 %v593
    %1521 = vmatprep.subr.mxu0 %v602
    %1522 = vmatpush1.msra.mxu0 %v601
    %1523 = vmatprep.subr.mxu0 %v610
    %1524 = vmatpush1.msra.mxu0 %v609
    %1525 = vmatprep.subr.mxu0 %v618
    %1526 = vmatpush1.msra.mxu0 %v617
    %1527 = vmatprep.subr.mxu0 %v626
    %1528 = vmatpush1.msra.mxu0 %v625
    %1529 = vmatprep.subr.mxu0 %v634
    %1530 = vmatpush1.msra.mxu0 %v633
    %1531 = vmatprep.subr.mxu0 %v642
    %1532 = vmatpush1.msra.mxu0 %v641
    %1533 = vmatprep.subr.mxu0 %v650
    %1534 = vmatpush1.msra.mxu0 %v649
    %1535 = vmatprep.subr.mxu0 %v658
    %1536 = vmatpush1.msra.mxu0 %v657
    %1537 = vmatprep.subr.mxu0 %v666
    %1538 = vmatpush1.msra.mxu0 %v665
    %1539 = vmatprep.subr.mxu0 %v674
    %1540 = vmatpush1.msra.mxu0 %v673
    %1541 = vmatprep.subr.mxu0 %v682
    %1542 = vmatpush1.msra.mxu0 %v681
    %1543 = vmatprep.subr.mxu0 %v690
    %1544 = vmatpush1.msra.mxu0 %v689
    %1545 = vmatprep.subr.mxu0 %v698
    %1546 = vmatpush1.msra.mxu0 %v697
    %1547 = vmatprep.subr.mxu0 %v706
    %1548 = vmatpush1.msra.mxu0 %v705
    %1549 = vmatprep.subr.mxu0 %v714
    %1550 = vmatpush1.msra.mxu0 %v713
    %1551 = vmatprep.subr.mxu0 %v722
    %1552 = vmatpush1.msra.mxu0 %v721
    %1553 = vmatprep.subr.mxu0 %v730
    %1554 = vmatpush1.msra.mxu0 %v729
    %1555 = vmatprep.subr.mxu0 %v738
    %1556 = vmatpush1.msra.mxu0 %v737
    %1557 = vmatprep.subr.mxu0 %v746
    %1558 = vmatpush1.msra.mxu0 %v745
    %1559 = vmatprep.subr.mxu0 %v754
    %1560 = vmatpush1.msra.mxu0 %v753
    %1561 = vmatprep.subr.mxu0 %v762
    %1562 = vmatpush1.msra.mxu0 %v761
    %1563 = vmatprep.subr.mxu0 %v770
    %1564 = vmatpush1.msra.mxu0 %v769
    %1565 = vmatprep.subr.mxu0 %v778
    %1566 = vmatpush1.msra.mxu0 %v777
    %1567 = vmatprep.subr.mxu0 %v786
    %1568 = vmatpush1.msra.mxu0 %v785
    %1569 = vmatprep.mubr.f32.mxu0 %v524
    %1570 = vmatmul.mubr.f32.gmra.mrb[0].mxu0 %v523
    %v1571 = vpop.f32.mrb[0].mxu0
    %v1572 = vadd.f32 0.0, %v1571
    %v1573 = vpop.f32.mrb[0].mxu0
    %v1574 = vadd.f32 0.0, %v1573
    %1575 = vmatprep.mubr.f32.mxu0 %v528
    %1576 = vmatmul.mubr.f32.gmra.mrb[0].mxu0 %v527
    %v1577 = vpop.f32.mrb[0].mxu0
    %v1578 = vadd.f32 0.0, %v1577
    %v1579 = vpop.f32.mrb[0].mxu0
    %v1580 = vadd.f32 0.0, %v1579
    %1581 = vdwg.mxu0
    %1582 = vmatprep.subr.mxu0 %v794
    %1583 = vmatpush1.msra.mxu0 %v793
    %1584 = vmatprep.subr.mxu0 %v802
    %1585 = vmatpush1.msra.mxu0 %v801
    %1586 = vmatprep.subr.mxu0 %v810
    %1587 = vmatpush1.msra.mxu0 %v809
    %1588 = vmatprep.subr.mxu0 %v818
    %1589 = vmatpush1.msra.mxu0 %v817
    %1590 = vmatprep.subr.mxu0 %v826
    %1591 = vmatpush1.msra.mxu0 %v825
    %1592 = vmatprep.subr.mxu0 %v834
    %1593 = vmatpush1.msra.mxu0 %v833
    %1594 = vmatprep.subr.mxu0 %v842
    %1595 = vmatpush1.msra.mxu0 %v841
    %1596 = vmatprep.subr.mxu0 %v850
    %1597 = vmatpush1.msra.mxu0 %v849
    %1598 = vmatprep.subr.mxu0 %v858
    %1599 = vmatpush1.msra.mxu0 %v857
    %1600 = vmatprep.subr.mxu0 %v866
    %1601 = vmatpush1.msra.mxu0 %v865
    %1602 = vmatprep.subr.mxu0 %v874
    %1603 = vmatpush1.msra.mxu0 %v873
    %1604 = vmatprep.subr.mxu0 %v882
    %1605 = vmatpush1.msra.mxu0 %v881
    %1606 = vmatprep.subr.mxu0 %v890
    %1607 = vmatpush1.msra.mxu0 %v889
    %1608 = vmatprep.subr.mxu0 %v898
    %1609 = vmatpush1.msra.mxu0 %v897
    %1610 = vmatprep.subr.mxu0 %v906
    %1611 = vmatpush1.msra.mxu0 %v905
    %1612 = vmatprep.subr.mxu0 %v914
    %1613 = vmatpush1.msra.mxu0 %v913
    %1614 = vmatprep.subr.mxu0 %v922
    %1615 = vmatpush1.msra.mxu0 %v921
    %1616 = vmatprep.subr.mxu0 %v930
    %1617 = vmatpush1.msra.mxu0 %v929
    %1618 = vmatprep.subr.mxu0 %v938
    %1619 = vmatpush1.msra.mxu0 %v937
    %1620 = vmatprep.subr.mxu0 %v946
    %1621 = vmatpush1.msra.mxu0 %v945
    %1622 = vmatprep.subr.mxu0 %v954
    %1623 = vmatpush1.msra.mxu0 %v953
    %1624 = vmatprep.subr.mxu0 %v962
    %1625 = vmatpush1.msra.mxu0 %v961
    %1626 = vmatprep.subr.mxu0 %v970
    %1627 = vmatpush1.msra.mxu0 %v969
    %1628 = vmatprep.subr.mxu0 %v978
    %1629 = vmatpush1.msra.mxu0 %v977
    %1630 = vmatprep.subr.mxu0 %v986
    %1631 = vmatpush1.msra.mxu0 %v985
    %1632 = vmatprep.subr.mxu0 %v994
    %1633 = vmatpush1.msra.mxu0 %v993
    %1634 = vmatprep.subr.mxu0 %v1002
    %1635 = vmatpush1.msra.mxu0 %v1001
    %1636 = vmatprep.subr.mxu0 %v1010
    %1637 = vmatpush1.msra.mxu0 %v1009
    %1638 = vmatprep.subr.mxu0 %v1018
    %1639 = vmatpush1.msra.mxu0 %v1017
    %1640 = vmatprep.subr.mxu0 %v1026
    %1641 = vmatpush1.msra.mxu0 %v1025
    %1642 = vmatprep.subr.mxu0 %v1034
    %1643 = vmatpush1.msra.mxu0 %v1033
    %1644 = vmatprep.subr.mxu0 %v1042
    %1645 = vmatpush1.msra.mxu0 %v1041
    %1646 = vmatprep.mubr.f32.mxu0 %v526
    %1647 = vmatmul.mubr.f32.gmra.mrb[0].mxu0 %v525
    %v1648 = vpop.f32.mrb[0].mxu0
    %v1649 = vadd.f32 %v1572, %v1648
    %v1650 = vpop.f32.mrb[0].mxu0
    %v1651 = vadd.f32 %v1574, %v1650
    %1652 = vmatprep.mubr.f32.mxu0 %v530
    %1653 = vmatmul.mubr.f32.gmra.mrb[0].mxu0 %v529
    %v1654 = vpop.f32.mrb[0].mxu0
    %v1655 = vadd.f32 %v1578, %v1654
    %v1656 = vpop.f32.mrb[0].mxu0
    %v1657 = vadd.f32 %v1580, %v1656
    %1658 = vdwg.mxu0
    %v1659 = vmax.f32 %v1187, %v1495
    %v1660 = vmax.f32 %v1189, %v1497
    %v1661 = vmax.f32 %v1341, %v1649
    %v1662 = vmax.f32 %v1343, %v1651
    %v1663 = vmax.f32 %v1193, %v1501
    %v1664 = vmax.f32 %v1195, %v1503
    %v1665 = vmax.f32 %v1347, %v1655
    %v1666 = vmax.f32 %v1349, %v1657
    %v1667 = vlaneseq
    %v1668 = vshrl.u32 %v1667, 7
    %v1669 = vsub.s32 1, %v1668
    %v1670 = vrot.slane %v89, %v1669
    %v1671 = vlaneseq
    %v1672 = vshrl.u32 %v1671, 7
    %v1673 = vsub.s32 3, %v1672
    %v1674 = vrot.slane %v89, %v1673
    %v1675 = vlaneseq
    %v1676 = vshrl.u32 %v1675, 7
    %v1677 = vsub.s32 5, %v1676
    %v1678 = vrot.slane %v89, %v1677
    %v1679 = vlaneseq
    %v1680 = vshrl.u32 %v1679, 7
    %v1681 = vsub.s32 7, %v1680
    %v1682 = vrot.slane %v89, %v1681
    %v1687 = vlaneseq
    %v1688 = vshrl.u32 %v1687, 7
    %v1689 = vsub.s32 1, %v1688
    %v1690 = vrot.slane %v1670, %v1689
    %v1691 = vlaneseq
    %v1692 = vshrl.u32 %v1691, 7
    %v1693 = vsub.s32 1, %v1692
    %v1694 = vrot.slane %v1674, %v1693
    %v1695 = vlaneseq
    %v1696 = vshrl.u32 %v1695, 7
    %v1697 = vsub.s32 1, %v1696
    %v1698 = vrot.slane %v1678, %v1697
    %v1699 = vlaneseq
    %v1700 = vshrl.u32 %v1699, 7
    %v1701 = vsub.s32 1, %v1700
    %v1702 = vrot.slane %v1682, %v1701
    %v1703 = vadd.f32 %v1659, %v1690
    %v1704 = vadd.f32 %v1660, %v1694
    %v1705 = vadd.f32 %v1661, %v1698
    %v1706 = vadd.f32 %v1662, %v1702
    %v1707 = vadd.f32 %v1663, %v1690
    %v1708 = vadd.f32 %v1664, %v1694
    %v1709 = vadd.f32 %v1665, %v1698
    %v1710 = vadd.f32 %v1666, %v1702
    %v1711 = vmax.f32 %v1703, 0.0
    %v1712 = vmax.f32 %v1704, 0.0
    %v1713 = vmax.f32 %v1705, 0.0
    %v1714 = vmax.f32 %v1706, 0.0
    %v1715 = vmax.f32 %v1707, 0.0
    %v1716 = vmax.f32 %v1708, 0.0
    %v1717 = vmax.f32 %v1709, 0.0
    %v1718 = vmax.f32 %v1710, 0.0
    %v1719 = vld [vmem:[%s4] sm:$0xff]
    %v1720 = vld [vmem:[%s4 + $0x8] sm:$0xff]
    %v1721 = vld [vmem:[%s4 + $0x10] sm:$0xff]
    %v1722 = vld [vmem:[%s4 + $0x18] sm:$0xff]
    %v1723 = vld [vmem:[%s4 + $0x20] sm:$0xff]
    %v1724 = vld [vmem:[%s4 + $0x28] sm:$0xff]
    %v1725 = vld [vmem:[%s4 + $0x30] sm:$0xff]
    %v1726 = vld [vmem:[%s4 + $0x38] sm:$0xff]
    %v1727 = vld [vmem:[%s4 + $0x40] sm:$0xff]
    %v1728 = vld [vmem:[%s4 + $0x48] sm:$0xff]
    %v1729 = vld [vmem:[%s4 + $0x50] sm:$0xff]
    %v1730 = vld [vmem:[%s4 + $0x58] sm:$0xff]
    %v1731 = vld [vmem:[%s4 + $0x60] sm:$0xff]
    %v1732 = vld [vmem:[%s4 + $0x68] sm:$0xff]
    %v1733 = vld [vmem:[%s4 + $0x70] sm:$0xff]
    %v1734 = vld [vmem:[%s4 + $0x78] sm:$0xff]
    %v1735 = vld [vmem:[%s4 + $0x80] sm:$0xff]
    %v1736 = vld [vmem:[%s4 + $0x88] sm:$0xff]
    %v1737 = vld [vmem:[%s4 + $0x90] sm:$0xff]
    %v1738 = vld [vmem:[%s4 + $0x98] sm:$0xff]
    %v1739 = vld [vmem:[%s4 + $0xa0] sm:$0xff]
    %v1740 = vld [vmem:[%s4 + $0xa8] sm:$0xff]
    %v1741 = vld [vmem:[%s4 + $0xb0] sm:$0xff]
    %v1742 = vld [vmem:[%s4 + $0xb8] sm:$0xff]
    %v1743 = vld [vmem:[%s4 + $0xc0] sm:$0xff]
    %v1744 = vld [vmem:[%s4 + $0xc8] sm:$0xff]
    %v1745 = vld [vmem:[%s4 + $0xd0] sm:$0xff]
    %v1746 = vld [vmem:[%s4 + $0xd8] sm:$0xff]
    %v1747 = vld [vmem:[%s4 + $0xe0] sm:$0xff]
    %v1748 = vld [vmem:[%s4 + $0xe8] sm:$0xff]
    %v1749 = vld [vmem:[%s4 + $0xf0] sm:$0xff]
    %v1750 = vld [vmem:[%s4 + $0xf8] sm:$0xff]
    %v1751 = vld [vmem:[%s4 + $0x100] sm:$0xff]
    %v1752 = vld [vmem:[%s4 + $0x108] sm:$0xff]
    %v1753 = vld [vmem:[%s4 + $0x110] sm:$0xff]
    %v1754 = vld [vmem:[%s4 + $0x118] sm:$0xff]
    %v1755 = vld [vmem:[%s4 + $0x120] sm:$0xff]
    %v1756 = vld [vmem:[%s4 + $0x128] sm:$0xff]
    %v1757 = vld [vmem:[%s4 + $0x130] sm:$0xff]
    %v1758 = vld [vmem:[%s4 + $0x138] sm:$0xff]
    %v1759 = vld [vmem:[%s4 + $0x140] sm:$0xff]
    %v1760 = vld [vmem:[%s4 + $0x148] sm:$0xff]
    %v1761 = vld [vmem:[%s4 + $0x150] sm:$0xff]
    %v1762 = vld [vmem:[%s4 + $0x158] sm:$0xff]
    %v1763 = vld [vmem:[%s4 + $0x160] sm:$0xff]
    %v1764 = vld [vmem:[%s4 + $0x168] sm:$0xff]
    %v1765 = vld [vmem:[%s4 + $0x170] sm:$0xff]
    %v1766 = vld [vmem:[%s4 + $0x178] sm:$0xff]
    %v1767 = vld [vmem:[%s4 + $0x180] sm:$0xff]
    %v1768 = vld [vmem:[%s4 + $0x188] sm:$0xff]
    %v1769 = vld [vmem:[%s4 + $0x190] sm:$0xff]
    %v1770 = vld [vmem:[%s4 + $0x198] sm:$0xff]
    %v1771 = vld [vmem:[%s4 + $0x1a0] sm:$0xff]
    %v1772 = vld [vmem:[%s4 + $0x1a8] sm:$0xff]
    %v1773 = vld [vmem:[%s4 + $0x1b0] sm:$0xff]
    %v1774 = vld [vmem:[%s4 + $0x1b8] sm:$0xff]
    %v1775 = vld [vmem:[%s4 + $0x1c0] sm:$0xff]
    %v1776 = vld [vmem:[%s4 + $0x1c8] sm:$0xff]
    %v1777 = vld [vmem:[%s4 + $0x1d0] sm:$0xff]
    %v1778 = vld [vmem:[%s4 + $0x1d8] sm:$0xff]
    %v1779 = vld [vmem:[%s4 + $0x1e0] sm:$0xff]
    %v1780 = vld [vmem:[%s4 + $0x1e8] sm:$0xff]
    %v1781 = vld [vmem:[%s4 + $0x1f0] sm:$0xff]
    %v1782 = vld [vmem:[%s4 + $0x1f8] sm:$0xff]
    %v1783 = vlaneseq
    %v1784 = vshrl.u32 %v1783, 7
    %v1785 = vsub.s32 0, %v1784
    %v1786 = vrot.slane %v90, %v1785
    %1787 = vmatprep.subr.mxu0 0.0
    %1788 = vmatpush1.msra.mxu0 %v1719
    %1789 = vmatprep.subr.mxu0 0.0
    %1790 = vmatpush1.msra.mxu0 %v1720
    %1791 = vmatprep.subr.mxu0 0.0
    %1792 = vmatpush1.msra.mxu0 %v1721
    %1793 = vmatprep.subr.mxu0 0.0
    %1794 = vmatpush1.msra.mxu0 %v1722
    %1795 = vmatprep.subr.mxu0 0.0
    %1796 = vmatpush1.msra.mxu0 %v1723
    %1797 = vmatprep.subr.mxu0 0.0
    %1798 = vmatpush1.msra.mxu0 %v1724
    %1799 = vmatprep.subr.mxu0 0.0
    %1800 = vmatpush1.msra.mxu0 %v1725
    %1801 = vmatprep.subr.mxu0 0.0
    %1802 = vmatpush1.msra.mxu0 %v1726
    %1803 = vmatprep.subr.mxu0 0.0
    %1804 = vmatpush1.msra.mxu0 %v1727
    %1805 = vmatprep.subr.mxu0 0.0
    %1806 = vmatpush1.msra.mxu0 %v1728
    %1807 = vmatprep.subr.mxu0 0.0
    %1808 = vmatpush1.msra.mxu0 %v1729
    %1809 = vmatprep.subr.mxu0 0.0
    %1810 = vmatpush1.msra.mxu0 %v1730
    %1811 = vmatprep.subr.mxu0 0.0
    %1812 = vmatpush1.msra.mxu0 %v1731
    %1813 = vmatprep.subr.mxu0 0.0
    %1814 = vmatpush1.msra.mxu0 %v1732
    %1815 = vmatprep.subr.mxu0 0.0
    %1816 = vmatpush1.msra.mxu0 %v1733
    %1817 = vmatprep.subr.mxu0 0.0
    %1818 = vmatpush1.msra.mxu0 %v1734
    %1819 = vmatprep.subr.mxu0 0.0
    %1820 = vmatpush1.msra.mxu0 %v1735
    %1821 = vmatprep.subr.mxu0 0.0
    %1822 = vmatpush1.msra.mxu0 %v1736
    %1823 = vmatprep.subr.mxu0 0.0
    %1824 = vmatpush1.msra.mxu0 %v1737
    %1825 = vmatprep.subr.mxu0 0.0
    %1826 = vmatpush1.msra.mxu0 %v1738
    %1827 = vmatprep.subr.mxu0 0.0
    %1828 = vmatpush1.msra.mxu0 %v1739
    %1829 = vmatprep.subr.mxu0 0.0
    %1830 = vmatpush1.msra.mxu0 %v1740
    %1831 = vmatprep.subr.mxu0 0.0
    %1832 = vmatpush1.msra.mxu0 %v1741
    %1833 = vmatprep.subr.mxu0 0.0
    %1834 = vmatpush1.msra.mxu0 %v1742
    %1835 = vmatprep.subr.mxu0 0.0
    %1836 = vmatpush1.msra.mxu0 %v1743
    %1837 = vmatprep.subr.mxu0 0.0
    %1838 = vmatpush1.msra.mxu0 %v1744
    %1839 = vmatprep.subr.mxu0 0.0
    %1840 = vmatpush1.msra.mxu0 %v1745
    %1841 = vmatprep.subr.mxu0 0.0
    %1842 = vmatpush1.msra.mxu0 %v1746
    %1843 = vmatprep.subr.mxu0 0.0
    %1844 = vmatpush1.msra.mxu0 %v1747
    %1845 = vmatprep.subr.mxu0 0.0
    %1846 = vmatpush1.msra.mxu0 %v1748
    %1847 = vmatprep.subr.mxu0 0.0
    %1848 = vmatpush1.msra.mxu0 %v1749
    %1849 = vmatprep.subr.mxu0 0.0
    %1850 = vmatpush1.msra.mxu0 %v1750
    %1851 = vmatprep.mubr.f32.mxu0 %v1712
    %1852 = vmatmul.mubr.f32.gmra.mrb[0].mxu0 %v1711
    %v1853 = vpop.f32.mrb[0].mxu0
    %v1854 = vadd.f32 %v1786, %v1853
    %v1855 = vpop.f32.mrb[0].mxu0
    %1856 = vmatprep.mubr.f32.mxu0 %v1716
    %1857 = vmatmul.mubr.f32.gmra.mrb[0].mxu0 %v1715
    %v1858 = vpop.f32.mrb[0].mxu0
    %v1859 = vadd.f32 %v1786, %v1858
    %v1860 = vpop.f32.mrb[0].mxu0
    %1861 = vdwg.mxu0
    %1862 = vmatprep.subr.mxu0 0.0
    %1863 = vmatpush1.msra.mxu0 %v1751
    %1864 = vmatprep.subr.mxu0 0.0
    %1865 = vmatpush1.msra.mxu0 %v1752
    %1866 = vmatprep.subr.mxu0 0.0
    %1867 = vmatpush1.msra.mxu0 %v1753
    %1868 = vmatprep.subr.mxu0 0.0
    %1869 = vmatpush1.msra.mxu0 %v1754
    %1870 = vmatprep.subr.mxu0 0.0
    %1871 = vmatpush1.msra.mxu0 %v1755
    %1872 = vmatprep.subr.mxu0 0.0
    %1873 = vmatpush1.msra.mxu0 %v1756
    %1874 = vmatprep.subr.mxu0 0.0
    %1875 = vmatpush1.msra.mxu0 %v1757
    %1876 = vmatprep.subr.mxu0 0.0
    %1877 = vmatpush1.msra.mxu0 %v1758
    %1878 = vmatprep.subr.mxu0 0.0
    %1879 = vmatpush1.msra.mxu0 %v1759
    %1880 = vmatprep.subr.mxu0 0.0
    %1881 = vmatpush1.msra.mxu0 %v1760
    %1882 = vmatprep.subr.mxu0 0.0
    %1883 = vmatpush1.msra.mxu0 %v1761
    %1884 = vmatprep.subr.mxu0 0.0
    %1885 = vmatpush1.msra.mxu0 %v1762
    %1886 = vmatprep.subr.mxu0 0.0
    %1887 = vmatpush1.msra.mxu0 %v1763
    %1888 = vmatprep.subr.mxu0 0.0
    %1889 = vmatpush1.msra.mxu0 %v1764
    %1890 = vmatprep.subr.mxu0 0.0
    %1891 = vmatpush1.msra.mxu0 %v1765
    %1892 = vmatprep.subr.mxu0 0.0
    %1893 = vmatpush1.msra.mxu0 %v1766
    %1894 = vmatprep.subr.mxu0 0.0
    %1895 = vmatpush1.msra.mxu0 %v1767
    %1896 = vmatprep.subr.mxu0 0.0
    %1897 = vmatpush1.msra.mxu0 %v1768
    %1898 = vmatprep.subr.mxu0 0.0
    %1899 = vmatpush1.msra.mxu0 %v1769
    %1900 = vmatprep.subr.mxu0 0.0
    %1901 = vmatpush1.msra.mxu0 %v1770
    %1902 = vmatprep.subr.mxu0 0.0
    %1903 = vmatpush1.msra.mxu0 %v1771
    %1904 = vmatprep.subr.mxu0 0.0
    %1905 = vmatpush1.msra.mxu0 %v1772
    %1906 = vmatprep.subr.mxu0 0.0
    %1907 = vmatpush1.msra.mxu0 %v1773
    %1908 = vmatprep.subr.mxu0 0.0
    %1909 = vmatpush1.msra.mxu0 %v1774
    %1910 = vmatprep.subr.mxu0 0.0
    %1911 = vmatpush1.msra.mxu0 %v1775
    %1912 = vmatprep.subr.mxu0 0.0
    %1913 = vmatpush1.msra.mxu0 %v1776
    %1914 = vmatprep.subr.mxu0 0.0
    %1915 = vmatpush1.msra.mxu0 %v1777
    %1916 = vmatprep.subr.mxu0 0.0
    %1917 = vmatpush1.msra.mxu0 %v1778
    %1918 = vmatprep.subr.mxu0 0.0
    %1919 = vmatpush1.msra.mxu0 %v1779
    %1920 = vmatprep.subr.mxu0 0.0
    %1921 = vmatpush1.msra.mxu0 %v1780
    %1922 = vmatprep.subr.mxu0 0.0
    %1923 = vmatpush1.msra.mxu0 %v1781
    %1924 = vmatprep.subr.mxu0 0.0
    %1925 = vmatpush1.msra.mxu0 %v1782
    %1926 = vmatprep.mubr.f32.mxu0 %v1714
    %1927 = vmatmul.mubr.f32.gmra.mrb[0].mxu0 %v1713
    %v1928 = vpop.f32.mrb[0].mxu0
    %v1929 = vadd.f32 %v1854, %v1928
    %v1930 = vpop.f32.mrb[0].mxu0
    %1931 = vmatprep.mubr.f32.mxu0 %v1718
    %1932 = vmatmul.mubr.f32.gmra.mrb[0].mxu0 %v1717
    %v1933 = vpop.f32.mrb[0].mxu0
    %v1934 = vadd.f32 %v1859, %v1933
    %v1935 = vpop.f32.mrb[0].mxu0
    %1936 = vdwg.mxu0
    %v1937 = vmax.f32 %v1929, 0.0
    %v1938 = vmax.f32 %v1934, 0.0
    %v1939 = vlaneseq
    %v1940 = vshrl.u32 %v1939, 7
    %v1941 = vsub.s32 1, %v1940
    %v1942 = vrot.slane %v90, %v1941
    %v1943 = vmul.f32 %v1937, %v1942
    %v1944 = vmul.f32 %v1938, %v1942
    %v1945 = vsel %vm155, %v1943, 0.0
    %1946 = vadd.xlane.f32.xlu0 %v1945
    %v1947 = vpop.xlane.xlu0 %1946
    %v1948 = vsel %vm155, %v1944, 0.0
    %1949 = vadd.xlane.f32.xlu0 %v1948
    %v1950 = vpop.xlane.xlu0 %1949
    %v1951 = vlaneseq
    %v1952 = vshrl.u32 %v1951, 7
    %v1953 = vsub.s32 2, %v1952
    %v1954 = vrot.slane %v90, %v1953
    %v1955 = vadd.f32 %v1947, %v1954
    %v1956 = vadd.f32 %v1950, %v1954
    %vm1957 = vcmask 7168
    %1958 = vst.msk [vmem:[%s6] sm:$0xff] %vm1957, %v1955
    %1959 = vst.msk [vmem:[%s6 + $0x8] sm:$0xff] %vm1957, %v1956
    // Predicated region
    $region46: #{cnn_forward_packed.1} parent=1 // pred_check
      _
    $region47: #{cnn_forward_packed.1} parent=1 // pred_check_branch
      %1961 = sbr.rel (0) target = $region49
    $region48: #{cnn_forward_packed.1} parent=1 // pred_region
      _
    $region49: #{cnn_forward_packed.1} parent=1 // pred_fallthru
      _
    // Predicated region
    $region50: #{cnn_forward_packed.1} parent=1 // pred_check
      _
    $region51: #{cnn_forward_packed.1} parent=1 // pred_check_branch
      %1963 = sbr.rel (0) target = $region53
    $region52: #{cnn_forward_packed.1} parent=1 // pred_region
      _
    $region53: #{cnn_forward_packed.1} parent=1 // pred_fallthru
      _
    %1964 = vsyncpa [#allocation3], 1
    %1965 = vsyncpa [#allocation5], 1
    %1966 = vsyncpa [#allocation8], 1

</llo_original>
